<compile_context>
chip_gen: v6e
topology: v6e:2x2x1
jax: 0.10.0
libtpu: 0.0.40
codegen_flags: <defaults>
</compile_context>

<pallas_src>
import jax
import jax.numpy as jnp
import numpy as np
from jax.experimental import pallas as pl
from jax.experimental.pallas import tpu as pltpu

LN_EPS = 1e-5


def _gelu(x):
    # tanh-approximate GELU (see TODO above re: erf-exact parity).
    c = 0.7978845608028654  # sqrt(2/pi)
    return 0.5 * x * (1.0 + jnp.tanh(c * (x + 0.044715 * x * x * x)))


def _make_fused_kernel(H, W, Cin, Cmid, Cout, K, B_blk):
    """conv1+LN+GELU -> conv2+LN+GELU -> +shortcut -> GELU, channels-first."""
    p = K // 2
    Wp = W + 2 * p           # padded row width
    r0 = p + 1               # first interior row (one extra safety row on top)
    R = H + 2 * p + 2        # padded row count (+-1 extra so band reads stay in range)
    HWp = H * Wp             # per-image compute band length (lanes)

    def conv_ln_gelu(read_band, w_ref, prm_ref, c_out):
        """K x K 'same' conv (bf16 MXU, f32 acc) + channel LayerNorm + GELU.

        read_band(t0) -> (c_in, H*Wp) bf16 contiguous band slice at offset t0
        w_ref : (K*K, c_out, c_in) bf16  per-tap weights, pre-transposed
        prm_ref:(c_out, 3) f32           [bias | gamma | beta] columns
        returns (c_out, H*Wp) f32
        """
        acc = jnp.zeros((c_out, HWp), jnp.float32)
        for dh in range(K):
            for dw in range(K):
                t0 = (r0 + dh - p) * Wp + (dw - p)     # static Python int
                acc = acc + jnp.dot(w_ref[dh * K + dw], read_band(t0),
                                    preferred_element_type=jnp.float32)
        acc = acc + prm_ref[:, 0:1]                    # conv bias
        # LayerNorm over the channel (sublane) dimension, per pixel, f32.
        mu = jnp.mean(acc, axis=0, keepdims=True)
        var = jnp.mean(jnp.square(acc - mu), axis=0, keepdims=True)
        y = (acc - mu) * jax.lax.rsqrt(var + LN_EPS)
        return _gelu(y * prm_ref[:, 1:2] + prm_ref[:, 2:3])

    def kernel(x_ref, w1_ref, p1_ref, w2_ref, p2_ref, wd_ref, mask_ref,
               out_ref, y_ref):
        # x_ref   : (B_blk, Cin, R*Wp) bf16  zero-padded input, rows flattened
        # w1_ref  : (K*K, Cmid, Cin)   bf16
        # p1_ref  : (Cmid, 3)          f32
        # w2_ref  : (K*K, Cout, Cmid)  bf16
        # p2_ref  : (Cout, 3)          f32
        # wd_ref  : (Cout, Cin)        bf16  1x1 downsample weight
        # mask_ref: (1, H*Wp)          f32   1.0 at image cols, 0.0 at pad gaps
        # out_ref : (B_blk, Cout, H*Wp) f32
        # y_ref   : (Cmid, R*Wp) bf16 scratch: padded, resident conv1 activation

        # Zero only the top/bottom halo rows of the activation scratch; the
        # interior band is fully overwritten below.  Runs every grid step.
        y_ref[:, 0:r0 * Wp] = jnp.zeros((Cmid, r0 * Wp), y_ref.dtype)
        y_ref[:, (r0 + H) * Wp:R * Wp] = jnp.zeros(
            (Cmid, (R - r0 - H) * Wp), y_ref.dtype)
        mask = mask_ref[...]                            # (1, H*Wp)

        for b in range(B_blk):
            # ---- conv1 + norm1 + act1 : (Cmid, H*Wp) f32 ----
            y1 = conv_ln_gelu(
                lambda t0, b=b: x_ref[b, :, t0:t0 + HWp],
                w1_ref, p1_ref, Cmid)
            # Keep the conv1 activation resident: one dense band store into the
            # padded bf16 scratch, horizontal pad-gap columns zeroed via mask.
            y_ref[:, r0 * Wp:(r0 + H) * Wp] = (y1 * mask).astype(y_ref.dtype)

            # ---- conv2 + norm2 + act2 : (Cout, H*Wp) f32 ----
            y2 = conv_ln_gelu(
                lambda t0: y_ref[:, t0:t0 + HWp],
                w2_ref, p2_ref, Cout)

            # ---- 1x1 downsample shortcut + residual + act3 ----
            shortcut = jnp.dot(
                wd_ref[...], x_ref[b, :, r0 * Wp:(r0 + H) * Wp],
                preferred_element_type=jnp.float32)     # (Cout, H*Wp) f32
            out_ref[b] = _gelu(y2 + shortcut).astype(out_ref.dtype)

    return kernel


def gsimple_block_forward(x, params, *, images_per_block=1):
    """Fused GSimpleBlock forward.

    x: (N, Cin, H, W) float32 (NCHW, same as the PyTorch module).
    Returns (N, planes, H, W) float32.
    """
    N, Cin, H, W = x.shape
    w1, b1, g1, be1 = params["w1"], params["b1"], params["g1"], params["be1"]
    w2, b2, g2, be2 = params["w2"], params["b2"], params["g2"], params["be2"]
    wd = params["wd"]

    K = w1.shape[0]
    Cmid = w1.shape[3]
    Cout = w2.shape[3]
    assert Cmid == Cin, "conv1 of GSimpleBlock maps in_planes -> in_planes"
    p = K // 2
    Wp = W + 2 * p
    r0 = p + 1
    R = H + 2 * p + 2
    HWp = H * Wp

    B = images_per_block
    assert N % B == 0, (N, B)

    # ---- host-side, one-time parameter / layout plumbing (free) ----
    # Zero-pad the bf16 input ((p+1) rows top/bottom, p cols left/right) and
    # flatten rows so every conv tap is a single contiguous lane-band slice.
    xp = jnp.pad(x.astype(jnp.bfloat16),
                 ((0, 0), (0, 0), (r0, R - r0 - H), (p, p)))
    xp = xp.reshape(N, Cin, R * Wp)
    # Per-tap conv weights transposed to (Cout, Cin) and packed into one array.
    w1t = jnp.transpose(w1, (0, 1, 3, 2)).reshape(K * K, Cmid, Cin)
    w1t = w1t.astype(jnp.bfloat16)
    w2t = jnp.transpose(w2, (0, 1, 3, 2)).reshape(K * K, Cout, Cmid)
    w2t = w2t.astype(jnp.bfloat16)
    wdt = wd.T.astype(jnp.bfloat16)
    # bias / gamma / beta packed as per-channel columns.
    p1 = jnp.stack([b1, g1, be1], axis=1)             # (Cmid, 3) f32
    p2 = jnp.stack([b2, g2, be2], axis=1)             # (Cout, 3) f32
    # Interior-column mask over the band (zeros at the p-wide pad gaps).
    col = np.arange(HWp) % Wp
    mask = jnp.asarray(((col >= p) & (col < p + W)).astype(np.float32))
    mask = mask.reshape(1, HWp)

    kernel = _make_fused_kernel(H, W, Cin, Cmid, Cout, K, B)

    out_band = pl.pallas_call(
        kernel,
        out_shape=jax.ShapeDtypeStruct((N, Cout, HWp), jnp.float32),
        grid=(N // B,),
        in_specs=[
            pl.BlockSpec((B, Cin, R * Wp), lambda n: (n, 0, 0)),
            pl.BlockSpec(w1t.shape, lambda n: (0, 0, 0)),
            pl.BlockSpec(p1.shape, lambda n: (0, 0)),
            pl.BlockSpec(w2t.shape, lambda n: (0, 0, 0)),
            pl.BlockSpec(p2.shape, lambda n: (0, 0)),
            pl.BlockSpec(wdt.shape, lambda n: (0, 0)),
            pl.BlockSpec(mask.shape, lambda n: (0, 0)),
        ],
        out_specs=pl.BlockSpec((B, Cout, HWp), lambda n: (n, 0, 0)),
        scratch_shapes=[pltpu.VMEM((Cmid, R * Wp), jnp.bfloat16)],
        compiler_params=pltpu.CompilerParams(
            dimension_semantics=("parallel",),
            # Buffers here are << default VMEM limits; re-derive for
            # production H/W/C (keep <= ~48 MiB on v7x).
        ),
    )(xp, w1t, p1, w2t, p2, wdt, mask)

    # Strip the horizontal pad columns: (N, Cout, H*Wp) -> (N, Cout, H, W).
    return out_band.reshape(N, Cout, H, Wp)[:, :, :, p:p + W]


def ref_forward(x, params):
    """Pure-JAX f32 reference (NCHW) mirroring the PyTorch forward."""
    w1, b1, g1, be1 = params["w1"], params["b1"], params["g1"], params["be1"]
    w2, b2, g2, be2 = params["w2"], params["b2"], params["g2"], params["be2"]
    wd = params["wd"]

    def conv(z, w, b=None):
        y = jax.lax.conv_general_dilated(
            z, w, window_strides=(1, 1), padding="SAME",
            dimension_numbers=("NCHW", "HWIO", "NCHW"))
        return y if b is None else y + b[None, :, None, None]

    def ln(z, g, b):
        mu = z.mean(1, keepdims=True)
        var = ((z - mu) ** 2).mean(1, keepdims=True)
        zn = (z - mu) * jax.lax.rsqrt(var + LN_EPS)
        return zn * g[None, :, None, None] + b[None, :, None, None]

    shortcut = conv(x, wd[None, None, :, :])          # 1x1 conv, no bias
    y = _gelu(ln(conv(x, w1, b1), g1, be1))
    y = _gelu(ln(conv(y, w2, b2), g2, be2))
    return _gelu(y + shortcut)


if __name__ == "__main__":
    key = jax.random.PRNGKey(0)
    keys = jax.random.split(key, 10)

    # Shapes consistent with GSimpleBlock(in_planes=4, planes=8, k=3, stride=1).
    N, H, W = 2, 16, 16
    in_planes, planes, K = 4, 8, 3

    # NCHW input, same layout as the PyTorch module.
    x = jax.random.normal(keys[0], (N, in_planes, H, W), jnp.float32)

    # Deterministic synthetic parameters (GConv2d's INR-generated weights are
    # replaced by static conv weights of the same effective conv shapes).
    params = dict(
        w1=0.2 * jax.random.normal(keys[1], (K, K, in_planes, in_planes), jnp.float32),
        b1=0.1 * jax.random.normal(keys[2], (in_planes,), jnp.float32),
        g1=1.0 + 0.1 * jax.random.normal(keys[3], (in_planes,), jnp.float32),
        be1=0.1 * jax.random.normal(keys[4], (in_planes,), jnp.float32),
        w2=0.2 * jax.random.normal(keys[5], (K, K, in_planes, planes), jnp.float32),
        b2=0.1 * jax.random.normal(keys[6], (planes,), jnp.float32),
        g2=1.0 + 0.1 * jax.random.normal(keys[7], (planes,), jnp.float32),
        be2=0.1 * jax.random.normal(keys[8], (planes,), jnp.float32),
        wd=0.2 * jax.random.normal(keys[9], (in_planes, planes), jnp.float32),
    )

    out = jax.jit(gsimple_block_forward)(x, params)
    out = jax.block_until_ready(out)

    ref = ref_forward(x, params)
    assert out.shape == (N, planes, H, W), out.shape
    max_err = float(jnp.max(jnp.abs(out - ref)))
    # conv / downsample matmul operands are bf16 on the MXU (f32 accumulation),
    # so parity vs. the f32 reference is checked at a loosened tolerance.
    assert jnp.allclose(out, ref, atol=5e-2, rtol=5e-2), f"max abs err {max_err}"

    print("KERNEL_OK")
</pallas_src>

<mosaic_0001>
module attributes {stable_mosaic.version = 11 : i64} {
  func.func @kernel(%arg0: i32, %arg1: memref<1x4x360xbf16, #tpu.memory_space<vmem>>, %arg2: memref<9x4x4xbf16, #tpu.memory_space<vmem>>, %arg3: memref<4x3xf32, #tpu.memory_space<vmem>>, %arg4: memref<9x8x4xbf16, #tpu.memory_space<vmem>>, %arg5: memref<8x3xf32, #tpu.memory_space<vmem>>, %arg6: memref<8x4xbf16, #tpu.memory_space<vmem>>, %arg7: memref<1x288xf32, #tpu.memory_space<vmem>>, %arg8: memref<1x8x288xf32, #tpu.memory_space<vmem>>, %arg9: memref<4x360xbf16, #tpu.memory_space<vmem>>) attributes {dimension_semantics = [#tpu.dimension_semantics<parallel>], iteration_bounds = array<i64: 2>, scalar_prefetch = 0 : i64, scratch_operands = 1 : i64, tpu.core_type = #tpu.core_type<tc>, window_params = [{transform_indices = @transform_0, window_bounds = array<i64: 1, 4, 360>}, {pipeline_mode = #tpu.pipeline_mode<synchronous>, transform_indices = @transform_1, window_bounds = array<i64: 9, 4, 4>}, {pipeline_mode = #tpu.pipeline_mode<synchronous>, transform_indices = @transform_2, window_bounds = array<i64: 4, 3>}, {pipeline_mode = #tpu.pipeline_mode<synchronous>, transform_indices = @transform_3, window_bounds = array<i64: 9, 8, 4>}, {pipeline_mode = #tpu.pipeline_mode<synchronous>, transform_indices = @transform_4, window_bounds = array<i64: 8, 3>}, {pipeline_mode = #tpu.pipeline_mode<synchronous>, transform_indices = @transform_5, window_bounds = array<i64: 8, 4>}, {pipeline_mode = #tpu.pipeline_mode<synchronous>, transform_indices = @transform_6, window_bounds = array<i64: 1, 288>}, {transform_indices = @transform_7, window_bounds = array<i64: 1, 8, 288>}]} {
    %cst = arith.constant 0.000000e+00 : bf16
    %0 = vector.broadcast %cst : bf16 to vector<4x36xbf16>
    %c0 = arith.constant 0 : index
    %c0_0 = arith.constant 0 : index
    %1 = vector.load %arg9[%c0, %c0_0] : memref<4x360xbf16, #tpu.memory_space<vmem>>, vector<4x36xbf16>
    tpu.vector_store %arg9[%c0, %c0_0], %0 {strides = array<i32>} : memref<4x360xbf16, #tpu.memory_space<vmem>>, vector<4x36xbf16>,
    %cst_1 = arith.constant 0.000000e+00 : bf16
    %2 = vector.broadcast %cst_1 : bf16 to vector<4x36xbf16>
    %c0_2 = arith.constant 0 : index
    %c324 = arith.constant 324 : index
    %3 = vector.load %arg9[%c0_2, %c324] : memref<4x360xbf16, #tpu.memory_space<vmem>>, vector<4x36xbf16>
    tpu.vector_store %arg9[%c0_2, %c324], %2 {strides = array<i32>} : memref<4x360xbf16, #tpu.memory_space<vmem>>, vector<4x36xbf16>,
    %c0_3 = arith.constant 0 : index
    %c0_4 = arith.constant 0 : index
    %4 = vector.load %arg7[%c0_3, %c0_4] : memref<1x288xf32, #tpu.memory_space<vmem>>, vector<1x288xf32>
    %cst_5 = arith.constant 0.000000e+00 : f32
    %5 = vector.broadcast %cst_5 : f32 to vector<4x288xf32>
    %c0_6 = arith.constant 0 : index
    %c0_7 = arith.constant 0 : index
    %c0_8 = arith.constant 0 : index
    %6 = vector.load %arg2[%c0_6, %c0_7, %c0_8] : memref<9x4x4xbf16, #tpu.memory_space<vmem>>, vector<1x4x4xbf16>
    %7 = vector.shape_cast %6 : vector<1x4x4xbf16> to vector<4x4xbf16>
    %c0_9 = arith.constant 0 : index
    %c0_10 = arith.constant 0 : index
    %c17 = arith.constant 17 : index
    %8 = vector.load %arg1[%c0_9, %c0_10, %c17] : memref<1x4x360xbf16, #tpu.memory_space<vmem>>, vector<1x4x288xbf16>
    %9 = vector.shape_cast %8 : vector<1x4x288xbf16> to vector<4x288xbf16>
    %cst_11 = arith.constant dense<0.000000e+00> : vector<4x288xf32>
    %10 = tpu.matmul %7, %9, %cst_11 {dimension_numbers = #tpu.dot_dimension_numbers<[1], [0], [0], [1], [0, 0, 1, 1], [], []>} : vector<4x4xbf16>, vector<4x288xbf16>, vector<4x288xf32> -> vector<4x288xf32>
    %11 = arith.addf %5, %10 : vector<4x288xf32>
    %c1 = arith.constant 1 : index
    %c0_12 = arith.constant 0 : index
    %c0_13 = arith.constant 0 : index
    %12 = vector.load %arg2[%c1, %c0_12, %c0_13] : memref<9x4x4xbf16, #tpu.memory_space<vmem>>, vector<1x4x4xbf16>
    %13 = vector.shape_cast %12 : vector<1x4x4xbf16> to vector<4x4xbf16>
    %c0_14 = arith.constant 0 : index
    %c0_15 = arith.constant 0 : index
    %c18 = arith.constant 18 : index
    %14 = vector.load %arg1[%c0_14, %c0_15, %c18] : memref<1x4x360xbf16, #tpu.memory_space<vmem>>, vector<1x4x288xbf16>
    %15 = vector.shape_cast %14 : vector<1x4x288xbf16> to vector<4x288xbf16>
    %cst_16 = arith.constant dense<0.000000e+00> : vector<4x288xf32>
    %16 = tpu.matmul %13, %15, %cst_16 {dimension_numbers = #tpu.dot_dimension_numbers<[1], [0], [0], [1], [0, 0, 1, 1], [], []>} : vector<4x4xbf16>, vector<4x288xbf16>, vector<4x288xf32> -> vector<4x288xf32>
    %17 = arith.addf %11, %16 : vector<4x288xf32>
    %c2 = arith.constant 2 : index
    %c0_17 = arith.constant 0 : index
    %c0_18 = arith.constant 0 : index
    %18 = vector.load %arg2[%c2, %c0_17, %c0_18] : memref<9x4x4xbf16, #tpu.memory_space<vmem>>, vector<1x4x4xbf16>
    %19 = vector.shape_cast %18 : vector<1x4x4xbf16> to vector<4x4xbf16>
    %c0_19 = arith.constant 0 : index
    %c0_20 = arith.constant 0 : index
    %c19 = arith.constant 19 : index
    %20 = vector.load %arg1[%c0_19, %c0_20, %c19] : memref<1x4x360xbf16, #tpu.memory_space<vmem>>, vector<1x4x288xbf16>
    %21 = vector.shape_cast %20 : vector<1x4x288xbf16> to vector<4x288xbf16>
    %cst_21 = arith.constant dense<0.000000e+00> : vector<4x288xf32>
    %22 = tpu.matmul %19, %21, %cst_21 {dimension_numbers = #tpu.dot_dimension_numbers<[1], [0], [0], [1], [0, 0, 1, 1], [], []>} : vector<4x4xbf16>, vector<4x288xbf16>, vector<4x288xf32> -> vector<4x288xf32>
    %23 = arith.addf %17, %22 : vector<4x288xf32>
    %c3 = arith.constant 3 : index
    %c0_22 = arith.constant 0 : index
    %c0_23 = arith.constant 0 : index
    %24 = vector.load %arg2[%c3, %c0_22, %c0_23] : memref<9x4x4xbf16, #tpu.memory_space<vmem>>, vector<1x4x4xbf16>
    %25 = vector.shape_cast %24 : vector<1x4x4xbf16> to vector<4x4xbf16>
    %c0_24 = arith.constant 0 : index
    %c0_25 = arith.constant 0 : index
    %c35 = arith.constant 35 : index
    %26 = vector.load %arg1[%c0_24, %c0_25, %c35] : memref<1x4x360xbf16, #tpu.memory_space<vmem>>, vector<1x4x288xbf16>
    %27 = vector.shape_cast %26 : vector<1x4x288xbf16> to vector<4x288xbf16>
    %cst_26 = arith.constant dense<0.000000e+00> : vector<4x288xf32>
    %28 = tpu.matmul %25, %27, %cst_26 {dimension_numbers = #tpu.dot_dimension_numbers<[1], [0], [0], [1], [0, 0, 1, 1], [], []>} : vector<4x4xbf16>, vector<4x288xbf16>, vector<4x288xf32> -> vector<4x288xf32>
    %29 = arith.addf %23, %28 : vector<4x288xf32>
    %c4 = arith.constant 4 : index
    %c0_27 = arith.constant 0 : index
    %c0_28 = arith.constant 0 : index
    %30 = vector.load %arg2[%c4, %c0_27, %c0_28] : memref<9x4x4xbf16, #tpu.memory_space<vmem>>, vector<1x4x4xbf16>
    %31 = vector.shape_cast %30 : vector<1x4x4xbf16> to vector<4x4xbf16>
    %c0_29 = arith.constant 0 : index
    %c0_30 = arith.constant 0 : index
    %c36 = arith.constant 36 : index
    %32 = vector.load %arg1[%c0_29, %c0_30, %c36] : memref<1x4x360xbf16, #tpu.memory_space<vmem>>, vector<1x4x288xbf16>
    %33 = vector.shape_cast %32 : vector<1x4x288xbf16> to vector<4x288xbf16>
    %cst_31 = arith.constant dense<0.000000e+00> : vector<4x288xf32>
    %34 = tpu.matmul %31, %33, %cst_31 {dimension_numbers = #tpu.dot_dimension_numbers<[1], [0], [0], [1], [0, 0, 1, 1], [], []>} : vector<4x4xbf16>, vector<4x288xbf16>, vector<4x288xf32> -> vector<4x288xf32>
    %35 = arith.addf %29, %34 : vector<4x288xf32>
    %c5 = arith.constant 5 : index
    %c0_32 = arith.constant 0 : index
    %c0_33 = arith.constant 0 : index
    %36 = vector.load %arg2[%c5, %c0_32, %c0_33] : memref<9x4x4xbf16, #tpu.memory_space<vmem>>, vector<1x4x4xbf16>
    %37 = vector.shape_cast %36 : vector<1x4x4xbf16> to vector<4x4xbf16>
    %c0_34 = arith.constant 0 : index
    %c0_35 = arith.constant 0 : index
    %c37 = arith.constant 37 : index
    %38 = vector.load %arg1[%c0_34, %c0_35, %c37] : memref<1x4x360xbf16, #tpu.memory_space<vmem>>, vector<1x4x288xbf16>
    %39 = vector.shape_cast %38 : vector<1x4x288xbf16> to vector<4x288xbf16>
    %cst_36 = arith.constant dense<0.000000e+00> : vector<4x288xf32>
    %40 = tpu.matmul %37, %39, %cst_36 {dimension_numbers = #tpu.dot_dimension_numbers<[1], [0], [0], [1], [0, 0, 1, 1], [], []>} : vector<4x4xbf16>, vector<4x288xbf16>, vector<4x288xf32> -> vector<4x288xf32>
    %41 = arith.addf %35, %40 : vector<4x288xf32>
    %c6 = arith.constant 6 : index
    %c0_37 = arith.constant 0 : index
    %c0_38 = arith.constant 0 : index
    %42 = vector.load %arg2[%c6, %c0_37, %c0_38] : memref<9x4x4xbf16, #tpu.memory_space<vmem>>, vector<1x4x4xbf16>
    %43 = vector.shape_cast %42 : vector<1x4x4xbf16> to vector<4x4xbf16>
    %c0_39 = arith.constant 0 : index
    %c0_40 = arith.constant 0 : index
    %c53 = arith.constant 53 : index
    %44 = vector.load %arg1[%c0_39, %c0_40, %c53] : memref<1x4x360xbf16, #tpu.memory_space<vmem>>, vector<1x4x288xbf16>
    %45 = vector.shape_cast %44 : vector<1x4x288xbf16> to vector<4x288xbf16>
    %cst_41 = arith.constant dense<0.000000e+00> : vector<4x288xf32>
    %46 = tpu.matmul %43, %45, %cst_41 {dimension_numbers = #tpu.dot_dimension_numbers<[1], [0], [0], [1], [0, 0, 1, 1], [], []>} : vector<4x4xbf16>, vector<4x288xbf16>, vector<4x288xf32> -> vector<4x288xf32>
    %47 = arith.addf %41, %46 : vector<4x288xf32>
    %c7 = arith.constant 7 : index
    %c0_42 = arith.constant 0 : index
    %c0_43 = arith.constant 0 : index
    %48 = vector.load %arg2[%c7, %c0_42, %c0_43] : memref<9x4x4xbf16, #tpu.memory_space<vmem>>, vector<1x4x4xbf16>
    %49 = vector.shape_cast %48 : vector<1x4x4xbf16> to vector<4x4xbf16>
    %c0_44 = arith.constant 0 : index
    %c0_45 = arith.constant 0 : index
    %c54 = arith.constant 54 : index
    %50 = vector.load %arg1[%c0_44, %c0_45, %c54] : memref<1x4x360xbf16, #tpu.memory_space<vmem>>, vector<1x4x288xbf16>
    %51 = vector.shape_cast %50 : vector<1x4x288xbf16> to vector<4x288xbf16>
    %cst_46 = arith.constant dense<0.000000e+00> : vector<4x288xf32>
    %52 = tpu.matmul %49, %51, %cst_46 {dimension_numbers = #tpu.dot_dimension_numbers<[1], [0], [0], [1], [0, 0, 1, 1], [], []>} : vector<4x4xbf16>, vector<4x288xbf16>, vector<4x288xf32> -> vector<4x288xf32>
    %53 = arith.addf %47, %52 : vector<4x288xf32>
    %c8 = arith.constant 8 : index
    %c0_47 = arith.constant 0 : index
    %c0_48 = arith.constant 0 : index
    %54 = vector.load %arg2[%c8, %c0_47, %c0_48] : memref<9x4x4xbf16, #tpu.memory_space<vmem>>, vector<1x4x4xbf16>
    %55 = vector.shape_cast %54 : vector<1x4x4xbf16> to vector<4x4xbf16>
    %c0_49 = arith.constant 0 : index
    %c0_50 = arith.constant 0 : index
    %c55 = arith.constant 55 : index
    %56 = vector.load %arg1[%c0_49, %c0_50, %c55] : memref<1x4x360xbf16, #tpu.memory_space<vmem>>, vector<1x4x288xbf16>
    %57 = vector.shape_cast %56 : vector<1x4x288xbf16> to vector<4x288xbf16>
    %cst_51 = arith.constant dense<0.000000e+00> : vector<4x288xf32>
    %58 = tpu.matmul %55, %57, %cst_51 {dimension_numbers = #tpu.dot_dimension_numbers<[1], [0], [0], [1], [0, 0, 1, 1], [], []>} : vector<4x4xbf16>, vector<4x288xbf16>, vector<4x288xf32> -> vector<4x288xf32>
    %59 = arith.addf %53, %58 : vector<4x288xf32>
    %c0_52 = arith.constant 0 : index
    %c0_53 = arith.constant 0 : index
    %60 = vector.load %arg3[%c0_52, %c0_53] : memref<4x3xf32, #tpu.memory_space<vmem>>, vector<4x1xf32>
    %61 = vector.broadcast %60 : vector<4x1xf32> to vector<4x288xf32>
    %62 = arith.addf %59, %61 : vector<4x288xf32>
    %cst_54 = arith.constant dense<0.000000e+00> : vector<288xf32>
    %63 = vector.multi_reduction <add>, %62, %cst_54 [0] : vector<4x288xf32> to vector<288xf32>
    %64 = vector.shape_cast %63 : vector<288xf32> to vector<1x288xf32>
    %cst_55 = arith.constant 4.000000e+00 : f32
    %65 = vector.broadcast %cst_55 : f32 to vector<1x288xf32>
    %66 = arith.divf %64, %65 : vector<1x288xf32>
    %67 = vector.broadcast %66 : vector<1x288xf32> to vector<4x288xf32>
    %68 = arith.subf %62, %67 : vector<4x288xf32>
    %69 = arith.mulf %68, %68 : vector<4x288xf32>
    %cst_56 = arith.constant dense<0.000000e+00> : vector<288xf32>
    %70 = vector.multi_reduction <add>, %69, %cst_56 [0] : vector<4x288xf32> to vector<288xf32>
    %71 = vector.shape_cast %70 : vector<288xf32> to vector<1x288xf32>
    %cst_57 = arith.constant 4.000000e+00 : f32
    %72 = vector.broadcast %cst_57 : f32 to vector<1x288xf32>
    %73 = arith.divf %71, %72 : vector<1x288xf32>
    %74 = vector.broadcast %66 : vector<1x288xf32> to vector<4x288xf32>
    %75 = arith.subf %62, %74 : vector<4x288xf32>
    %cst_58 = arith.constant 9.99999974E-6 : f32
    %76 = vector.broadcast %cst_58 : f32 to vector<1x288xf32>
    %77 = arith.addf %73, %76 : vector<1x288xf32>
    %78 = math.rsqrt %77 : vector<1x288xf32>
    %79 = vector.broadcast %78 : vector<1x288xf32> to vector<4x288xf32>
    %80 = arith.mulf %75, %79 : vector<4x288xf32>
    %c0_59 = arith.constant 0 : index
    %c1_60 = arith.constant 1 : index
    %81 = vector.load %arg3[%c0_59, %c1_60] : memref<4x3xf32, #tpu.memory_space<vmem>>, vector<4x1xf32>
    %82 = vector.broadcast %81 : vector<4x1xf32> to vector<4x288xf32>
    %83 = arith.mulf %80, %82 : vector<4x288xf32>
    %c0_61 = arith.constant 0 : index
    %c2_62 = arith.constant 2 : index
    %84 = vector.load %arg3[%c0_61, %c2_62] : memref<4x3xf32, #tpu.memory_space<vmem>>, vector<4x1xf32>
    %85 = vector.broadcast %84 : vector<4x1xf32> to vector<4x288xf32>
    %86 = arith.addf %83, %85 : vector<4x288xf32>
    %cst_63 = arith.constant 5.000000e-01 : f32
    %87 = vector.broadcast %cst_63 : f32 to vector<4x288xf32>
    %88 = arith.mulf %87, %86 : vector<4x288xf32>
    %cst_64 = arith.constant 4.471500e-02 : f32
    %89 = vector.broadcast %cst_64 : f32 to vector<4x288xf32>
    %90 = arith.mulf %89, %86 : vector<4x288xf32>
    %91 = arith.mulf %90, %86 : vector<4x288xf32>
    %92 = arith.mulf %91, %86 : vector<4x288xf32>
    %93 = arith.addf %86, %92 : vector<4x288xf32>
    %cst_65 = arith.constant 0.797884583 : f32
    %94 = vector.broadcast %cst_65 : f32 to vector<4x288xf32>
    %95 = arith.mulf %94, %93 : vector<4x288xf32>
    %96 = math.tanh %95 : vector<4x288xf32>
    %cst_66 = arith.constant 1.000000e+00 : f32
    %97 = vector.broadcast %cst_66 : f32 to vector<4x288xf32>
    %98 = arith.addf %97, %96 : vector<4x288xf32>
    %99 = arith.mulf %88, %98 : vector<4x288xf32>
    %100 = vector.broadcast %4 : vector<1x288xf32> to vector<4x288xf32>
    %101 = arith.mulf %99, %100 : vector<4x288xf32>
    %102 = arith.truncf %101 : vector<4x288xf32> to vector<4x288xbf16>
    %c0_67 = arith.constant 0 : index
    %c36_68 = arith.constant 36 : index
    %103 = vector.load %arg9[%c0_67, %c36_68] : memref<4x360xbf16, #tpu.memory_space<vmem>>, vector<4x288xbf16>
    tpu.vector_store %arg9[%c0_67, %c36_68], %102 {strides = array<i32>} : memref<4x360xbf16, #tpu.memory_space<vmem>>, vector<4x288xbf16>,
    %cst_69 = arith.constant 0.000000e+00 : f32
    %104 = vector.broadcast %cst_69 : f32 to vector<8x288xf32>
    %c0_70 = arith.constant 0 : index
    %c0_71 = arith.constant 0 : index
    %c0_72 = arith.constant 0 : index
    %105 = vector.load %arg4[%c0_70, %c0_71, %c0_72] : memref<9x8x4xbf16, #tpu.memory_space<vmem>>, vector<1x8x4xbf16>
    %106 = vector.shape_cast %105 : vector<1x8x4xbf16> to vector<8x4xbf16>
    %c0_73 = arith.constant 0 : index
    %c17_74 = arith.constant 17 : index
    %107 = vector.load %arg9[%c0_73, %c17_74] : memref<4x360xbf16, #tpu.memory_space<vmem>>, vector<4x288xbf16>
    %cst_75 = arith.constant dense<0.000000e+00> : vector<8x288xf32>
    %108 = tpu.matmul %106, %107, %cst_75 {dimension_numbers = #tpu.dot_dimension_numbers<[1], [0], [0], [1], [0, 0, 1, 1], [], []>} : vector<8x4xbf16>, vector<4x288xbf16>, vector<8x288xf32> -> vector<8x288xf32>
    %109 = arith.addf %104, %108 : vector<8x288xf32>
    %c1_76 = arith.constant 1 : index
    %c0_77 = arith.constant 0 : index
    %c0_78 = arith.constant 0 : index
    %110 = vector.load %arg4[%c1_76, %c0_77, %c0_78] : memref<9x8x4xbf16, #tpu.memory_space<vmem>>, vector<1x8x4xbf16>
    %111 = vector.shape_cast %110 : vector<1x8x4xbf16> to vector<8x4xbf16>
    %c0_79 = arith.constant 0 : index
    %c18_80 = arith.constant 18 : index
    %112 = vector.load %arg9[%c0_79, %c18_80] : memref<4x360xbf16, #tpu.memory_space<vmem>>, vector<4x288xbf16>
    %cst_81 = arith.constant dense<0.000000e+00> : vector<8x288xf32>
    %113 = tpu.matmul %111, %112, %cst_81 {dimension_numbers = #tpu.dot_dimension_numbers<[1], [0], [0], [1], [0, 0, 1, 1], [], []>} : vector<8x4xbf16>, vector<4x288xbf16>, vector<8x288xf32> -> vector<8x288xf32>
    %114 = arith.addf %109, %113 : vector<8x288xf32>
    %c2_82 = arith.constant 2 : index
    %c0_83 = arith.constant 0 : index
    %c0_84 = arith.constant 0 : index
    %115 = vector.load %arg4[%c2_82, %c0_83, %c0_84] : memref<9x8x4xbf16, #tpu.memory_space<vmem>>, vector<1x8x4xbf16>
    %116 = vector.shape_cast %115 : vector<1x8x4xbf16> to vector<8x4xbf16>
    %c0_85 = arith.constant 0 : index
    %c19_86 = arith.constant 19 : index
    %117 = vector.load %arg9[%c0_85, %c19_86] : memref<4x360xbf16, #tpu.memory_space<vmem>>, vector<4x288xbf16>
    %cst_87 = arith.constant dense<0.000000e+00> : vector<8x288xf32>
    %118 = tpu.matmul %116, %117, %cst_87 {dimension_numbers = #tpu.dot_dimension_numbers<[1], [0], [0], [1], [0, 0, 1, 1], [], []>} : vector<8x4xbf16>, vector<4x288xbf16>, vector<8x288xf32> -> vector<8x288xf32>
    %119 = arith.addf %114, %118 : vector<8x288xf32>
    %c3_88 = arith.constant 3 : index
    %c0_89 = arith.constant 0 : index
    %c0_90 = arith.constant 0 : index
    %120 = vector.load %arg4[%c3_88, %c0_89, %c0_90] : memref<9x8x4xbf16, #tpu.memory_space<vmem>>, vector<1x8x4xbf16>
    %121 = vector.shape_cast %120 : vector<1x8x4xbf16> to vector<8x4xbf16>
    %c0_91 = arith.constant 0 : index
    %c35_92 = arith.constant 35 : index
    %122 = vector.load %arg9[%c0_91, %c35_92] : memref<4x360xbf16, #tpu.memory_space<vmem>>, vector<4x288xbf16>
    %cst_93 = arith.constant dense<0.000000e+00> : vector<8x288xf32>
    %123 = tpu.matmul %121, %122, %cst_93 {dimension_numbers = #tpu.dot_dimension_numbers<[1], [0], [0], [1], [0, 0, 1, 1], [], []>} : vector<8x4xbf16>, vector<4x288xbf16>, vector<8x288xf32> -> vector<8x288xf32>
    %124 = arith.addf %119, %123 : vector<8x288xf32>
    %c4_94 = arith.constant 4 : index
    %c0_95 = arith.constant 0 : index
    %c0_96 = arith.constant 0 : index
    %125 = vector.load %arg4[%c4_94, %c0_95, %c0_96] : memref<9x8x4xbf16, #tpu.memory_space<vmem>>, vector<1x8x4xbf16>
    %126 = vector.shape_cast %125 : vector<1x8x4xbf16> to vector<8x4xbf16>
    %c0_97 = arith.constant 0 : index
    %c36_98 = arith.constant 36 : index
    %127 = vector.load %arg9[%c0_97, %c36_98] : memref<4x360xbf16, #tpu.memory_space<vmem>>, vector<4x288xbf16>
    %cst_99 = arith.constant dense<0.000000e+00> : vector<8x288xf32>
    %128 = tpu.matmul %126, %127, %cst_99 {dimension_numbers = #tpu.dot_dimension_numbers<[1], [0], [0], [1], [0, 0, 1, 1], [], []>} : vector<8x4xbf16>, vector<4x288xbf16>, vector<8x288xf32> -> vector<8x288xf32>
    %129 = arith.addf %124, %128 : vector<8x288xf32>
    %c5_100 = arith.constant 5 : index
    %c0_101 = arith.constant 0 : index
    %c0_102 = arith.constant 0 : index
    %130 = vector.load %arg4[%c5_100, %c0_101, %c0_102] : memref<9x8x4xbf16, #tpu.memory_space<vmem>>, vector<1x8x4xbf16>
    %131 = vector.shape_cast %130 : vector<1x8x4xbf16> to vector<8x4xbf16>
    %c0_103 = arith.constant 0 : index
    %c37_104 = arith.constant 37 : index
    %132 = vector.load %arg9[%c0_103, %c37_104] : memref<4x360xbf16, #tpu.memory_space<vmem>>, vector<4x288xbf16>
    %cst_105 = arith.constant dense<0.000000e+00> : vector<8x288xf32>
    %133 = tpu.matmul %131, %132, %cst_105 {dimension_numbers = #tpu.dot_dimension_numbers<[1], [0], [0], [1], [0, 0, 1, 1], [], []>} : vector<8x4xbf16>, vector<4x288xbf16>, vector<8x288xf32> -> vector<8x288xf32>
    %134 = arith.addf %129, %133 : vector<8x288xf32>
    %c6_106 = arith.constant 6 : index
    %c0_107 = arith.constant 0 : index
    %c0_108 = arith.constant 0 : index
    %135 = vector.load %arg4[%c6_106, %c0_107, %c0_108] : memref<9x8x4xbf16, #tpu.memory_space<vmem>>, vector<1x8x4xbf16>
    %136 = vector.shape_cast %135 : vector<1x8x4xbf16> to vector<8x4xbf16>
    %c0_109 = arith.constant 0 : index
    %c53_110 = arith.constant 53 : index
    %137 = vector.load %arg9[%c0_109, %c53_110] : memref<4x360xbf16, #tpu.memory_space<vmem>>, vector<4x288xbf16>
    %cst_111 = arith.constant dense<0.000000e+00> : vector<8x288xf32>
    %138 = tpu.matmul %136, %137, %cst_111 {dimension_numbers = #tpu.dot_dimension_numbers<[1], [0], [0], [1], [0, 0, 1, 1], [], []>} : vector<8x4xbf16>, vector<4x288xbf16>, vector<8x288xf32> -> vector<8x288xf32>
    %139 = arith.addf %134, %138 : vector<8x288xf32>
    %c7_112 = arith.constant 7 : index
    %c0_113 = arith.constant 0 : index
    %c0_114 = arith.constant 0 : index
    %140 = vector.load %arg4[%c7_112, %c0_113, %c0_114] : memref<9x8x4xbf16, #tpu.memory_space<vmem>>, vector<1x8x4xbf16>
    %141 = vector.shape_cast %140 : vector<1x8x4xbf16> to vector<8x4xbf16>
    %c0_115 = arith.constant 0 : index
    %c54_116 = arith.constant 54 : index
    %142 = vector.load %arg9[%c0_115, %c54_116] : memref<4x360xbf16, #tpu.memory_space<vmem>>, vector<4x288xbf16>
    %cst_117 = arith.constant dense<0.000000e+00> : vector<8x288xf32>
    %143 = tpu.matmul %141, %142, %cst_117 {dimension_numbers = #tpu.dot_dimension_numbers<[1], [0], [0], [1], [0, 0, 1, 1], [], []>} : vector<8x4xbf16>, vector<4x288xbf16>, vector<8x288xf32> -> vector<8x288xf32>
    %144 = arith.addf %139, %143 : vector<8x288xf32>
    %c8_118 = arith.constant 8 : index
    %c0_119 = arith.constant 0 : index
    %c0_120 = arith.constant 0 : index
    %145 = vector.load %arg4[%c8_118, %c0_119, %c0_120] : memref<9x8x4xbf16, #tpu.memory_space<vmem>>, vector<1x8x4xbf16>
    %146 = vector.shape_cast %145 : vector<1x8x4xbf16> to vector<8x4xbf16>
    %c0_121 = arith.constant 0 : index
    %c55_122 = arith.constant 55 : index
    %147 = vector.load %arg9[%c0_121, %c55_122] : memref<4x360xbf16, #tpu.memory_space<vmem>>, vector<4x288xbf16>
    %cst_123 = arith.constant dense<0.000000e+00> : vector<8x288xf32>
    %148 = tpu.matmul %146, %147, %cst_123 {dimension_numbers = #tpu.dot_dimension_numbers<[1], [0], [0], [1], [0, 0, 1, 1], [], []>} : vector<8x4xbf16>, vector<4x288xbf16>, vector<8x288xf32> -> vector<8x288xf32>
    %149 = arith.addf %144, %148 : vector<8x288xf32>
    %c0_124 = arith.constant 0 : index
    %c0_125 = arith.constant 0 : index
    %150 = vector.load %arg5[%c0_124, %c0_125] : memref<8x3xf32, #tpu.memory_space<vmem>>, vector<8x1xf32>
    %151 = vector.broadcast %150 : vector<8x1xf32> to vector<8x288xf32>
    %152 = arith.addf %149, %151 : vector<8x288xf32>
    %cst_126 = arith.constant dense<0.000000e+00> : vector<288xf32>
    %153 = vector.multi_reduction <add>, %152, %cst_126 [0] : vector<8x288xf32> to vector<288xf32>
    %154 = vector.shape_cast %153 : vector<288xf32> to vector<1x288xf32>
    %cst_127 = arith.constant 8.000000e+00 : f32
    %155 = vector.broadcast %cst_127 : f32 to vector<1x288xf32>
    %156 = arith.divf %154, %155 : vector<1x288xf32>
    %157 = vector.broadcast %156 : vector<1x288xf32> to vector<8x288xf32>
    %158 = arith.subf %152, %157 : vector<8x288xf32>
    %159 = arith.mulf %158, %158 : vector<8x288xf32>
    %cst_128 = arith.constant dense<0.000000e+00> : vector<288xf32>
    %160 = vector.multi_reduction <add>, %159, %cst_128 [0] : vector<8x288xf32> to vector<288xf32>
    %161 = vector.shape_cast %160 : vector<288xf32> to vector<1x288xf32>
    %cst_129 = arith.constant 8.000000e+00 : f32
    %162 = vector.broadcast %cst_129 : f32 to vector<1x288xf32>
    %163 = arith.divf %161, %162 : vector<1x288xf32>
    %164 = vector.broadcast %156 : vector<1x288xf32> to vector<8x288xf32>
    %165 = arith.subf %152, %164 : vector<8x288xf32>
    %cst_130 = arith.constant 9.99999974E-6 : f32
    %166 = vector.broadcast %cst_130 : f32 to vector<1x288xf32>
    %167 = arith.addf %163, %166 : vector<1x288xf32>
    %168 = math.rsqrt %167 : vector<1x288xf32>
    %169 = vector.broadcast %168 : vector<1x288xf32> to vector<8x288xf32>
    %170 = arith.mulf %165, %169 : vector<8x288xf32>
    %c0_131 = arith.constant 0 : index
    %c1_132 = arith.constant 1 : index
    %171 = vector.load %arg5[%c0_131, %c1_132] : memref<8x3xf32, #tpu.memory_space<vmem>>, vector<8x1xf32>
    %172 = vector.broadcast %171 : vector<8x1xf32> to vector<8x288xf32>
    %173 = arith.mulf %170, %172 : vector<8x288xf32>
    %c0_133 = arith.constant 0 : index
    %c2_134 = arith.constant 2 : index
    %174 = vector.load %arg5[%c0_133, %c2_134] : memref<8x3xf32, #tpu.memory_space<vmem>>, vector<8x1xf32>
    %175 = vector.broadcast %174 : vector<8x1xf32> to vector<8x288xf32>
    %176 = arith.addf %173, %175 : vector<8x288xf32>
    %cst_135 = arith.constant 5.000000e-01 : f32
    %177 = vector.broadcast %cst_135 : f32 to vector<8x288xf32>
    %178 = arith.mulf %177, %176 : vector<8x288xf32>
    %cst_136 = arith.constant 4.471500e-02 : f32
    %179 = vector.broadcast %cst_136 : f32 to vector<8x288xf32>
    %180 = arith.mulf %179, %176 : vector<8x288xf32>
    %181 = arith.mulf %180, %176 : vector<8x288xf32>
    %182 = arith.mulf %181, %176 : vector<8x288xf32>
    %183 = arith.addf %176, %182 : vector<8x288xf32>
    %cst_137 = arith.constant 0.797884583 : f32
    %184 = vector.broadcast %cst_137 : f32 to vector<8x288xf32>
    %185 = arith.mulf %184, %183 : vector<8x288xf32>
    %186 = math.tanh %185 : vector<8x288xf32>
    %cst_138 = arith.constant 1.000000e+00 : f32
    %187 = vector.broadcast %cst_138 : f32 to vector<8x288xf32>
    %188 = arith.addf %187, %186 : vector<8x288xf32>
    %189 = arith.mulf %178, %188 : vector<8x288xf32>
    %c0_139 = arith.constant 0 : index
    %c0_140 = arith.constant 0 : index
    %190 = vector.load %arg6[%c0_139, %c0_140] : memref<8x4xbf16, #tpu.memory_space<vmem>>, vector<8x4xbf16>
    %c0_141 = arith.constant 0 : index
    %c0_142 = arith.constant 0 : index
    %c36_143 = arith.constant 36 : index
    %191 = vector.load %arg1[%c0_141, %c0_142, %c36_143] : memref<1x4x360xbf16, #tpu.memory_space<vmem>>, vector<1x4x288xbf16>
    %192 = vector.shape_cast %191 : vector<1x4x288xbf16> to vector<4x288xbf16>
    %cst_144 = arith.constant dense<0.000000e+00> : vector<8x288xf32>
    %193 = tpu.matmul %190, %192, %cst_144 {dimension_numbers = #tpu.dot_dimension_numbers<[1], [0], [0], [1], [0, 0, 1, 1], [], []>} : vector<8x4xbf16>, vector<4x288xbf16>, vector<8x288xf32> -> vector<8x288xf32>
    %194 = arith.addf %189, %193 : vector<8x288xf32>
    %cst_145 = arith.constant 5.000000e-01 : f32
    %195 = vector.broadcast %cst_145 : f32 to vector<8x288xf32>
    %196 = arith.mulf %195, %194 : vector<8x288xf32>
    %cst_146 = arith.constant 4.471500e-02 : f32
    %197 = vector.broadcast %cst_146 : f32 to vector<8x288xf32>
    %198 = arith.mulf %197, %194 : vector<8x288xf32>
    %199 = arith.mulf %198, %194 : vector<8x288xf32>
    %200 = arith.mulf %199, %194 : vector<8x288xf32>
    %201 = arith.addf %194, %200 : vector<8x288xf32>
    %cst_147 = arith.constant 0.797884583 : f32
    %202 = vector.broadcast %cst_147 : f32 to vector<8x288xf32>
    %203 = arith.mulf %202, %201 : vector<8x288xf32>
    %204 = math.tanh %203 : vector<8x288xf32>
    %cst_148 = arith.constant 1.000000e+00 : f32
    %205 = vector.broadcast %cst_148 : f32 to vector<8x288xf32>
    %206 = arith.addf %205, %204 : vector<8x288xf32>
    %207 = arith.mulf %196, %206 : vector<8x288xf32>
    %c0_149 = arith.constant 0 : index
    %c0_150 = arith.constant 0 : index
    %c0_151 = arith.constant 0 : index
    %208 = vector.load %arg8[%c0_149, %c0_150, %c0_151] : memref<1x8x288xf32, #tpu.memory_space<vmem>>, vector<1x8x288xf32>
    %209 = vector.shape_cast %208 : vector<1x8x288xf32> to vector<8x288xf32>
    %210 = vector.shape_cast %207 : vector<8x288xf32> to vector<1x8x288xf32>
    tpu.vector_store %arg8[%c0_149, %c0_150, %c0_151], %210 {strides = array<i32>} : memref<1x8x288xf32, #tpu.memory_space<vmem>>, vector<1x8x288xf32>,
    return
  }
  func.func @transform_0(%arg0: i32) -> (i32, i32, i32) {
    %c0_i32 = arith.constant 0 : i32
    %c0_i32_0 = arith.constant 0 : i32
    %c0_i32_1 = arith.constant 0 : i32
    return %arg0, %c0_i32, %c0_i32_0 : i32, i32, i32
  }
  func.func @transform_1(%arg0: i32) -> (i32, i32, i32) {
    %c0_i32 = arith.constant 0 : i32
    %c0_i32_0 = arith.constant 0 : i32
    %c0_i32_1 = arith.constant 0 : i32
    %c0_i32_2 = arith.constant 0 : i32
    return %c0_i32, %c0_i32_0, %c0_i32_1 : i32, i32, i32
  }
  func.func @transform_2(%arg0: i32) -> (i32, i32) {
    %c0_i32 = arith.constant 0 : i32
    %c0_i32_0 = arith.constant 0 : i32
    %c0_i32_1 = arith.constant 0 : i32
    return %c0_i32, %c0_i32_0 : i32, i32
  }
  func.func @transform_3(%arg0: i32) -> (i32, i32, i32) {
    %c0_i32 = arith.constant 0 : i32
    %c0_i32_0 = arith.constant 0 : i32
    %c0_i32_1 = arith.constant 0 : i32
    %c0_i32_2 = arith.constant 0 : i32
    return %c0_i32, %c0_i32_0, %c0_i32_1 : i32, i32, i32
  }
  func.func @transform_4(%arg0: i32) -> (i32, i32) {
    %c0_i32 = arith.constant 0 : i32
    %c0_i32_0 = arith.constant 0 : i32
    %c0_i32_1 = arith.constant 0 : i32
    return %c0_i32, %c0_i32_0 : i32, i32
  }
  func.func @transform_5(%arg0: i32) -> (i32, i32) {
    %c0_i32 = arith.constant 0 : i32
    %c0_i32_0 = arith.constant 0 : i32
    %c0_i32_1 = arith.constant 0 : i32
    return %c0_i32, %c0_i32_0 : i32, i32
  }
  func.func @transform_6(%arg0: i32) -> (i32, i32) {
    %c0_i32 = arith.constant 0 : i32
    %c0_i32_0 = arith.constant 0 : i32
    %c0_i32_1 = arith.constant 0 : i32
    return %c0_i32, %c0_i32_0 : i32, i32
  }
  func.func @transform_7(%arg0: i32) -> (i32, i32, i32) {
    %c0_i32 = arith.constant 0 : i32
    %c0_i32_0 = arith.constant 0 : i32
    %c0_i32_1 = arith.constant 0 : i32
    return %arg0, %c0_i32, %c0_i32_0 : i32, i32, i32
  }
}

</mosaic_0001>

<llo_original>
// kernel: gsimple_block_forward.1
$region0: #{gsimple_block_forward.1}
  #allocation0 [shape = 'u32[]', space=smem, size = 0x4, offset = 0x4, fixed_abs, tag = 'smem constant byte address 0x4 - core index']
  #allocation1 [shape = 'u32[144,128]{1,0:T(1,128)}', space=vmem, size = 0x12000, scoped, tag = 'internal scratch']
  #allocation2 [shape = 'bf16[4,360]{1,0:T(4,128)(2,1)}', space=vmem, size = 0xc00, scoped, tag = 'scratch operand']
  %s0 = inlined_call_operand.vmem [shape: bf16[2,4,360], index: 0, kind: input, shape index: {}]
  %s1 = inlined_call_operand.vmem [shape: bf16[9,4,4], index: 1, kind: input, shape index: {}]
  %s2 = inlined_call_operand.vmem [shape: f32[4,3], index: 2, kind: input, shape index: {}]
  %s3 = inlined_call_operand.vmem [shape: bf16[9,8,4], index: 3, kind: input, shape index: {}]
  %s4 = inlined_call_operand.vmem [shape: f32[8,3], index: 4, kind: input, shape index: {}]
  %s5 = inlined_call_operand.vmem [shape: bf16[8,4], index: 5, kind: input, shape index: {}]
  %s6 = inlined_call_operand.vmem [shape: f32[1,288], index: 6, kind: input, shape index: {}]
  %s7 = inlined_call_operand.vmem [shape: f32[2,8,288], index: 7, kind: output, shape index: {}]
  %s8 = sld [smem:[#allocation0]]
  $region61: #{gsimple_block_forward.1} parent=0
    _
  %s10 = ssub.s32 1, %s8
  %s11 = scalar_select 0, %s10, %s8
  loop: start=0, step=1, limit=4
  $region2: #{gsimple_block_forward.1} parent=0 // loop_pre_header
    _
  $region3: #{gsimple_block_forward.1} parent=0 // loop_header
    %s13 = sphi 0, %s17
    %p14 = scmp.ge.s32.totalorder %s13, 4
    %s23 = sphi 0, %s25
    %s26 = sphi 0, %s23
    %s27 = sphi 0, %s26
    %s43 = sphi 0, %s27
    %s47 = sphi 0, %s47
    %s49 = sphi 0, %s47
    %s50 = sphi 0, %s49
    %s64 = sphi 0, %s50
    %s68 = sphi 0, %s68
    %s70 = sphi 0, %s68
    %s71 = sphi 0, %s70
    %s85 = sphi 0, %s71
    %s89 = sphi 0, %s89
    %s91 = sphi 0, %s89
    %s92 = sphi 0, %s91
    %s106 = sphi 0, %s92
    %s110 = sphi 0, %s110
    %s112 = sphi 0, %s110
    %s113 = sphi 0, %s112
    %s127 = sphi 0, %s113
    %s131 = sphi 0, %s131
    %s133 = sphi 0, %s131
    %s134 = sphi 0, %s133
    %s148 = sphi 0, %s134
    %s152 = sphi 0, %s152
    %s154 = sphi 0, %s152
    %s155 = sphi 0, %s154
    %s169 = sphi 0, %s155
    %s175 = sphi 0, %s177
    %s178 = sphi 0, %s175
    %s179 = sphi 0, %s178
    %s195 = sphi 0, %s179
  $region4: #{gsimple_block_forward.1} parent=0 // loop_header_branch
    %16 = sbr.rel (%p14) target = $region8
  $region5: #{gsimple_block_forward.1} parent=0 // loop_body
    %s18 = ssub.s32 %s13, 1
    %s19 = ssub.s32 %s13, 2
    %s20 = sadd.s32 %s13, 1
    %s21 = ssub.s32 %s13, %s20
    %p22 = scmp.eq.s32.totalorder %s21, 0
    %s24 = sadd.s32 %s23, 1
    %s25 = scalar_select %p22, %s23, %s24
    %p28 = pneg %p22
    %p29 = scmp.eq.s32.totalorder %s13, 1
    %p30 = por %p28, %p29
    %p31 = scmp.ne.s32.totalorder %s23, %s26
    %p32 = scmp.eq.s32.totalorder %s13, 0
    %p33 = por %p31, %p32
    %p34 = scmp.ne.s32.totalorder %s23, %s26
    %p35 = scmp.eq.s32.totalorder %s18, 1
    %p36 = por %p34, %p35
    %p37 = scmp.ne.s32.totalorder %s26, %s27
    %p38 = scmp.eq.s32.totalorder %s18, 0
    %p39 = por %p37, %p38
    %p40 = scmp.ne.s32.totalorder %s26, %s27
    %p41 = scmp.eq.s32.totalorder %s19, 1
    %p42 = por %p40, %p41
    %p44 = scmp.ne.s32.totalorder %s27, %s43
    %p45 = scmp.eq.s32.totalorder %s19, 0
    %p46 = por %p44, %p45
    %s48 = sadd.s32 %s47, 1
    %p51 = scmp.eq.s32.totalorder %s13, 1
    %p52 = scmp.ne.s32.totalorder %s47, %s49
    %p53 = scmp.eq.s32.totalorder %s13, 0
    %p54 = por %p52, %p53
    %p55 = scmp.ne.s32.totalorder %s47, %s49
    %p56 = scmp.eq.s32.totalorder %s18, 1
    %p57 = por %p55, %p56
    %p58 = scmp.ne.s32.totalorder %s49, %s50
    %p59 = scmp.eq.s32.totalorder %s18, 0
    %p60 = por %p58, %p59
    %p61 = scmp.ne.s32.totalorder %s49, %s50
    %p62 = scmp.eq.s32.totalorder %s19, 1
    %p63 = por %p61, %p62
    %p65 = scmp.ne.s32.totalorder %s50, %s64
    %p66 = scmp.eq.s32.totalorder %s19, 0
    %p67 = por %p65, %p66
    %s69 = sadd.s32 %s68, 1
    %p72 = scmp.eq.s32.totalorder %s13, 1
    %p73 = scmp.ne.s32.totalorder %s68, %s70
    %p74 = scmp.eq.s32.totalorder %s13, 0
    %p75 = por %p73, %p74
    %p76 = scmp.ne.s32.totalorder %s68, %s70
    %p77 = scmp.eq.s32.totalorder %s18, 1
    %p78 = por %p76, %p77
    %p79 = scmp.ne.s32.totalorder %s70, %s71
    %p80 = scmp.eq.s32.totalorder %s18, 0
    %p81 = por %p79, %p80
    %p82 = scmp.ne.s32.totalorder %s70, %s71
    %p83 = scmp.eq.s32.totalorder %s19, 1
    %p84 = por %p82, %p83
    %p86 = scmp.ne.s32.totalorder %s71, %s85
    %p87 = scmp.eq.s32.totalorder %s19, 0
    %p88 = por %p86, %p87
    %s90 = sadd.s32 %s89, 1
    %p93 = scmp.eq.s32.totalorder %s13, 1
    %p94 = scmp.ne.s32.totalorder %s89, %s91
    %p95 = scmp.eq.s32.totalorder %s13, 0
    %p96 = por %p94, %p95
    %p97 = scmp.ne.s32.totalorder %s89, %s91
    %p98 = scmp.eq.s32.totalorder %s18, 1
    %p99 = por %p97, %p98
    %p100 = scmp.ne.s32.totalorder %s91, %s92
    %p101 = scmp.eq.s32.totalorder %s18, 0
    %p102 = por %p100, %p101
    %p103 = scmp.ne.s32.totalorder %s91, %s92
    %p104 = scmp.eq.s32.totalorder %s19, 1
    %p105 = por %p103, %p104
    %p107 = scmp.ne.s32.totalorder %s92, %s106
    %p108 = scmp.eq.s32.totalorder %s19, 0
    %p109 = por %p107, %p108
    %s111 = sadd.s32 %s110, 1
    %p114 = scmp.eq.s32.totalorder %s13, 1
    %p115 = scmp.ne.s32.totalorder %s110, %s112
    %p116 = scmp.eq.s32.totalorder %s13, 0
    %p117 = por %p115, %p116
    %p118 = scmp.ne.s32.totalorder %s110, %s112
    %p119 = scmp.eq.s32.totalorder %s18, 1
    %p120 = por %p118, %p119
    %p121 = scmp.ne.s32.totalorder %s112, %s113
    %p122 = scmp.eq.s32.totalorder %s18, 0
    %p123 = por %p121, %p122
    %p124 = scmp.ne.s32.totalorder %s112, %s113
    %p125 = scmp.eq.s32.totalorder %s19, 1
    %p126 = por %p124, %p125
    %p128 = scmp.ne.s32.totalorder %s113, %s127
    %p129 = scmp.eq.s32.totalorder %s19, 0
    %p130 = por %p128, %p129
    %s132 = sadd.s32 %s131, 1
    %p135 = scmp.eq.s32.totalorder %s13, 1
    %p136 = scmp.ne.s32.totalorder %s131, %s133
    %p137 = scmp.eq.s32.totalorder %s13, 0
    %p138 = por %p136, %p137
    %p139 = scmp.ne.s32.totalorder %s131, %s133
    %p140 = scmp.eq.s32.totalorder %s18, 1
    %p141 = por %p139, %p140
    %p142 = scmp.ne.s32.totalorder %s133, %s134
    %p143 = scmp.eq.s32.totalorder %s18, 0
    %p144 = por %p142, %p143
    %p145 = scmp.ne.s32.totalorder %s133, %s134
    %p146 = scmp.eq.s32.totalorder %s19, 1
    %p147 = por %p145, %p146
    %p149 = scmp.ne.s32.totalorder %s134, %s148
    %p150 = scmp.eq.s32.totalorder %s19, 0
    %p151 = por %p149, %p150
    %s153 = sadd.s32 %s152, 1
    %p156 = scmp.eq.s32.totalorder %s13, 1
    %p157 = scmp.ne.s32.totalorder %s152, %s154
    %p158 = scmp.eq.s32.totalorder %s13, 0
    %p159 = por %p157, %p158
    %p160 = scmp.ne.s32.totalorder %s152, %s154
    %p161 = scmp.eq.s32.totalorder %s18, 1
    %p162 = por %p160, %p161
    %p163 = scmp.ne.s32.totalorder %s154, %s155
    %p164 = scmp.eq.s32.totalorder %s18, 0
    %p165 = por %p163, %p164
    %p166 = scmp.ne.s32.totalorder %s154, %s155
    %p167 = scmp.eq.s32.totalorder %s19, 1
    %p168 = por %p166, %p167
    %p170 = scmp.ne.s32.totalorder %s155, %s169
    %p171 = scmp.eq.s32.totalorder %s19, 0
    %p172 = por %p170, %p171
    %s173 = ssub.s32 %s13, %s20
    %p174 = scmp.eq.s32.totalorder %s173, 0
    %s176 = sadd.s32 %s175, 1
    %s177 = scalar_select %p174, %s175, %s176
    %p180 = pneg %p174
    %p181 = scmp.eq.s32.totalorder %s13, 1
    %p182 = por %p180, %p181
    %p183 = scmp.ne.s32.totalorder %s175, %s178
    %p184 = scmp.eq.s32.totalorder %s13, 0
    %p185 = por %p183, %p184
    %p186 = scmp.ne.s32.totalorder %s175, %s178
    %p187 = scmp.eq.s32.totalorder %s18, 1
    %p188 = por %p186, %p187
    %p189 = scmp.ne.s32.totalorder %s178, %s179
    %p190 = scmp.eq.s32.totalorder %s18, 0
    %p191 = por %p189, %p190
    %p192 = scmp.ne.s32.totalorder %s178, %s179
    %p193 = scmp.eq.s32.totalorder %s19, 1
    %p194 = por %p192, %p193
    %p196 = scmp.ne.s32.totalorder %s179, %s195
    %p197 = scmp.eq.s32.totalorder %s19, 0
    %p198 = por %p196, %p197
    %p199 = scmp.le.s32.totalorder 1, %s13
    %p200 = scmp.lt.s32.totalorder %s13, 3
    %p201 = pnand %p199, %p200
    %p202 = pneg %p201
    // Predicated region
    $region9: #{gsimple_block_forward.1} parent=5 // pred_check
      _
    $region10: #{gsimple_block_forward.1} parent=5 // pred_check_branch
      %204 = sbr.rel (%p201) target = $region12
    $region11: #{gsimple_block_forward.1} parent=5 // pred_region
      %s205 = ssub.s32 %s13, 1
      // Predicated region
      $region13: #{gsimple_block_forward.1} parent=11 // pred_check
        %p206 = pneg %p60
      $region14: #{gsimple_block_forward.1} parent=11 // pred_check_branch
        %208 = sbr.rel (%p206) target = $region16
      $region15: #{gsimple_block_forward.1} parent=11 // pred_region
        _
      $region16: #{gsimple_block_forward.1} parent=11 // pred_fallthru
        _
      // Predicated region
      $region17: #{gsimple_block_forward.1} parent=11 // pred_check
        %p209 = pneg %p81
      $region18: #{gsimple_block_forward.1} parent=11 // pred_check_branch
        %211 = sbr.rel (%p209) target = $region20
      $region19: #{gsimple_block_forward.1} parent=11 // pred_region
        _
      $region20: #{gsimple_block_forward.1} parent=11 // pred_fallthru
        _
      // Predicated region
      $region21: #{gsimple_block_forward.1} parent=11 // pred_check
        %p212 = pneg %p102
      $region22: #{gsimple_block_forward.1} parent=11 // pred_check_branch
        %214 = sbr.rel (%p212) target = $region24
      $region23: #{gsimple_block_forward.1} parent=11 // pred_region
        _
      $region24: #{gsimple_block_forward.1} parent=11 // pred_fallthru
        _
      // Predicated region
      $region25: #{gsimple_block_forward.1} parent=11 // pred_check
        %p215 = pneg %p123
      $region26: #{gsimple_block_forward.1} parent=11 // pred_check_branch
        %217 = sbr.rel (%p215) target = $region28
      $region27: #{gsimple_block_forward.1} parent=11 // pred_region
        _
      $region28: #{gsimple_block_forward.1} parent=11 // pred_fallthru
        _
      // Predicated region
      $region29: #{gsimple_block_forward.1} parent=11 // pred_check
        %p218 = pneg %p144
      $region30: #{gsimple_block_forward.1} parent=11 // pred_check_branch
        %220 = sbr.rel (%p218) target = $region32
      $region31: #{gsimple_block_forward.1} parent=11 // pred_region
        _
      $region32: #{gsimple_block_forward.1} parent=11 // pred_fallthru
        _
      // Predicated region
      $region33: #{gsimple_block_forward.1} parent=11 // pred_check
        %p221 = pneg %p165
      $region34: #{gsimple_block_forward.1} parent=11 // pred_check_branch
        %223 = sbr.rel (%p221) target = $region36
      $region35: #{gsimple_block_forward.1} parent=11 // pred_region
        _
      $region36: #{gsimple_block_forward.1} parent=11 // pred_fallthru
        _
    $region12: #{gsimple_block_forward.1} parent=5 // pred_fallthru
      _
    %p224 = scmp.lt.s32.totalorder %s13, 2
    // Predicated region
    $region37: #{gsimple_block_forward.1} parent=5 // pred_check
      %p225 = pneg %p224
    $region38: #{gsimple_block_forward.1} parent=5 // pred_check_branch
      %227 = sbr.rel (%p225) target = $region40
    $region39: #{gsimple_block_forward.1} parent=5 // pred_region
      // Predicated region
      $region41: #{gsimple_block_forward.1} parent=39 // pred_check
        %p228 = pneg %p33
      $region42: #{gsimple_block_forward.1} parent=39 // pred_check_branch
        %230 = sbr.rel (%p228) target = $region44
      $region43: #{gsimple_block_forward.1} parent=39 // pred_region
        %p231 = scmp.lt.s32.totalorder %s13, 1
        %s232 = scalar_select %p231, %s13, 1
        %s233 = smul.addr %s232, 3
        %s234 = smul.addr %s233, 2
        %s235 = scalar_lea.vmem %s0, %s234
      $region44: #{gsimple_block_forward.1} parent=39 // pred_fallthru
        _
    $region40: #{gsimple_block_forward.1} parent=5 // pred_fallthru
      _
    %p236 = scmp.le.s32.totalorder 1, %s13
    %p237 = scmp.lt.s32.totalorder %s13, 3
    %p238 = pnand %p236, %p237
    %p239 = pneg %p238
    // Predicated region
    $region45: #{gsimple_block_forward.1} parent=5 // pred_check
      _
    $region46: #{gsimple_block_forward.1} parent=5 // pred_check_branch
      %241 = sbr.rel (%p238) target = $region48
    $region47: #{gsimple_block_forward.1} parent=5 // pred_region
      %s242 = ssub.s32 %s13, 1
      %p243 = scmp.lt.s32.totalorder %s18, 1
      %s244 = scalar_select %p243, %s18, 1
      %s245 = smul.addr %s244, 3
      %s246 = smul.addr %s245, 2
      %s247 = scalar_lea.vmem %s0, %s246
      %p248 = pneg %p39
      %p249 = pneg %p36
      %p250 = pneg %p60
      %p251 = pneg %p57
      %p252 = pneg %p81
      %p253 = pneg %p78
      %p254 = pneg %p102
      %p255 = pneg %p99
      %p256 = pneg %p123
      %p257 = pneg %p120
      %p258 = pneg %p144
      %p259 = pneg %p141
      %p260 = pneg %p165
      %p261 = pneg %p162
      %p262 = pneg %p191
      %p263 = pneg %p188
      %p264 = scmp.lt.s32.totalorder %s18, 1
      %s265 = scalar_select %p264, %s18, 1
      %s266 = smul.addr %s265, 3
      %s267 = smul.addr %s266, 8
      %s268 = scalar_lea.vmem %s7, %s267
      %p269 = scmp.lt.s32.totalorder %s18, 1
      %s270 = scalar_select %p269, %s18, 1
      %s271 = smul.addr %s270, 3
      %s272 = smul.addr %s271, 2
      %s273 = scalar_lea.vmem %s0, %s272
      %p274 = scmp.lt.s32.totalorder %s18, 1
      %s275 = scalar_select %p274, %s18, 1
      %s276 = smul.addr %s275, 3
      %s277 = smul.addr %s276, 8
      %s278 = scalar_lea.vmem %s7, %s277
      %vm280 = vcmask 287744
      %281 = vst.msk [vmem:[#allocation2] sm:$0x3] %vm280, 0
      %vm282 = vcmask 845344
      %283 = vst.msk [vmem:[#allocation2 + $0x4] sm:$0x3] %vm282, 0
      %v284 = vld [vmem:[%s6] sm:$0x7]
      %v285 = vld [vmem:[%s1] sm:$0x3]
      %v286 = vld [vmem:[%s273] sm:$0x3f]
      %s287 = scalar_lea.vmem %s1, 2
      %v288 = vld [vmem:[%s287] sm:$0x3]
      %v290 = vcombine.high %v286, %v286
      %v292 = vunpack.c.l.s4 1983009808
      %v293 = vunpack.c.0.s8 %v292
      %v294 = vlaneseq
      %v295 = vshrl.u32 %v294, 7
      %v296 = vsub.s32 %v293, %v295
      %v297 = vrot.slane %v286, %v296
      %v299 = vunpack.c.l.s4 1983009808
      %v300 = vunpack.c.0.s8 %v299
      %v301 = vlaneseq
      %v302 = vshrl.u32 %v301, 7
      %v303 = vsub.s32 %v300, %v302
      %v304 = vrot.slane %v290, %v303
      %v305 = vcombine.high %v297, %v297
      %306 = vrot.lane.b32.xlu0 %v297, 110
      %v307 = vpop.permute.xlu0 %306
      %308 = vrot.lane.b32.xlu0 %v305, 110
      %v309 = vpop.permute.xlu0 %308
      %310 = vrot.lane.b32.xlu0 %v304, 110
      %v311 = vpop.permute.xlu0 %310
      %vm312 = vcmask 900096
      %v313 = vsel %vm312, %v307, %v309
      %v314 = vsel %vm312, %v309, %v311
      %vm315 = vcmask 31744
      %v317 = vsel %vm315, %v288, 0
      %vm319 = vcmask 1041408
      %v321 = vsel %vm319, %v313, 0
      %v324 = vsel %vm319, %v314, 0
      %v327 = vsel %vm319, %v311, 0
      %329 = vmatprep.subr.bf16.mxu0 0
      %330 = vmatpush1.bf16.msra.mxu0 0
      %331 = vmatprep.subr.bf16.mxu0 0
      %332 = vmatpush1.bf16.msra.mxu0 0
      %333 = vmatprep.subr.bf16.mxu0 0
      %334 = vmatpush1.bf16.msra.mxu0 0
      %335 = vmatprep.subr.bf16.mxu0 0
      %336 = vmatpush1.bf16.msra.mxu0 0
      %337 = vmatprep.subr.bf16.mxu0 0
      %338 = vmatpush1.bf16.msra.mxu0 0
      %339 = vmatprep.subr.bf16.mxu0 0
      %340 = vmatpush1.bf16.msra.mxu0 0
      %341 = vmatprep.subr.bf16.mxu0 0
      %342 = vmatpush1.bf16.msra.mxu0 0
      %343 = vmatprep.subr.bf16.mxu0 %v324
      %344 = vmatpush1.bf16.msra.mxu0 %v321
      %345 = vmatprep.subr.bf16.mxu0 0
      %346 = vmatpush2.bf16.msra.mxu0 0
      %347 = vmatprep.subr.bf16.mxu0 0
      %348 = vmatpush2.bf16.msra.mxu0 0
      %349 = vmatprep.subr.bf16.mxu0 0
      %350 = vmatpush2.bf16.msra.mxu0 0
      %351 = vmatprep.subr.bf16.mxu0 0
      %352 = vmatpush2.bf16.msra.mxu0 0
      %353 = vmatprep.subr.bf16.mxu0 0
      %354 = vmatpush2.bf16.msra.mxu0 0
      %355 = vmatprep.subr.bf16.mxu0 0
      %356 = vmatpush2.bf16.msra.mxu0 0
      %357 = vmatprep.subr.bf16.mxu0 0
      %358 = vmatpush2.bf16.msra.mxu0 0
      %359 = vmatprep.subr.bf16.mxu0 0
      %360 = vmatpush2.bf16.msra.mxu0 0
      %361 = vmatprep.mubr.bf16.mxu0 0
      %362 = vmatmul.mubr.bf16.gmra.mxu0 %v317
      %v363 = vpop.f32.mrf.mxu0
      %v364 = vadd.f32 0.0, %v363
      %v365 = vpop.f32.mrf.mxu0
      %v366 = vadd.f32 0.0, %v365
      %v367 = vpop.f32.mrf.mxu0
      %v368 = vpop.f32.mrf.mxu0
      %369 = vdwg.mxu0
      %370 = vmatprep.subr.bf16.mxu0 0
      %371 = vmatpush1.bf16.msra.mxu0 0
      %372 = vmatprep.subr.bf16.mxu0 0
      %373 = vmatpush1.bf16.msra.mxu0 0
      %374 = vmatprep.subr.bf16.mxu0 0
      %375 = vmatpush1.bf16.msra.mxu0 0
      %376 = vmatprep.subr.bf16.mxu0 0
      %377 = vmatpush1.bf16.msra.mxu0 0
      %378 = vmatprep.subr.bf16.mxu0 0
      %379 = vmatpush1.bf16.msra.mxu0 0
      %380 = vmatprep.subr.bf16.mxu0 0
      %381 = vmatpush1.bf16.msra.mxu0 0
      %382 = vmatprep.subr.bf16.mxu0 0
      %383 = vmatpush1.bf16.msra.mxu0 0
      %384 = vmatprep.subr.bf16.mxu0 0
      %385 = vmatpush1.bf16.msra.mxu0 %v327
      %386 = vmatprep.subr.bf16.mxu0 0
      %387 = vmatpush2.bf16.msra.mxu0 0
      %388 = vmatprep.subr.bf16.mxu0 0
      %389 = vmatpush2.bf16.msra.mxu0 0
      %390 = vmatprep.subr.bf16.mxu0 0
      %391 = vmatpush2.bf16.msra.mxu0 0
      %392 = vmatprep.subr.bf16.mxu0 0
      %393 = vmatpush2.bf16.msra.mxu0 0
      %394 = vmatprep.subr.bf16.mxu0 0
      %395 = vmatpush2.bf16.msra.mxu0 0
      %396 = vmatprep.subr.bf16.mxu0 0
      %397 = vmatpush2.bf16.msra.mxu0 0
      %398 = vmatprep.subr.bf16.mxu0 0
      %399 = vmatpush2.bf16.msra.mxu0 0
      %400 = vmatprep.subr.bf16.mxu0 0
      %401 = vmatpush2.bf16.msra.mxu0 0
      %402 = vmatprep.mubr.bf16.mxu0 0
      %403 = vmatmul.mubr.bf16.gmra.mxu0 %v317
      %v404 = vpop.f32.mrf.mxu0
      %v405 = vadd.f32 0.0, %v404
      %v406 = vpop.f32.mrf.mxu0
      %v407 = vpop.f32.mrf.mxu0
      %v408 = vpop.f32.mrf.mxu0
      %409 = vdwg.mxu0
      %410 = vrot.lane.b32.xlu0 %v297, 111
      %v411 = vpop.permute.xlu0 %410
      %412 = vrot.lane.b32.xlu0 %v305, 111
      %v413 = vpop.permute.xlu0 %412
      %414 = vrot.lane.b32.xlu0 %v304, 111
      %v415 = vpop.permute.xlu0 %414
      %vm416 = vcmask 908288
      %v417 = vsel %vm416, %v411, %v413
      %v418 = vsel %vm416, %v413, %v415
      %v420 = vsel %vm315, %v285, 0
      %v423 = vsel %vm319, %v417, 0
      %v426 = vsel %vm319, %v418, 0
      %v429 = vsel %vm319, %v415, 0
      %431 = vmatprep.subr.bf16.mxu0 0
      %432 = vmatpush1.bf16.msra.mxu0 0
      %433 = vmatprep.subr.bf16.mxu0 0
      %434 = vmatpush1.bf16.msra.mxu0 0
      %435 = vmatprep.subr.bf16.mxu0 0
      %436 = vmatpush1.bf16.msra.mxu0 0
      %437 = vmatprep.subr.bf16.mxu0 0
      %438 = vmatpush1.bf16.msra.mxu0 0
      %439 = vmatprep.subr.bf16.mxu0 0
      %440 = vmatpush1.bf16.msra.mxu0 0
      %441 = vmatprep.subr.bf16.mxu0 0
      %442 = vmatpush1.bf16.msra.mxu0 0
      %443 = vmatprep.subr.bf16.mxu0 0
      %444 = vmatpush1.bf16.msra.mxu0 0
      %445 = vmatprep.subr.bf16.mxu0 %v426
      %446 = vmatpush1.bf16.msra.mxu0 %v423
      %447 = vmatprep.subr.bf16.mxu0 0
      %448 = vmatpush2.bf16.msra.mxu0 0
      %449 = vmatprep.subr.bf16.mxu0 0
      %450 = vmatpush2.bf16.msra.mxu0 0
      %451 = vmatprep.subr.bf16.mxu0 0
      %452 = vmatpush2.bf16.msra.mxu0 0
      %453 = vmatprep.subr.bf16.mxu0 0
      %454 = vmatpush2.bf16.msra.mxu0 0
      %455 = vmatprep.subr.bf16.mxu0 0
      %456 = vmatpush2.bf16.msra.mxu0 0
      %457 = vmatprep.subr.bf16.mxu0 0
      %458 = vmatpush2.bf16.msra.mxu0 0
      %459 = vmatprep.subr.bf16.mxu0 0
      %460 = vmatpush2.bf16.msra.mxu0 0
      %461 = vmatprep.subr.bf16.mxu0 0
      %462 = vmatpush2.bf16.msra.mxu0 0
      %463 = vmatprep.mubr.bf16.mxu0 0
      %464 = vmatmul.mubr.bf16.gmra.mxu0 %v420
      %v465 = vpop.f32.mrf.mxu0
      %v466 = vadd.f32 %v364, %v465
      %v467 = vpop.f32.mrf.mxu0
      %v468 = vadd.f32 %v366, %v467
      %v469 = vpop.f32.mrf.mxu0
      %v470 = vpop.f32.mrf.mxu0
      %471 = vdwg.mxu0
      %472 = vmatprep.subr.bf16.mxu0 0
      %473 = vmatpush1.bf16.msra.mxu0 0
      %474 = vmatprep.subr.bf16.mxu0 0
      %475 = vmatpush1.bf16.msra.mxu0 0
      %476 = vmatprep.subr.bf16.mxu0 0
      %477 = vmatpush1.bf16.msra.mxu0 0
      %478 = vmatprep.subr.bf16.mxu0 0
      %479 = vmatpush1.bf16.msra.mxu0 0
      %480 = vmatprep.subr.bf16.mxu0 0
      %481 = vmatpush1.bf16.msra.mxu0 0
      %482 = vmatprep.subr.bf16.mxu0 0
      %483 = vmatpush1.bf16.msra.mxu0 0
      %484 = vmatprep.subr.bf16.mxu0 0
      %485 = vmatpush1.bf16.msra.mxu0 0
      %486 = vmatprep.subr.bf16.mxu0 0
      %487 = vmatpush1.bf16.msra.mxu0 %v429
      %488 = vmatprep.subr.bf16.mxu0 0
      %489 = vmatpush2.bf16.msra.mxu0 0
      %490 = vmatprep.subr.bf16.mxu0 0
      %491 = vmatpush2.bf16.msra.mxu0 0
      %492 = vmatprep.subr.bf16.mxu0 0
      %493 = vmatpush2.bf16.msra.mxu0 0
      %494 = vmatprep.subr.bf16.mxu0 0
      %495 = vmatpush2.bf16.msra.mxu0 0
      %496 = vmatprep.subr.bf16.mxu0 0
      %497 = vmatpush2.bf16.msra.mxu0 0
      %498 = vmatprep.subr.bf16.mxu0 0
      %499 = vmatpush2.bf16.msra.mxu0 0
      %500 = vmatprep.subr.bf16.mxu0 0
      %501 = vmatpush2.bf16.msra.mxu0 0
      %502 = vmatprep.subr.bf16.mxu0 0
      %503 = vmatpush2.bf16.msra.mxu0 0
      %504 = vmatprep.mubr.bf16.mxu0 0
      %505 = vmatmul.mubr.bf16.gmra.mxu0 %v420
      %v506 = vpop.f32.mrf.mxu0
      %v507 = vadd.f32 %v405, %v506
      %v508 = vpop.f32.mrf.mxu0
      %v509 = vpop.f32.mrf.mxu0
      %v510 = vpop.f32.mrf.mxu0
      %511 = vdwg.mxu0
      %s512 = scalar_lea.vmem %s1, 4
      %v513 = vld [vmem:[%s512] sm:$0x3]
      %v514 = vld [vmem:[%s273] sm:$0x3f]
      %v516 = vcombine.high %v514, %v514
      %v518 = vunpack.c.l.s4 1983009808
      %v519 = vunpack.c.0.s8 %v518
      %v520 = vlaneseq
      %v521 = vshrl.u32 %v520, 7
      %v522 = vsub.s32 %v519, %v521
      %v523 = vrot.slane %v514, %v522
      %v525 = vunpack.c.l.s4 1983009808
      %v526 = vunpack.c.0.s8 %v525
      %v527 = vlaneseq
      %v528 = vshrl.u32 %v527, 7
      %v529 = vsub.s32 %v526, %v528
      %v530 = vrot.slane %v516, %v529
      %v531 = vcombine.high %v523, %v523
      %532 = vrot.lane.b32.xlu0 %v523, 109
      %v533 = vpop.permute.xlu0 %532
      %534 = vrot.lane.b32.xlu0 %v531, 109
      %v535 = vpop.permute.xlu0 %534
      %536 = vrot.lane.b32.xlu0 %v530, 109
      %v537 = vpop.permute.xlu0 %536
      %vm538 = vcmask 891904
      %v539 = vsel %vm538, %v533, %v535
      %v540 = vsel %vm538, %v535, %v537
      %v542 = vsel %vm315, %v513, 0
      %v545 = vsel %vm319, %v539, 0
      %v548 = vsel %vm319, %v540, 0
      %v551 = vsel %vm319, %v537, 0
      %553 = vmatprep.subr.bf16.mxu0 0
      %554 = vmatpush1.bf16.msra.mxu0 0
      %555 = vmatprep.subr.bf16.mxu0 0
      %556 = vmatpush1.bf16.msra.mxu0 0
      %557 = vmatprep.subr.bf16.mxu0 0
      %558 = vmatpush1.bf16.msra.mxu0 0
      %559 = vmatprep.subr.bf16.mxu0 0
      %560 = vmatpush1.bf16.msra.mxu0 0
      %561 = vmatprep.subr.bf16.mxu0 0
      %562 = vmatpush1.bf16.msra.mxu0 0
      %563 = vmatprep.subr.bf16.mxu0 0
      %564 = vmatpush1.bf16.msra.mxu0 0
      %565 = vmatprep.subr.bf16.mxu0 0
      %566 = vmatpush1.bf16.msra.mxu0 0
      %567 = vmatprep.subr.bf16.mxu0 %v548
      %568 = vmatpush1.bf16.msra.mxu0 %v545
      %569 = vmatprep.subr.bf16.mxu0 0
      %570 = vmatpush2.bf16.msra.mxu0 0
      %571 = vmatprep.subr.bf16.mxu0 0
      %572 = vmatpush2.bf16.msra.mxu0 0
      %573 = vmatprep.subr.bf16.mxu0 0
      %574 = vmatpush2.bf16.msra.mxu0 0
      %575 = vmatprep.subr.bf16.mxu0 0
      %576 = vmatpush2.bf16.msra.mxu0 0
      %577 = vmatprep.subr.bf16.mxu0 0
      %578 = vmatpush2.bf16.msra.mxu0 0
      %579 = vmatprep.subr.bf16.mxu0 0
      %580 = vmatpush2.bf16.msra.mxu0 0
      %581 = vmatprep.subr.bf16.mxu0 0
      %582 = vmatpush2.bf16.msra.mxu0 0
      %583 = vmatprep.subr.bf16.mxu0 0
      %584 = vmatpush2.bf16.msra.mxu0 0
      %585 = vmatprep.mubr.bf16.mxu0 0
      %586 = vmatmul.mubr.bf16.gmra.mxu0 %v542
      %v587 = vpop.f32.mrf.mxu0
      %v588 = vadd.f32 0.0, %v587
      %v589 = vpop.f32.mrf.mxu0
      %v590 = vadd.f32 0.0, %v589
      %v591 = vpop.f32.mrf.mxu0
      %v592 = vpop.f32.mrf.mxu0
      %593 = vdwg.mxu0
      %594 = vmatprep.subr.bf16.mxu0 0
      %595 = vmatpush1.bf16.msra.mxu0 0
      %596 = vmatprep.subr.bf16.mxu0 0
      %597 = vmatpush1.bf16.msra.mxu0 0
      %598 = vmatprep.subr.bf16.mxu0 0
      %599 = vmatpush1.bf16.msra.mxu0 0
      %600 = vmatprep.subr.bf16.mxu0 0
      %601 = vmatpush1.bf16.msra.mxu0 0
      %602 = vmatprep.subr.bf16.mxu0 0
      %603 = vmatpush1.bf16.msra.mxu0 0
      %604 = vmatprep.subr.bf16.mxu0 0
      %605 = vmatpush1.bf16.msra.mxu0 0
      %606 = vmatprep.subr.bf16.mxu0 0
      %607 = vmatpush1.bf16.msra.mxu0 0
      %608 = vmatprep.subr.bf16.mxu0 0
      %609 = vmatpush1.bf16.msra.mxu0 %v551
      %610 = vmatprep.subr.bf16.mxu0 0
      %611 = vmatpush2.bf16.msra.mxu0 0
      %612 = vmatprep.subr.bf16.mxu0 0
      %613 = vmatpush2.bf16.msra.mxu0 0
      %614 = vmatprep.subr.bf16.mxu0 0
      %615 = vmatpush2.bf16.msra.mxu0 0
      %616 = vmatprep.subr.bf16.mxu0 0
      %617 = vmatpush2.bf16.msra.mxu0 0
      %618 = vmatprep.subr.bf16.mxu0 0
      %619 = vmatpush2.bf16.msra.mxu0 0
      %620 = vmatprep.subr.bf16.mxu0 0
      %621 = vmatpush2.bf16.msra.mxu0 0
      %622 = vmatprep.subr.bf16.mxu0 0
      %623 = vmatpush2.bf16.msra.mxu0 0
      %624 = vmatprep.subr.bf16.mxu0 0
      %625 = vmatpush2.bf16.msra.mxu0 0
      %626 = vmatprep.mubr.bf16.mxu0 0
      %627 = vmatmul.mubr.bf16.gmra.mxu0 %v542
      %v628 = vpop.f32.mrf.mxu0
      %v629 = vadd.f32 0.0, %v628
      %v630 = vpop.f32.mrf.mxu0
      %v631 = vpop.f32.mrf.mxu0
      %v632 = vpop.f32.mrf.mxu0
      %633 = vdwg.mxu0
      %v634 = vadd.f32 %v466, %v588
      %v635 = vadd.f32 %v468, %v590
      %v636 = vadd.f32 %v507, %v629
      %s637 = scalar_lea.vmem %s1, 6
      %v638 = vld [vmem:[%s637] sm:$0x3]
      %v639 = vld [vmem:[%s273] sm:$0x3f]
      %v641 = vcombine.high %v639, %v639
      %v643 = vunpack.c.l.s4 1983009808
      %v644 = vunpack.c.0.s8 %v643
      %v645 = vlaneseq
      %v646 = vshrl.u32 %v645, 7
      %v647 = vsub.s32 %v644, %v646
      %v648 = vrot.slane %v639, %v647
      %v650 = vunpack.c.l.s4 1983009808
      %v651 = vunpack.c.0.s8 %v650
      %v652 = vlaneseq
      %v653 = vshrl.u32 %v652, 7
      %v654 = vsub.s32 %v651, %v653
      %v655 = vrot.slane %v641, %v654
      %v656 = vcombine.high %v648, %v648
      %657 = vrot.lane.b32.xlu0 %v648, 93
      %v658 = vpop.permute.xlu0 %657
      %659 = vrot.lane.b32.xlu0 %v656, 93
      %v660 = vpop.permute.xlu0 %659
      %661 = vrot.lane.b32.xlu0 %v655, 93
      %v662 = vpop.permute.xlu0 %661
      %vm663 = vcmask 760832
      %v664 = vsel %vm663, %v658, %v660
      %v665 = vsel %vm663, %v660, %v662
      %v667 = vsel %vm315, %v638, 0
      %v670 = vsel %vm319, %v664, 0
      %v673 = vsel %vm319, %v665, 0
      %v676 = vsel %vm319, %v662, 0
      %678 = vmatprep.subr.bf16.mxu0 0
      %679 = vmatpush1.bf16.msra.mxu0 0
      %680 = vmatprep.subr.bf16.mxu0 0
      %681 = vmatpush1.bf16.msra.mxu0 0
      %682 = vmatprep.subr.bf16.mxu0 0
      %683 = vmatpush1.bf16.msra.mxu0 0
      %684 = vmatprep.subr.bf16.mxu0 0
      %685 = vmatpush1.bf16.msra.mxu0 0
      %686 = vmatprep.subr.bf16.mxu0 0
      %687 = vmatpush1.bf16.msra.mxu0 0
      %688 = vmatprep.subr.bf16.mxu0 0
      %689 = vmatpush1.bf16.msra.mxu0 0
      %690 = vmatprep.subr.bf16.mxu0 0
      %691 = vmatpush1.bf16.msra.mxu0 0
      %692 = vmatprep.subr.bf16.mxu0 %v673
      %693 = vmatpush1.bf16.msra.mxu0 %v670
      %694 = vmatprep.subr.bf16.mxu0 0
      %695 = vmatpush2.bf16.msra.mxu0 0
      %696 = vmatprep.subr.bf16.mxu0 0
      %697 = vmatpush2.bf16.msra.mxu0 0
      %698 = vmatprep.subr.bf16.mxu0 0
      %699 = vmatpush2.bf16.msra.mxu0 0
      %700 = vmatprep.subr.bf16.mxu0 0
      %701 = vmatpush2.bf16.msra.mxu0 0
      %702 = vmatprep.subr.bf16.mxu0 0
      %703 = vmatpush2.bf16.msra.mxu0 0
      %704 = vmatprep.subr.bf16.mxu0 0
      %705 = vmatpush2.bf16.msra.mxu0 0
      %706 = vmatprep.subr.bf16.mxu0 0
      %707 = vmatpush2.bf16.msra.mxu0 0
      %708 = vmatprep.subr.bf16.mxu0 0
      %709 = vmatpush2.bf16.msra.mxu0 0
      %710 = vmatprep.mubr.bf16.mxu0 0
      %711 = vmatmul.mubr.bf16.gmra.mxu0 %v667
      %v712 = vpop.f32.mrf.mxu0
      %v713 = vadd.f32 0.0, %v712
      %v714 = vpop.f32.mrf.mxu0
      %v715 = vadd.f32 0.0, %v714
      %v716 = vpop.f32.mrf.mxu0
      %v717 = vpop.f32.mrf.mxu0
      %718 = vdwg.mxu0
      %719 = vmatprep.subr.bf16.mxu0 0
      %720 = vmatpush1.bf16.msra.mxu0 0
      %721 = vmatprep.subr.bf16.mxu0 0
      %722 = vmatpush1.bf16.msra.mxu0 0
      %723 = vmatprep.subr.bf16.mxu0 0
      %724 = vmatpush1.bf16.msra.mxu0 0
      %725 = vmatprep.subr.bf16.mxu0 0
      %726 = vmatpush1.bf16.msra.mxu0 0
      %727 = vmatprep.subr.bf16.mxu0 0
      %728 = vmatpush1.bf16.msra.mxu0 0
      %729 = vmatprep.subr.bf16.mxu0 0
      %730 = vmatpush1.bf16.msra.mxu0 0
      %731 = vmatprep.subr.bf16.mxu0 0
      %732 = vmatpush1.bf16.msra.mxu0 0
      %733 = vmatprep.subr.bf16.mxu0 0
      %734 = vmatpush1.bf16.msra.mxu0 %v676
      %735 = vmatprep.subr.bf16.mxu0 0
      %736 = vmatpush2.bf16.msra.mxu0 0
      %737 = vmatprep.subr.bf16.mxu0 0
      %738 = vmatpush2.bf16.msra.mxu0 0
      %739 = vmatprep.subr.bf16.mxu0 0
      %740 = vmatpush2.bf16.msra.mxu0 0
      %741 = vmatprep.subr.bf16.mxu0 0
      %742 = vmatpush2.bf16.msra.mxu0 0
      %743 = vmatprep.subr.bf16.mxu0 0
      %744 = vmatpush2.bf16.msra.mxu0 0
      %745 = vmatprep.subr.bf16.mxu0 0
      %746 = vmatpush2.bf16.msra.mxu0 0
      %747 = vmatprep.subr.bf16.mxu0 0
      %748 = vmatpush2.bf16.msra.mxu0 0
      %749 = vmatprep.subr.bf16.mxu0 0
      %750 = vmatpush2.bf16.msra.mxu0 0
      %751 = vmatprep.mubr.bf16.mxu0 0
      %752 = vmatmul.mubr.bf16.gmra.mxu0 %v667
      %v753 = vpop.f32.mrf.mxu0
      %v754 = vadd.f32 0.0, %v753
      %v755 = vpop.f32.mrf.mxu0
      %v756 = vpop.f32.mrf.mxu0
      %v757 = vpop.f32.mrf.mxu0
      %758 = vdwg.mxu0
      %v759 = vadd.f32 %v634, %v713
      %v760 = vadd.f32 %v635, %v715
      %v761 = vadd.f32 %v636, %v754
      %s762 = scalar_lea.vmem %s1, 8
      %v763 = vld [vmem:[%s762] sm:$0x3]
      %v764 = vld [vmem:[%s273] sm:$0x3f]
      %v766 = vcombine.high %v764, %v764
      %v768 = vunpack.c.l.s4 1983009808
      %v769 = vunpack.c.0.s8 %v768
      %v770 = vlaneseq
      %v771 = vshrl.u32 %v770, 7
      %v772 = vsub.s32 %v769, %v771
      %v773 = vrot.slane %v764, %v772
      %v775 = vunpack.c.l.s4 1983009808
      %v776 = vunpack.c.0.s8 %v775
      %v777 = vlaneseq
      %v778 = vshrl.u32 %v777, 7
      %v779 = vsub.s32 %v776, %v778
      %v780 = vrot.slane %v766, %v779
      %v781 = vcombine.high %v773, %v773
      %782 = vrot.lane.b32.xlu0 %v773, 92
      %v783 = vpop.permute.xlu0 %782
      %784 = vrot.lane.b32.xlu0 %v781, 92
      %v785 = vpop.permute.xlu0 %784
      %786 = vrot.lane.b32.xlu0 %v780, 92
      %v787 = vpop.permute.xlu0 %786
      %vm788 = vcmask 752640
      %v789 = vsel %vm788, %v783, %v785
      %v790 = vsel %vm788, %v785, %v787
      %v792 = vsel %vm315, %v763, 0
      %v795 = vsel %vm319, %v789, 0
      %v798 = vsel %vm319, %v790, 0
      %v801 = vsel %vm319, %v787, 0
      %803 = vmatprep.subr.bf16.mxu0 0
      %804 = vmatpush1.bf16.msra.mxu0 0
      %805 = vmatprep.subr.bf16.mxu0 0
      %806 = vmatpush1.bf16.msra.mxu0 0
      %807 = vmatprep.subr.bf16.mxu0 0
      %808 = vmatpush1.bf16.msra.mxu0 0
      %809 = vmatprep.subr.bf16.mxu0 0
      %810 = vmatpush1.bf16.msra.mxu0 0
      %811 = vmatprep.subr.bf16.mxu0 0
      %812 = vmatpush1.bf16.msra.mxu0 0
      %813 = vmatprep.subr.bf16.mxu0 0
      %814 = vmatpush1.bf16.msra.mxu0 0
      %815 = vmatprep.subr.bf16.mxu0 0
      %816 = vmatpush1.bf16.msra.mxu0 0
      %817 = vmatprep.subr.bf16.mxu0 %v798
      %818 = vmatpush1.bf16.msra.mxu0 %v795
      %819 = vmatprep.subr.bf16.mxu0 0
      %820 = vmatpush2.bf16.msra.mxu0 0
      %821 = vmatprep.subr.bf16.mxu0 0
      %822 = vmatpush2.bf16.msra.mxu0 0
      %823 = vmatprep.subr.bf16.mxu0 0
      %824 = vmatpush2.bf16.msra.mxu0 0
      %825 = vmatprep.subr.bf16.mxu0 0
      %826 = vmatpush2.bf16.msra.mxu0 0
      %827 = vmatprep.subr.bf16.mxu0 0
      %828 = vmatpush2.bf16.msra.mxu0 0
      %829 = vmatprep.subr.bf16.mxu0 0
      %830 = vmatpush2.bf16.msra.mxu0 0
      %831 = vmatprep.subr.bf16.mxu0 0
      %832 = vmatpush2.bf16.msra.mxu0 0
      %833 = vmatprep.subr.bf16.mxu0 0
      %834 = vmatpush2.bf16.msra.mxu0 0
      %835 = vmatprep.mubr.bf16.mxu0 0
      %836 = vmatmul.mubr.bf16.gmra.mxu0 %v792
      %v837 = vpop.f32.mrf.mxu0
      %v838 = vadd.f32 0.0, %v837
      %v839 = vpop.f32.mrf.mxu0
      %v840 = vadd.f32 0.0, %v839
      %v841 = vpop.f32.mrf.mxu0
      %v842 = vpop.f32.mrf.mxu0
      %843 = vdwg.mxu0
      %844 = vmatprep.subr.bf16.mxu0 0
      %845 = vmatpush1.bf16.msra.mxu0 0
      %846 = vmatprep.subr.bf16.mxu0 0
      %847 = vmatpush1.bf16.msra.mxu0 0
      %848 = vmatprep.subr.bf16.mxu0 0
      %849 = vmatpush1.bf16.msra.mxu0 0
      %850 = vmatprep.subr.bf16.mxu0 0
      %851 = vmatpush1.bf16.msra.mxu0 0
      %852 = vmatprep.subr.bf16.mxu0 0
      %853 = vmatpush1.bf16.msra.mxu0 0
      %854 = vmatprep.subr.bf16.mxu0 0
      %855 = vmatpush1.bf16.msra.mxu0 0
      %856 = vmatprep.subr.bf16.mxu0 0
      %857 = vmatpush1.bf16.msra.mxu0 0
      %858 = vmatprep.subr.bf16.mxu0 0
      %859 = vmatpush1.bf16.msra.mxu0 %v801
      %860 = vmatprep.subr.bf16.mxu0 0
      %861 = vmatpush2.bf16.msra.mxu0 0
      %862 = vmatprep.subr.bf16.mxu0 0
      %863 = vmatpush2.bf16.msra.mxu0 0
      %864 = vmatprep.subr.bf16.mxu0 0
      %865 = vmatpush2.bf16.msra.mxu0 0
      %866 = vmatprep.subr.bf16.mxu0 0
      %867 = vmatpush2.bf16.msra.mxu0 0
      %868 = vmatprep.subr.bf16.mxu0 0
      %869 = vmatpush2.bf16.msra.mxu0 0
      %870 = vmatprep.subr.bf16.mxu0 0
      %871 = vmatpush2.bf16.msra.mxu0 0
      %872 = vmatprep.subr.bf16.mxu0 0
      %873 = vmatpush2.bf16.msra.mxu0 0
      %874 = vmatprep.subr.bf16.mxu0 0
      %875 = vmatpush2.bf16.msra.mxu0 0
      %876 = vmatprep.mubr.bf16.mxu0 0
      %877 = vmatmul.mubr.bf16.gmra.mxu0 %v792
      %v878 = vpop.f32.mrf.mxu0
      %v879 = vadd.f32 0.0, %v878
      %v880 = vpop.f32.mrf.mxu0
      %v881 = vpop.f32.mrf.mxu0
      %v882 = vpop.f32.mrf.mxu0
      %883 = vdwg.mxu0
      %v884 = vadd.f32 %v759, %v838
      %v885 = vadd.f32 %v760, %v840
      %v886 = vadd.f32 %v761, %v879
      %s887 = scalar_lea.vmem %s1, 10
      %v888 = vld [vmem:[%s887] sm:$0x3]
      %v889 = vld [vmem:[%s273] sm:$0x3f]
      %v891 = vcombine.high %v889, %v889
      %v893 = vunpack.c.l.s4 1983009808
      %v894 = vunpack.c.0.s8 %v893
      %v895 = vlaneseq
      %v896 = vshrl.u32 %v895, 7
      %v897 = vsub.s32 %v894, %v896
      %v898 = vrot.slane %v889, %v897
      %v900 = vunpack.c.l.s4 1983009808
      %v901 = vunpack.c.0.s8 %v900
      %v902 = vlaneseq
      %v903 = vshrl.u32 %v902, 7
      %v904 = vsub.s32 %v901, %v903
      %v905 = vrot.slane %v891, %v904
      %v906 = vcombine.high %v898, %v898
      %907 = vrot.lane.b32.xlu0 %v898, 91
      %v908 = vpop.permute.xlu0 %907
      %909 = vrot.lane.b32.xlu0 %v906, 91
      %v910 = vpop.permute.xlu0 %909
      %911 = vrot.lane.b32.xlu0 %v905, 91
      %v912 = vpop.permute.xlu0 %911
      %vm913 = vcmask 744448
      %v914 = vsel %vm913, %v908, %v910
      %v915 = vsel %vm913, %v910, %v912
      %v917 = vsel %vm315, %v888, 0
      %v920 = vsel %vm319, %v914, 0
      %v923 = vsel %vm319, %v915, 0
      %v926 = vsel %vm319, %v912, 0
      %928 = vmatprep.subr.bf16.mxu0 0
      %929 = vmatpush1.bf16.msra.mxu0 0
      %930 = vmatprep.subr.bf16.mxu0 0
      %931 = vmatpush1.bf16.msra.mxu0 0
      %932 = vmatprep.subr.bf16.mxu0 0
      %933 = vmatpush1.bf16.msra.mxu0 0
      %934 = vmatprep.subr.bf16.mxu0 0
      %935 = vmatpush1.bf16.msra.mxu0 0
      %936 = vmatprep.subr.bf16.mxu0 0
      %937 = vmatpush1.bf16.msra.mxu0 0
      %938 = vmatprep.subr.bf16.mxu0 0
      %939 = vmatpush1.bf16.msra.mxu0 0
      %940 = vmatprep.subr.bf16.mxu0 0
      %941 = vmatpush1.bf16.msra.mxu0 0
      %942 = vmatprep.subr.bf16.mxu0 %v923
      %943 = vmatpush1.bf16.msra.mxu0 %v920
      %944 = vmatprep.subr.bf16.mxu0 0
      %945 = vmatpush2.bf16.msra.mxu0 0
      %946 = vmatprep.subr.bf16.mxu0 0
      %947 = vmatpush2.bf16.msra.mxu0 0
      %948 = vmatprep.subr.bf16.mxu0 0
      %949 = vmatpush2.bf16.msra.mxu0 0
      %950 = vmatprep.subr.bf16.mxu0 0
      %951 = vmatpush2.bf16.msra.mxu0 0
      %952 = vmatprep.subr.bf16.mxu0 0
      %953 = vmatpush2.bf16.msra.mxu0 0
      %954 = vmatprep.subr.bf16.mxu0 0
      %955 = vmatpush2.bf16.msra.mxu0 0
      %956 = vmatprep.subr.bf16.mxu0 0
      %957 = vmatpush2.bf16.msra.mxu0 0
      %958 = vmatprep.subr.bf16.mxu0 0
      %959 = vmatpush2.bf16.msra.mxu0 0
      %960 = vmatprep.mubr.bf16.mxu0 0
      %961 = vmatmul.mubr.bf16.gmra.mxu0 %v917
      %v962 = vpop.f32.mrf.mxu0
      %v963 = vadd.f32 0.0, %v962
      %v964 = vpop.f32.mrf.mxu0
      %v965 = vadd.f32 0.0, %v964
      %v966 = vpop.f32.mrf.mxu0
      %v967 = vpop.f32.mrf.mxu0
      %968 = vdwg.mxu0
      %969 = vmatprep.subr.bf16.mxu0 0
      %970 = vmatpush1.bf16.msra.mxu0 0
      %971 = vmatprep.subr.bf16.mxu0 0
      %972 = vmatpush1.bf16.msra.mxu0 0
      %973 = vmatprep.subr.bf16.mxu0 0
      %974 = vmatpush1.bf16.msra.mxu0 0
      %975 = vmatprep.subr.bf16.mxu0 0
      %976 = vmatpush1.bf16.msra.mxu0 0
      %977 = vmatprep.subr.bf16.mxu0 0
      %978 = vmatpush1.bf16.msra.mxu0 0
      %979 = vmatprep.subr.bf16.mxu0 0
      %980 = vmatpush1.bf16.msra.mxu0 0
      %981 = vmatprep.subr.bf16.mxu0 0
      %982 = vmatpush1.bf16.msra.mxu0 0
      %983 = vmatprep.subr.bf16.mxu0 0
      %984 = vmatpush1.bf16.msra.mxu0 %v926
      %985 = vmatprep.subr.bf16.mxu0 0
      %986 = vmatpush2.bf16.msra.mxu0 0
      %987 = vmatprep.subr.bf16.mxu0 0
      %988 = vmatpush2.bf16.msra.mxu0 0
      %989 = vmatprep.subr.bf16.mxu0 0
      %990 = vmatpush2.bf16.msra.mxu0 0
      %991 = vmatprep.subr.bf16.mxu0 0
      %992 = vmatpush2.bf16.msra.mxu0 0
      %993 = vmatprep.subr.bf16.mxu0 0
      %994 = vmatpush2.bf16.msra.mxu0 0
      %995 = vmatprep.subr.bf16.mxu0 0
      %996 = vmatpush2.bf16.msra.mxu0 0
      %997 = vmatprep.subr.bf16.mxu0 0
      %998 = vmatpush2.bf16.msra.mxu0 0
      %999 = vmatprep.subr.bf16.mxu0 0
      %1000 = vmatpush2.bf16.msra.mxu0 0
      %1001 = vmatprep.mubr.bf16.mxu0 0
      %1002 = vmatmul.mubr.bf16.gmra.mxu0 %v917
      %v1003 = vpop.f32.mrf.mxu0
      %v1004 = vadd.f32 0.0, %v1003
      %v1005 = vpop.f32.mrf.mxu0
      %v1006 = vpop.f32.mrf.mxu0
      %v1007 = vpop.f32.mrf.mxu0
      %1008 = vdwg.mxu0
      %v1009 = vadd.f32 %v884, %v963
      %v1010 = vadd.f32 %v885, %v965
      %v1011 = vadd.f32 %v886, %v1004
      %s1012 = scalar_lea.vmem %s1, 12
      %v1013 = vld [vmem:[%s1012] sm:$0x3]
      %v1014 = vld [vmem:[%s273] sm:$0x3f]
      %v1016 = vcombine.high %v1014, %v1014
      %v1018 = vunpack.c.l.s4 1983009808
      %v1019 = vunpack.c.0.s8 %v1018
      %v1020 = vlaneseq
      %v1021 = vshrl.u32 %v1020, 7
      %v1022 = vsub.s32 %v1019, %v1021
      %v1023 = vrot.slane %v1014, %v1022
      %v1025 = vunpack.c.l.s4 1983009808
      %v1026 = vunpack.c.0.s8 %v1025
      %v1027 = vlaneseq
      %v1028 = vshrl.u32 %v1027, 7
      %v1029 = vsub.s32 %v1026, %v1028
      %v1030 = vrot.slane %v1016, %v1029
      %v1031 = vcombine.high %v1023, %v1023
      %1032 = vrot.lane.b32.xlu0 %v1023, 75
      %v1033 = vpop.permute.xlu0 %1032
      %1034 = vrot.lane.b32.xlu0 %v1031, 75
      %v1035 = vpop.permute.xlu0 %1034
      %1036 = vrot.lane.b32.xlu0 %v1030, 75
      %v1037 = vpop.permute.xlu0 %1036
      %vm1038 = vcmask 613376
      %v1039 = vsel %vm1038, %v1033, %v1035
      %v1040 = vsel %vm1038, %v1035, %v1037
      %v1042 = vsel %vm315, %v1013, 0
      %v1045 = vsel %vm319, %v1039, 0
      %v1048 = vsel %vm319, %v1040, 0
      %v1051 = vsel %vm319, %v1037, 0
      %1053 = vmatprep.subr.bf16.mxu0 0
      %1054 = vmatpush1.bf16.msra.mxu0 0
      %1055 = vmatprep.subr.bf16.mxu0 0
      %1056 = vmatpush1.bf16.msra.mxu0 0
      %1057 = vmatprep.subr.bf16.mxu0 0
      %1058 = vmatpush1.bf16.msra.mxu0 0
      %1059 = vmatprep.subr.bf16.mxu0 0
      %1060 = vmatpush1.bf16.msra.mxu0 0
      %1061 = vmatprep.subr.bf16.mxu0 0
      %1062 = vmatpush1.bf16.msra.mxu0 0
      %1063 = vmatprep.subr.bf16.mxu0 0
      %1064 = vmatpush1.bf16.msra.mxu0 0
      %1065 = vmatprep.subr.bf16.mxu0 0
      %1066 = vmatpush1.bf16.msra.mxu0 0
      %1067 = vmatprep.subr.bf16.mxu0 %v1048
      %1068 = vmatpush1.bf16.msra.mxu0 %v1045
      %1069 = vmatprep.subr.bf16.mxu0 0
      %1070 = vmatpush2.bf16.msra.mxu0 0
      %1071 = vmatprep.subr.bf16.mxu0 0
      %1072 = vmatpush2.bf16.msra.mxu0 0
      %1073 = vmatprep.subr.bf16.mxu0 0
      %1074 = vmatpush2.bf16.msra.mxu0 0
      %1075 = vmatprep.subr.bf16.mxu0 0
      %1076 = vmatpush2.bf16.msra.mxu0 0
      %1077 = vmatprep.subr.bf16.mxu0 0
      %1078 = vmatpush2.bf16.msra.mxu0 0
      %1079 = vmatprep.subr.bf16.mxu0 0
      %1080 = vmatpush2.bf16.msra.mxu0 0
      %1081 = vmatprep.subr.bf16.mxu0 0
      %1082 = vmatpush2.bf16.msra.mxu0 0
      %1083 = vmatprep.subr.bf16.mxu0 0
      %1084 = vmatpush2.bf16.msra.mxu0 0
      %1085 = vmatprep.mubr.bf16.mxu0 0
      %1086 = vmatmul.mubr.bf16.gmra.mxu0 %v1042
      %v1087 = vpop.f32.mrf.mxu0
      %v1088 = vadd.f32 0.0, %v1087
      %v1089 = vpop.f32.mrf.mxu0
      %v1090 = vadd.f32 0.0, %v1089
      %v1091 = vpop.f32.mrf.mxu0
      %v1092 = vpop.f32.mrf.mxu0
      %1093 = vdwg.mxu0
      %1094 = vmatprep.subr.bf16.mxu0 0
      %1095 = vmatpush1.bf16.msra.mxu0 0
      %1096 = vmatprep.subr.bf16.mxu0 0
      %1097 = vmatpush1.bf16.msra.mxu0 0
      %1098 = vmatprep.subr.bf16.mxu0 0
      %1099 = vmatpush1.bf16.msra.mxu0 0
      %1100 = vmatprep.subr.bf16.mxu0 0
      %1101 = vmatpush1.bf16.msra.mxu0 0
      %1102 = vmatprep.subr.bf16.mxu0 0
      %1103 = vmatpush1.bf16.msra.mxu0 0
      %1104 = vmatprep.subr.bf16.mxu0 0
      %1105 = vmatpush1.bf16.msra.mxu0 0
      %1106 = vmatprep.subr.bf16.mxu0 0
      %1107 = vmatpush1.bf16.msra.mxu0 0
      %1108 = vmatprep.subr.bf16.mxu0 0
      %1109 = vmatpush1.bf16.msra.mxu0 %v1051
      %1110 = vmatprep.subr.bf16.mxu0 0
      %1111 = vmatpush2.bf16.msra.mxu0 0
      %1112 = vmatprep.subr.bf16.mxu0 0
      %1113 = vmatpush2.bf16.msra.mxu0 0
      %1114 = vmatprep.subr.bf16.mxu0 0
      %1115 = vmatpush2.bf16.msra.mxu0 0
      %1116 = vmatprep.subr.bf16.mxu0 0
      %1117 = vmatpush2.bf16.msra.mxu0 0
      %1118 = vmatprep.subr.bf16.mxu0 0
      %1119 = vmatpush2.bf16.msra.mxu0 0
      %1120 = vmatprep.subr.bf16.mxu0 0
      %1121 = vmatpush2.bf16.msra.mxu0 0
      %1122 = vmatprep.subr.bf16.mxu0 0
      %1123 = vmatpush2.bf16.msra.mxu0 0
      %1124 = vmatprep.subr.bf16.mxu0 0
      %1125 = vmatpush2.bf16.msra.mxu0 0
      %1126 = vmatprep.mubr.bf16.mxu0 0
      %1127 = vmatmul.mubr.bf16.gmra.mxu0 %v1042
      %v1128 = vpop.f32.mrf.mxu0
      %v1129 = vadd.f32 0.0, %v1128
      %v1130 = vpop.f32.mrf.mxu0
      %v1131 = vpop.f32.mrf.mxu0
      %v1132 = vpop.f32.mrf.mxu0
      %1133 = vdwg.mxu0
      %v1134 = vadd.f32 %v1009, %v1088
      %v1135 = vadd.f32 %v1010, %v1090
      %v1136 = vadd.f32 %v1011, %v1129
      %s1137 = scalar_lea.vmem %s1, 14
      %v1138 = vld [vmem:[%s1137] sm:$0x3]
      %v1139 = vld [vmem:[%s273] sm:$0x3f]
      %v1141 = vcombine.high %v1139, %v1139
      %v1143 = vunpack.c.l.s4 1983009808
      %v1144 = vunpack.c.0.s8 %v1143
      %v1145 = vlaneseq
      %v1146 = vshrl.u32 %v1145, 7
      %v1147 = vsub.s32 %v1144, %v1146
      %v1148 = vrot.slane %v1139, %v1147
      %v1150 = vunpack.c.l.s4 1983009808
      %v1151 = vunpack.c.0.s8 %v1150
      %v1152 = vlaneseq
      %v1153 = vshrl.u32 %v1152, 7
      %v1154 = vsub.s32 %v1151, %v1153
      %v1155 = vrot.slane %v1141, %v1154
      %v1156 = vcombine.high %v1148, %v1148
      %1157 = vrot.lane.b32.xlu0 %v1148, 74
      %v1158 = vpop.permute.xlu0 %1157
      %1159 = vrot.lane.b32.xlu0 %v1156, 74
      %v1160 = vpop.permute.xlu0 %1159
      %1161 = vrot.lane.b32.xlu0 %v1155, 74
      %v1162 = vpop.permute.xlu0 %1161
      %vm1163 = vcmask 605184
      %v1164 = vsel %vm1163, %v1158, %v1160
      %v1165 = vsel %vm1163, %v1160, %v1162
      %v1167 = vsel %vm315, %v1138, 0
      %v1170 = vsel %vm319, %v1164, 0
      %v1173 = vsel %vm319, %v1165, 0
      %v1176 = vsel %vm319, %v1162, 0
      %1178 = vmatprep.subr.bf16.mxu0 0
      %1179 = vmatpush1.bf16.msra.mxu0 0
      %1180 = vmatprep.subr.bf16.mxu0 0
      %1181 = vmatpush1.bf16.msra.mxu0 0
      %1182 = vmatprep.subr.bf16.mxu0 0
      %1183 = vmatpush1.bf16.msra.mxu0 0
      %1184 = vmatprep.subr.bf16.mxu0 0
      %1185 = vmatpush1.bf16.msra.mxu0 0
      %1186 = vmatprep.subr.bf16.mxu0 0
      %1187 = vmatpush1.bf16.msra.mxu0 0
      %1188 = vmatprep.subr.bf16.mxu0 0
      %1189 = vmatpush1.bf16.msra.mxu0 0
      %1190 = vmatprep.subr.bf16.mxu0 0
      %1191 = vmatpush1.bf16.msra.mxu0 0
      %1192 = vmatprep.subr.bf16.mxu0 %v1173
      %1193 = vmatpush1.bf16.msra.mxu0 %v1170
      %1194 = vmatprep.subr.bf16.mxu0 0
      %1195 = vmatpush2.bf16.msra.mxu0 0
      %1196 = vmatprep.subr.bf16.mxu0 0
      %1197 = vmatpush2.bf16.msra.mxu0 0
      %1198 = vmatprep.subr.bf16.mxu0 0
      %1199 = vmatpush2.bf16.msra.mxu0 0
      %1200 = vmatprep.subr.bf16.mxu0 0
      %1201 = vmatpush2.bf16.msra.mxu0 0
      %1202 = vmatprep.subr.bf16.mxu0 0
      %1203 = vmatpush2.bf16.msra.mxu0 0
      %1204 = vmatprep.subr.bf16.mxu0 0
      %1205 = vmatpush2.bf16.msra.mxu0 0
      %1206 = vmatprep.subr.bf16.mxu0 0
      %1207 = vmatpush2.bf16.msra.mxu0 0
      %1208 = vmatprep.subr.bf16.mxu0 0
      %1209 = vmatpush2.bf16.msra.mxu0 0
      %1210 = vmatprep.mubr.bf16.mxu0 0
      %1211 = vmatmul.mubr.bf16.gmra.mxu0 %v1167
      %v1212 = vpop.f32.mrf.mxu0
      %v1213 = vadd.f32 0.0, %v1212
      %v1214 = vpop.f32.mrf.mxu0
      %v1215 = vadd.f32 0.0, %v1214
      %v1216 = vpop.f32.mrf.mxu0
      %v1217 = vpop.f32.mrf.mxu0
      %1218 = vdwg.mxu0
      %1219 = vmatprep.subr.bf16.mxu0 0
      %1220 = vmatpush1.bf16.msra.mxu0 0
      %1221 = vmatprep.subr.bf16.mxu0 0
      %1222 = vmatpush1.bf16.msra.mxu0 0
      %1223 = vmatprep.subr.bf16.mxu0 0
      %1224 = vmatpush1.bf16.msra.mxu0 0
      %1225 = vmatprep.subr.bf16.mxu0 0
      %1226 = vmatpush1.bf16.msra.mxu0 0
      %1227 = vmatprep.subr.bf16.mxu0 0
      %1228 = vmatpush1.bf16.msra.mxu0 0
      %1229 = vmatprep.subr.bf16.mxu0 0
      %1230 = vmatpush1.bf16.msra.mxu0 0
      %1231 = vmatprep.subr.bf16.mxu0 0
      %1232 = vmatpush1.bf16.msra.mxu0 0
      %1233 = vmatprep.subr.bf16.mxu0 0
      %1234 = vmatpush1.bf16.msra.mxu0 %v1176
      %1235 = vmatprep.subr.bf16.mxu0 0
      %1236 = vmatpush2.bf16.msra.mxu0 0
      %1237 = vmatprep.subr.bf16.mxu0 0
      %1238 = vmatpush2.bf16.msra.mxu0 0
      %1239 = vmatprep.subr.bf16.mxu0 0
      %1240 = vmatpush2.bf16.msra.mxu0 0
      %1241 = vmatprep.subr.bf16.mxu0 0
      %1242 = vmatpush2.bf16.msra.mxu0 0
      %1243 = vmatprep.subr.bf16.mxu0 0
      %1244 = vmatpush2.bf16.msra.mxu0 0
      %1245 = vmatprep.subr.bf16.mxu0 0
      %1246 = vmatpush2.bf16.msra.mxu0 0
      %1247 = vmatprep.subr.bf16.mxu0 0
      %1248 = vmatpush2.bf16.msra.mxu0 0
      %1249 = vmatprep.subr.bf16.mxu0 0
      %1250 = vmatpush2.bf16.msra.mxu0 0
      %1251 = vmatprep.mubr.bf16.mxu0 0
      %1252 = vmatmul.mubr.bf16.gmra.mxu0 %v1167
      %v1253 = vpop.f32.mrf.mxu0
      %v1254 = vadd.f32 0.0, %v1253
      %v1255 = vpop.f32.mrf.mxu0
      %v1256 = vpop.f32.mrf.mxu0
      %v1257 = vpop.f32.mrf.mxu0
      %1258 = vdwg.mxu0
      %v1259 = vadd.f32 %v1134, %v1213
      %v1260 = vadd.f32 %v1135, %v1215
      %v1261 = vadd.f32 %v1136, %v1254
      %s1262 = scalar_lea.vmem %s1, 16
      %v1263 = vld [vmem:[%s1262] sm:$0x3]
      %v1264 = vld [vmem:[%s273] sm:$0x3f]
      %v1266 = vcombine.high %v1264, %v1264
      %v1268 = vunpack.c.l.s4 1983009808
      %v1269 = vunpack.c.0.s8 %v1268
      %v1270 = vlaneseq
      %v1271 = vshrl.u32 %v1270, 7
      %v1272 = vsub.s32 %v1269, %v1271
      %v1273 = vrot.slane %v1264, %v1272
      %v1275 = vunpack.c.l.s4 1983009808
      %v1276 = vunpack.c.0.s8 %v1275
      %v1277 = vlaneseq
      %v1278 = vshrl.u32 %v1277, 7
      %v1279 = vsub.s32 %v1276, %v1278
      %v1280 = vrot.slane %v1266, %v1279
      %v1281 = vcombine.high %v1273, %v1273
      %1282 = vrot.lane.b32.xlu0 %v1273, 73
      %v1283 = vpop.permute.xlu0 %1282
      %1284 = vrot.lane.b32.xlu0 %v1281, 73
      %v1285 = vpop.permute.xlu0 %1284
      %1286 = vrot.lane.b32.xlu0 %v1280, 73
      %v1287 = vpop.permute.xlu0 %1286
      %vm1288 = vcmask 596992
      %v1289 = vsel %vm1288, %v1283, %v1285
      %v1290 = vsel %vm1288, %v1285, %v1287
      %v1292 = vsel %vm315, %v1263, 0
      %v1295 = vsel %vm319, %v1289, 0
      %v1298 = vsel %vm319, %v1290, 0
      %v1301 = vsel %vm319, %v1287, 0
      %1303 = vmatprep.subr.bf16.mxu0 0
      %1304 = vmatpush1.bf16.msra.mxu0 0
      %1305 = vmatprep.subr.bf16.mxu0 0
      %1306 = vmatpush1.bf16.msra.mxu0 0
      %1307 = vmatprep.subr.bf16.mxu0 0
      %1308 = vmatpush1.bf16.msra.mxu0 0
      %1309 = vmatprep.subr.bf16.mxu0 0
      %1310 = vmatpush1.bf16.msra.mxu0 0
      %1311 = vmatprep.subr.bf16.mxu0 0
      %1312 = vmatpush1.bf16.msra.mxu0 0
      %1313 = vmatprep.subr.bf16.mxu0 0
      %1314 = vmatpush1.bf16.msra.mxu0 0
      %1315 = vmatprep.subr.bf16.mxu0 0
      %1316 = vmatpush1.bf16.msra.mxu0 0
      %1317 = vmatprep.subr.bf16.mxu0 %v1298
      %1318 = vmatpush1.bf16.msra.mxu0 %v1295
      %1319 = vmatprep.subr.bf16.mxu0 0
      %1320 = vmatpush2.bf16.msra.mxu0 0
      %1321 = vmatprep.subr.bf16.mxu0 0
      %1322 = vmatpush2.bf16.msra.mxu0 0
      %1323 = vmatprep.subr.bf16.mxu0 0
      %1324 = vmatpush2.bf16.msra.mxu0 0
      %1325 = vmatprep.subr.bf16.mxu0 0
      %1326 = vmatpush2.bf16.msra.mxu0 0
      %1327 = vmatprep.subr.bf16.mxu0 0
      %1328 = vmatpush2.bf16.msra.mxu0 0
      %1329 = vmatprep.subr.bf16.mxu0 0
      %1330 = vmatpush2.bf16.msra.mxu0 0
      %1331 = vmatprep.subr.bf16.mxu0 0
      %1332 = vmatpush2.bf16.msra.mxu0 0
      %1333 = vmatprep.subr.bf16.mxu0 0
      %1334 = vmatpush2.bf16.msra.mxu0 0
      %1335 = vmatprep.mubr.bf16.mxu0 0
      %1336 = vmatmul.mubr.bf16.gmra.mxu0 %v1292
      %v1337 = vpop.f32.mrf.mxu0
      %v1338 = vadd.f32 0.0, %v1337
      %v1339 = vpop.f32.mrf.mxu0
      %v1340 = vadd.f32 0.0, %v1339
      %v1341 = vpop.f32.mrf.mxu0
      %v1342 = vpop.f32.mrf.mxu0
      %1343 = vdwg.mxu0
      %1344 = vmatprep.subr.bf16.mxu0 0
      %1345 = vmatpush1.bf16.msra.mxu0 0
      %1346 = vmatprep.subr.bf16.mxu0 0
      %1347 = vmatpush1.bf16.msra.mxu0 0
      %1348 = vmatprep.subr.bf16.mxu0 0
      %1349 = vmatpush1.bf16.msra.mxu0 0
      %1350 = vmatprep.subr.bf16.mxu0 0
      %1351 = vmatpush1.bf16.msra.mxu0 0
      %1352 = vmatprep.subr.bf16.mxu0 0
      %1353 = vmatpush1.bf16.msra.mxu0 0
      %1354 = vmatprep.subr.bf16.mxu0 0
      %1355 = vmatpush1.bf16.msra.mxu0 0
      %1356 = vmatprep.subr.bf16.mxu0 0
      %1357 = vmatpush1.bf16.msra.mxu0 0
      %1358 = vmatprep.subr.bf16.mxu0 0
      %1359 = vmatpush1.bf16.msra.mxu0 %v1301
      %1360 = vmatprep.subr.bf16.mxu0 0
      %1361 = vmatpush2.bf16.msra.mxu0 0
      %1362 = vmatprep.subr.bf16.mxu0 0
      %1363 = vmatpush2.bf16.msra.mxu0 0
      %1364 = vmatprep.subr.bf16.mxu0 0
      %1365 = vmatpush2.bf16.msra.mxu0 0
      %1366 = vmatprep.subr.bf16.mxu0 0
      %1367 = vmatpush2.bf16.msra.mxu0 0
      %1368 = vmatprep.subr.bf16.mxu0 0
      %1369 = vmatpush2.bf16.msra.mxu0 0
      %1370 = vmatprep.subr.bf16.mxu0 0
      %1371 = vmatpush2.bf16.msra.mxu0 0
      %1372 = vmatprep.subr.bf16.mxu0 0
      %1373 = vmatpush2.bf16.msra.mxu0 0
      %1374 = vmatprep.subr.bf16.mxu0 0
      %1375 = vmatpush2.bf16.msra.mxu0 0
      %1376 = vmatprep.mubr.bf16.mxu0 0
      %1377 = vmatmul.mubr.bf16.gmra.mxu0 %v1292
      %v1378 = vpop.f32.mrf.mxu0
      %v1379 = vadd.f32 0.0, %v1378
      %v1380 = vpop.f32.mrf.mxu0
      %v1381 = vpop.f32.mrf.mxu0
      %v1382 = vpop.f32.mrf.mxu0
      %1383 = vdwg.mxu0
      %v1384 = vadd.f32 %v1259, %v1338
      %v1385 = vadd.f32 %v1260, %v1340
      %v1386 = vadd.f32 %v1261, %v1379
      %v1387 = vld [vmem:[%s2] sm:$0xf]
      %1389 = vset.pattern.permute.xlu0 0
      %1390 = vperm.xlu0 %1389, %v1387
      %v1391 = vpop.permute.xlu0 %1390
      %v1393 = vadd.f32 %v1384, %v1391
      %v1394 = vadd.f32 %v1385, %v1391
      %v1395 = vadd.f32 %v1386, %v1391
      %vm1396 = vcmask 1043456
      %v1397 = vsel %vm1396, %v1393, 0.0
      %v1398 = vrot.slane %v1397, 4
      %v1399 = vadd.f32 %v1397, %v1398
      %v1400 = vrot.slane %v1399, 2
      %v1401 = vadd.f32 %v1399, %v1400
      %v1402 = vrot.slane %v1401, 1
      %v1403 = vadd.f32 %v1401, %v1402
      %v1404 = vsel %vm1396, %v1394, 0.0
      %v1405 = vrot.slane %v1404, 4
      %v1406 = vadd.f32 %v1404, %v1405
      %v1407 = vrot.slane %v1406, 2
      %v1408 = vadd.f32 %v1406, %v1407
      %v1409 = vrot.slane %v1408, 1
      %v1410 = vadd.f32 %v1408, %v1409
      %vm1411 = vcmask 257024
      %v1412 = vsel %vm1411, %v1395, 0.0
      %v1413 = vrot.slane %v1412, 4
      %v1414 = vadd.f32 %v1412, %v1413
      %v1415 = vrot.slane %v1414, 2
      %v1416 = vadd.f32 %v1414, %v1415
      %v1417 = vrot.slane %v1416, 1
      %v1418 = vadd.f32 %v1416, %v1417
      %v1419 = vrcp.pop 4.0
      %v1420 = vmul.f32 %v1403, %v1419
      %v1421 = vmul.f32 %v1410, %v1419
      %v1422 = vmul.f32 %v1418, %v1419
      %v1423 = vsub.f32 %v1393, %v1420
      %v1424 = vsub.f32 %v1394, %v1421
      %v1425 = vsub.f32 %v1395, %v1422
      %v1426 = vmul.f32 %v1423, %v1423
      %v1427 = vmul.f32 %v1424, %v1424
      %v1428 = vmul.f32 %v1425, %v1425
      %v1429 = vsel %vm1396, %v1426, 0.0
      %v1430 = vrot.slane %v1429, 4
      %v1431 = vadd.f32 %v1429, %v1430
      %v1432 = vrot.slane %v1431, 2
      %v1433 = vadd.f32 %v1431, %v1432
      %v1434 = vrot.slane %v1433, 1
      %v1435 = vadd.f32 %v1433, %v1434
      %v1436 = vsel %vm1396, %v1427, 0.0
      %v1437 = vrot.slane %v1436, 4
      %v1438 = vadd.f32 %v1436, %v1437
      %v1439 = vrot.slane %v1438, 2
      %v1440 = vadd.f32 %v1438, %v1439
      %v1441 = vrot.slane %v1440, 1
      %v1442 = vadd.f32 %v1440, %v1441
      %v1443 = vsel %vm1411, %v1428, 0.0
      %v1444 = vrot.slane %v1443, 4
      %v1445 = vadd.f32 %v1443, %v1444
      %v1446 = vrot.slane %v1445, 2
      %v1447 = vadd.f32 %v1445, %v1446
      %v1448 = vrot.slane %v1447, 1
      %v1449 = vadd.f32 %v1447, %v1448
      %v1450 = vmul.f32 %v1435, %v1419
      %v1451 = vmul.f32 %v1442, %v1419
      %v1452 = vmul.f32 %v1449, %v1419
      %v1453 = vadd.f32 %v1450, 1e-05
      %v1454 = vadd.f32 %v1451, 1e-05
      %v1455 = vadd.f32 %v1452, 1e-05
      %v1456 = vrsqrt.pop %v1453
      %v1457 = vrsqrt.pop %v1454
      %v1458 = vrsqrt.pop %v1455
      %v1459 = vmul.f32 %v1423, %v1456
      %v1460 = vmul.f32 %v1424, %v1457
      %v1461 = vmul.f32 %v1425, %v1458
      %1462 = vset.pattern.permute.xlu0 1
      %1463 = vperm.xlu0 %1462, %v1387
      %v1464 = vpop.permute.xlu0 %1463
      %v1466 = vmul.f32 %v1459, %v1464
      %v1467 = vmul.f32 %v1460, %v1464
      %v1468 = vmul.f32 %v1461, %v1464
      %1469 = vset.pattern.permute.xlu0 2
      %1470 = vperm.xlu0 %1469, %v1387
      %v1471 = vpop.permute.xlu0 %1470
      %v1473 = vadd.f32 %v1466, %v1471
      %v1474 = vadd.f32 %v1467, %v1471
      %v1475 = vadd.f32 %v1468, %v1471
      %v1476 = vmul.f32 %v1473, 0.5
      %v1477 = vmul.f32 %v1474, 0.5
      %v1478 = vmul.f32 %v1475, 0.5
      %v1479 = vmul.f32 %v1473, 0.044715
      %v1480 = vmul.f32 %v1474, 0.044715
      %v1481 = vmul.f32 %v1475, 0.044715
      %v1482 = vmul.f32 %v1479, %v1473
      %v1483 = vmul.f32 %v1480, %v1474
      %v1484 = vmul.f32 %v1481, %v1475
      %v1485 = vmul.f32 %v1482, %v1473
      %v1486 = vmul.f32 %v1483, %v1474
      %v1487 = vmul.f32 %v1484, %v1475
      %v1488 = vadd.f32 %v1473, %v1485
      %v1489 = vadd.f32 %v1474, %v1486
      %v1490 = vadd.f32 %v1475, %v1487
      %v1491 = vmul.f32 %v1488, 0.7978846
      %v1492 = vmul.f32 %v1489, 0.7978846
      %v1493 = vmul.f32 %v1490, 0.7978846
      %v1494 = vtanh.pop %v1491
      %v1495 = vtanh.pop %v1492
      %v1496 = vtanh.pop %v1493
      %v1497 = vadd.f32 %v1494, 1.0
      %v1498 = vadd.f32 %v1495, 1.0
      %v1499 = vadd.f32 %v1496, 1.0
      %v1500 = vmul.f32 %v1476, %v1497
      %v1501 = vmul.f32 %v1477, %v1498
      %v1502 = vmul.f32 %v1478, %v1499
      %v1504 = vlaneseq
      %v1505 = vshrl.u32 %v1504, 7
      %v1506 = vsub.s32 0, %v1505
      %v1507 = vrot.slane %v284, %v1506
      %v1508 = vlaneseq
      %v1509 = vshrl.u32 %v1508, 7
      %v1510 = vsub.s32 1, %v1509
      %v1511 = vrot.slane %v284, %v1510
      %v1512 = vlaneseq
      %v1513 = vshrl.u32 %v1512, 7
      %v1514 = vsub.s32 2, %v1513
      %v1515 = vrot.slane %v284, %v1514
      %v1519 = vmul.f32 %v1500, %v1507
      %v1520 = vmul.f32 %v1501, %v1511
      %v1521 = vmul.f32 %v1502, %v1515
      %v1522 = vpack.c.bf16 %v1519, %v1519
      %v1523 = vpack.c.bf16 %v1520, %v1520
      %v1524 = vpack.c.bf16 %v1521, %v1521
      %v1528 = vcombine.low %v1522, %v1523
      %v1530 = vunpack.c.l.s4 1983009808
      %v1531 = vunpack.c.0.s8 %v1530
      %v1532 = vlaneseq
      %v1533 = vshrl.u32 %v1532, 7
      %v1534 = vsub.s32 %v1531, %v1533
      %v1535 = vrot.slane %v1528, %v1534
      %v1537 = vunpack.c.l.s4 1983009808
      %v1538 = vunpack.c.0.s8 %v1537
      %v1539 = vlaneseq
      %v1540 = vshrl.u32 %v1539, 7
      %v1541 = vsub.s32 %v1538, %v1540
      %v1542 = vrot.slane %v1524, %v1541
      %v1543 = vcombine.low %v1535, %v1542
      %1544 = vrot.lane.b32.xlu0 %v1543, 36
      %v1545 = vpop.permute.xlu0 %1544
      %v1546 = vrot.slane %v1545, 6
      %vm1547 = vcmask 293888
      %v1548 = vsel %vm1547, %v1546, %v1545
      %vm1550 = vcmask 1041696
      %vm1551 = vcmask 1043458
      %vm1552 = vmor %vm1551, %vm1550
      %vm1553 = vcmask 553988
      %vm1554 = vmor %vm1553, %vm1552
      %1555 = vst.msk [vmem:[#allocation2] sm:$0x3f] %vm1554, %v1548
      %v1556 = vld [vmem:[%s3] sm:$0xf]
      %v1557 = vld [vmem:[#allocation2] sm:$0x3f]
      %s1558 = scalar_lea.vmem %s3, 4
      %v1559 = vld [vmem:[%s1558] sm:$0xf]
      %v1561 = vcombine.high %v1557, %v1557
      %v1563 = vunpack.c.l.s4 1983009808
      %v1564 = vunpack.c.0.s8 %v1563
      %v1565 = vlaneseq
      %v1566 = vshrl.u32 %v1565, 7
      %v1567 = vsub.s32 %v1564, %v1566
      %v1568 = vrot.slane %v1557, %v1567
      %v1570 = vunpack.c.l.s4 1983009808
      %v1571 = vunpack.c.0.s8 %v1570
      %v1572 = vlaneseq
      %v1573 = vshrl.u32 %v1572, 7
      %v1574 = vsub.s32 %v1571, %v1573
      %v1575 = vrot.slane %v1561, %v1574
      %v1576 = vcombine.high %v1568, %v1568
      %1577 = vrot.lane.b32.xlu0 %v1568, 110
      %v1578 = vpop.permute.xlu0 %1577
      %1579 = vrot.lane.b32.xlu0 %v1576, 110
      %v1580 = vpop.permute.xlu0 %1579
      %1581 = vrot.lane.b32.xlu0 %v1575, 110
      %v1582 = vpop.permute.xlu0 %1581
      %v1583 = vsel %vm312, %v1578, %v1580
      %v1584 = vsel %vm312, %v1580, %v1582
      %v1586 = vsel %vm315, %v1559, 0
      %v1589 = vsel %vm319, %v1583, 0
      %v1592 = vsel %vm319, %v1584, 0
      %v1595 = vsel %vm319, %v1582, 0
      %1597 = vmatprep.subr.bf16.mxu0 0
      %1598 = vmatpush1.bf16.msra.mxu0 0
      %1599 = vmatprep.subr.bf16.mxu0 0
      %1600 = vmatpush1.bf16.msra.mxu0 0
      %1601 = vmatprep.subr.bf16.mxu0 0
      %1602 = vmatpush1.bf16.msra.mxu0 0
      %1603 = vmatprep.subr.bf16.mxu0 0
      %1604 = vmatpush1.bf16.msra.mxu0 0
      %1605 = vmatprep.subr.bf16.mxu0 0
      %1606 = vmatpush1.bf16.msra.mxu0 0
      %1607 = vmatprep.subr.bf16.mxu0 0
      %1608 = vmatpush1.bf16.msra.mxu0 0
      %1609 = vmatprep.subr.bf16.mxu0 0
      %1610 = vmatpush1.bf16.msra.mxu0 0
      %1611 = vmatprep.subr.bf16.mxu0 %v1592
      %1612 = vmatpush1.bf16.msra.mxu0 %v1589
      %1613 = vmatprep.subr.bf16.mxu0 0
      %1614 = vmatpush2.bf16.msra.mxu0 0
      %1615 = vmatprep.subr.bf16.mxu0 0
      %1616 = vmatpush2.bf16.msra.mxu0 0
      %1617 = vmatprep.subr.bf16.mxu0 0
      %1618 = vmatpush2.bf16.msra.mxu0 0
      %1619 = vmatprep.subr.bf16.mxu0 0
      %1620 = vmatpush2.bf16.msra.mxu0 0
      %1621 = vmatprep.subr.bf16.mxu0 0
      %1622 = vmatpush2.bf16.msra.mxu0 0
      %1623 = vmatprep.subr.bf16.mxu0 0
      %1624 = vmatpush2.bf16.msra.mxu0 0
      %1625 = vmatprep.subr.bf16.mxu0 0
      %1626 = vmatpush2.bf16.msra.mxu0 0
      %1627 = vmatprep.subr.bf16.mxu0 0
      %1628 = vmatpush2.bf16.msra.mxu0 0
      %1629 = vmatprep.mubr.bf16.mxu0 0
      %1630 = vmatmul.mubr.bf16.gmra.mxu0 %v1586
      %v1631 = vpop.f32.mrf.mxu0
      %v1632 = vadd.f32 0.0, %v1631
      %v1633 = vpop.f32.mrf.mxu0
      %v1634 = vadd.f32 0.0, %v1633
      %v1635 = vpop.f32.mrf.mxu0
      %v1636 = vpop.f32.mrf.mxu0
      %1637 = vdwg.mxu0
      %1638 = vmatprep.subr.bf16.mxu0 0
      %1639 = vmatpush1.bf16.msra.mxu0 0
      %1640 = vmatprep.subr.bf16.mxu0 0
      %1641 = vmatpush1.bf16.msra.mxu0 0
      %1642 = vmatprep.subr.bf16.mxu0 0
      %1643 = vmatpush1.bf16.msra.mxu0 0
      %1644 = vmatprep.subr.bf16.mxu0 0
      %1645 = vmatpush1.bf16.msra.mxu0 0
      %1646 = vmatprep.subr.bf16.mxu0 0
      %1647 = vmatpush1.bf16.msra.mxu0 0
      %1648 = vmatprep.subr.bf16.mxu0 0
      %1649 = vmatpush1.bf16.msra.mxu0 0
      %1650 = vmatprep.subr.bf16.mxu0 0
      %1651 = vmatpush1.bf16.msra.mxu0 0
      %1652 = vmatprep.subr.bf16.mxu0 0
      %1653 = vmatpush1.bf16.msra.mxu0 %v1595
      %1654 = vmatprep.subr.bf16.mxu0 0
      %1655 = vmatpush2.bf16.msra.mxu0 0
      %1656 = vmatprep.subr.bf16.mxu0 0
      %1657 = vmatpush2.bf16.msra.mxu0 0
      %1658 = vmatprep.subr.bf16.mxu0 0
      %1659 = vmatpush2.bf16.msra.mxu0 0
      %1660 = vmatprep.subr.bf16.mxu0 0
      %1661 = vmatpush2.bf16.msra.mxu0 0
      %1662 = vmatprep.subr.bf16.mxu0 0
      %1663 = vmatpush2.bf16.msra.mxu0 0
      %1664 = vmatprep.subr.bf16.mxu0 0
      %1665 = vmatpush2.bf16.msra.mxu0 0
      %1666 = vmatprep.subr.bf16.mxu0 0
      %1667 = vmatpush2.bf16.msra.mxu0 0
      %1668 = vmatprep.subr.bf16.mxu0 0
      %1669 = vmatpush2.bf16.msra.mxu0 0
      %1670 = vmatprep.mubr.bf16.mxu0 0
      %1671 = vmatmul.mubr.bf16.gmra.mxu0 %v1586
      %v1672 = vpop.f32.mrf.mxu0
      %v1673 = vadd.f32 0.0, %v1672
      %v1674 = vpop.f32.mrf.mxu0
      %v1675 = vpop.f32.mrf.mxu0
      %v1676 = vpop.f32.mrf.mxu0
      %1677 = vdwg.mxu0
      %1678 = vrot.lane.b32.xlu0 %v1568, 111
      %v1679 = vpop.permute.xlu0 %1678
      %1680 = vrot.lane.b32.xlu0 %v1576, 111
      %v1681 = vpop.permute.xlu0 %1680
      %1682 = vrot.lane.b32.xlu0 %v1575, 111
      %v1683 = vpop.permute.xlu0 %1682
      %v1684 = vsel %vm416, %v1679, %v1681
      %v1685 = vsel %vm416, %v1681, %v1683
      %v1687 = vsel %vm315, %v1556, 0
      %v1690 = vsel %vm319, %v1684, 0
      %v1693 = vsel %vm319, %v1685, 0
      %v1696 = vsel %vm319, %v1683, 0
      %1698 = vmatprep.subr.bf16.mxu0 0
      %1699 = vmatpush1.bf16.msra.mxu0 0
      %1700 = vmatprep.subr.bf16.mxu0 0
      %1701 = vmatpush1.bf16.msra.mxu0 0
      %1702 = vmatprep.subr.bf16.mxu0 0
      %1703 = vmatpush1.bf16.msra.mxu0 0
      %1704 = vmatprep.subr.bf16.mxu0 0
      %1705 = vmatpush1.bf16.msra.mxu0 0
      %1706 = vmatprep.subr.bf16.mxu0 0
      %1707 = vmatpush1.bf16.msra.mxu0 0
      %1708 = vmatprep.subr.bf16.mxu0 0
      %1709 = vmatpush1.bf16.msra.mxu0 0
      %1710 = vmatprep.subr.bf16.mxu0 0
      %1711 = vmatpush1.bf16.msra.mxu0 0
      %1712 = vmatprep.subr.bf16.mxu0 %v1693
      %1713 = vmatpush1.bf16.msra.mxu0 %v1690
      %1714 = vmatprep.subr.bf16.mxu0 0
      %1715 = vmatpush2.bf16.msra.mxu0 0
      %1716 = vmatprep.subr.bf16.mxu0 0
      %1717 = vmatpush2.bf16.msra.mxu0 0
      %1718 = vmatprep.subr.bf16.mxu0 0
      %1719 = vmatpush2.bf16.msra.mxu0 0
      %1720 = vmatprep.subr.bf16.mxu0 0
      %1721 = vmatpush2.bf16.msra.mxu0 0
      %1722 = vmatprep.subr.bf16.mxu0 0
      %1723 = vmatpush2.bf16.msra.mxu0 0
      %1724 = vmatprep.subr.bf16.mxu0 0
      %1725 = vmatpush2.bf16.msra.mxu0 0
      %1726 = vmatprep.subr.bf16.mxu0 0
      %1727 = vmatpush2.bf16.msra.mxu0 0
      %1728 = vmatprep.subr.bf16.mxu0 0
      %1729 = vmatpush2.bf16.msra.mxu0 0
      %1730 = vmatprep.mubr.bf16.mxu0 0
      %1731 = vmatmul.mubr.bf16.gmra.mxu0 %v1687
      %v1732 = vpop.f32.mrf.mxu0
      %v1733 = vadd.f32 %v1632, %v1732
      %v1734 = vpop.f32.mrf.mxu0
      %v1735 = vadd.f32 %v1634, %v1734
      %v1736 = vpop.f32.mrf.mxu0
      %v1737 = vpop.f32.mrf.mxu0
      %1738 = vdwg.mxu0
      %1739 = vmatprep.subr.bf16.mxu0 0
      %1740 = vmatpush1.bf16.msra.mxu0 0
      %1741 = vmatprep.subr.bf16.mxu0 0
      %1742 = vmatpush1.bf16.msra.mxu0 0
      %1743 = vmatprep.subr.bf16.mxu0 0
      %1744 = vmatpush1.bf16.msra.mxu0 0
      %1745 = vmatprep.subr.bf16.mxu0 0
      %1746 = vmatpush1.bf16.msra.mxu0 0
      %1747 = vmatprep.subr.bf16.mxu0 0
      %1748 = vmatpush1.bf16.msra.mxu0 0
      %1749 = vmatprep.subr.bf16.mxu0 0
      %1750 = vmatpush1.bf16.msra.mxu0 0
      %1751 = vmatprep.subr.bf16.mxu0 0
      %1752 = vmatpush1.bf16.msra.mxu0 0
      %1753 = vmatprep.subr.bf16.mxu0 0
      %1754 = vmatpush1.bf16.msra.mxu0 %v1696
      %1755 = vmatprep.subr.bf16.mxu0 0
      %1756 = vmatpush2.bf16.msra.mxu0 0
      %1757 = vmatprep.subr.bf16.mxu0 0
      %1758 = vmatpush2.bf16.msra.mxu0 0
      %1759 = vmatprep.subr.bf16.mxu0 0
      %1760 = vmatpush2.bf16.msra.mxu0 0
      %1761 = vmatprep.subr.bf16.mxu0 0
      %1762 = vmatpush2.bf16.msra.mxu0 0
      %1763 = vmatprep.subr.bf16.mxu0 0
      %1764 = vmatpush2.bf16.msra.mxu0 0
      %1765 = vmatprep.subr.bf16.mxu0 0
      %1766 = vmatpush2.bf16.msra.mxu0 0
      %1767 = vmatprep.subr.bf16.mxu0 0
      %1768 = vmatpush2.bf16.msra.mxu0 0
      %1769 = vmatprep.subr.bf16.mxu0 0
      %1770 = vmatpush2.bf16.msra.mxu0 0
      %1771 = vmatprep.mubr.bf16.mxu0 0
      %1772 = vmatmul.mubr.bf16.gmra.mxu0 %v1687
      %v1773 = vpop.f32.mrf.mxu0
      %v1774 = vadd.f32 %v1673, %v1773
      %v1775 = vpop.f32.mrf.mxu0
      %v1776 = vpop.f32.mrf.mxu0
      %v1777 = vpop.f32.mrf.mxu0
      %1778 = vdwg.mxu0
      %s1779 = scalar_lea.vmem %s3, 8
      %v1780 = vld [vmem:[%s1779] sm:$0xf]
      %v1781 = vld [vmem:[#allocation2] sm:$0x3f]
      %v1783 = vcombine.high %v1781, %v1781
      %v1785 = vunpack.c.l.s4 1983009808
      %v1786 = vunpack.c.0.s8 %v1785
      %v1787 = vlaneseq
      %v1788 = vshrl.u32 %v1787, 7
      %v1789 = vsub.s32 %v1786, %v1788
      %v1790 = vrot.slane %v1781, %v1789
      %v1792 = vunpack.c.l.s4 1983009808
      %v1793 = vunpack.c.0.s8 %v1792
      %v1794 = vlaneseq
      %v1795 = vshrl.u32 %v1794, 7
      %v1796 = vsub.s32 %v1793, %v1795
      %v1797 = vrot.slane %v1783, %v1796
      %v1798 = vcombine.high %v1790, %v1790
      %1799 = vrot.lane.b32.xlu0 %v1790, 109
      %v1800 = vpop.permute.xlu0 %1799
      %1801 = vrot.lane.b32.xlu0 %v1798, 109
      %v1802 = vpop.permute.xlu0 %1801
      %1803 = vrot.lane.b32.xlu0 %v1797, 109
      %v1804 = vpop.permute.xlu0 %1803
      %v1805 = vsel %vm538, %v1800, %v1802
      %v1806 = vsel %vm538, %v1802, %v1804
      %v1808 = vsel %vm315, %v1780, 0
      %v1811 = vsel %vm319, %v1805, 0
      %v1814 = vsel %vm319, %v1806, 0
      %v1817 = vsel %vm319, %v1804, 0
      %1819 = vmatprep.subr.bf16.mxu0 0
      %1820 = vmatpush1.bf16.msra.mxu0 0
      %1821 = vmatprep.subr.bf16.mxu0 0
      %1822 = vmatpush1.bf16.msra.mxu0 0
      %1823 = vmatprep.subr.bf16.mxu0 0
      %1824 = vmatpush1.bf16.msra.mxu0 0
      %1825 = vmatprep.subr.bf16.mxu0 0
      %1826 = vmatpush1.bf16.msra.mxu0 0
      %1827 = vmatprep.subr.bf16.mxu0 0
      %1828 = vmatpush1.bf16.msra.mxu0 0
      %1829 = vmatprep.subr.bf16.mxu0 0
      %1830 = vmatpush1.bf16.msra.mxu0 0
      %1831 = vmatprep.subr.bf16.mxu0 0
      %1832 = vmatpush1.bf16.msra.mxu0 0
      %1833 = vmatprep.subr.bf16.mxu0 %v1814
      %1834 = vmatpush1.bf16.msra.mxu0 %v1811
      %1835 = vmatprep.subr.bf16.mxu0 0
      %1836 = vmatpush2.bf16.msra.mxu0 0
      %1837 = vmatprep.subr.bf16.mxu0 0
      %1838 = vmatpush2.bf16.msra.mxu0 0
      %1839 = vmatprep.subr.bf16.mxu0 0
      %1840 = vmatpush2.bf16.msra.mxu0 0
      %1841 = vmatprep.subr.bf16.mxu0 0
      %1842 = vmatpush2.bf16.msra.mxu0 0
      %1843 = vmatprep.subr.bf16.mxu0 0
      %1844 = vmatpush2.bf16.msra.mxu0 0
      %1845 = vmatprep.subr.bf16.mxu0 0
      %1846 = vmatpush2.bf16.msra.mxu0 0
      %1847 = vmatprep.subr.bf16.mxu0 0
      %1848 = vmatpush2.bf16.msra.mxu0 0
      %1849 = vmatprep.subr.bf16.mxu0 0
      %1850 = vmatpush2.bf16.msra.mxu0 0
      %1851 = vmatprep.mubr.bf16.mxu0 0
      %1852 = vmatmul.mubr.bf16.gmra.mxu0 %v1808
      %v1853 = vpop.f32.mrf.mxu0
      %v1854 = vadd.f32 0.0, %v1853
      %v1855 = vpop.f32.mrf.mxu0
      %v1856 = vadd.f32 0.0, %v1855
      %v1857 = vpop.f32.mrf.mxu0
      %v1858 = vpop.f32.mrf.mxu0
      %1859 = vdwg.mxu0
      %1860 = vmatprep.subr.bf16.mxu0 0
      %1861 = vmatpush1.bf16.msra.mxu0 0
      %1862 = vmatprep.subr.bf16.mxu0 0
      %1863 = vmatpush1.bf16.msra.mxu0 0
      %1864 = vmatprep.subr.bf16.mxu0 0
      %1865 = vmatpush1.bf16.msra.mxu0 0
      %1866 = vmatprep.subr.bf16.mxu0 0
      %1867 = vmatpush1.bf16.msra.mxu0 0
      %1868 = vmatprep.subr.bf16.mxu0 0
      %1869 = vmatpush1.bf16.msra.mxu0 0
      %1870 = vmatprep.subr.bf16.mxu0 0
      %1871 = vmatpush1.bf16.msra.mxu0 0
      %1872 = vmatprep.subr.bf16.mxu0 0
      %1873 = vmatpush1.bf16.msra.mxu0 0
      %1874 = vmatprep.subr.bf16.mxu0 0
      %1875 = vmatpush1.bf16.msra.mxu0 %v1817
      %1876 = vmatprep.subr.bf16.mxu0 0
      %1877 = vmatpush2.bf16.msra.mxu0 0
      %1878 = vmatprep.subr.bf16.mxu0 0
      %1879 = vmatpush2.bf16.msra.mxu0 0
      %1880 = vmatprep.subr.bf16.mxu0 0
      %1881 = vmatpush2.bf16.msra.mxu0 0
      %1882 = vmatprep.subr.bf16.mxu0 0
      %1883 = vmatpush2.bf16.msra.mxu0 0
      %1884 = vmatprep.subr.bf16.mxu0 0
      %1885 = vmatpush2.bf16.msra.mxu0 0
      %1886 = vmatprep.subr.bf16.mxu0 0
      %1887 = vmatpush2.bf16.msra.mxu0 0
      %1888 = vmatprep.subr.bf16.mxu0 0
      %1889 = vmatpush2.bf16.msra.mxu0 0
      %1890 = vmatprep.subr.bf16.mxu0 0
      %1891 = vmatpush2.bf16.msra.mxu0 0
      %1892 = vmatprep.mubr.bf16.mxu0 0
      %1893 = vmatmul.mubr.bf16.gmra.mxu0 %v1808
      %v1894 = vpop.f32.mrf.mxu0
      %v1895 = vadd.f32 0.0, %v1894
      %v1896 = vpop.f32.mrf.mxu0
      %v1897 = vpop.f32.mrf.mxu0
      %v1898 = vpop.f32.mrf.mxu0
      %1899 = vdwg.mxu0
      %v1900 = vadd.f32 %v1733, %v1854
      %v1901 = vadd.f32 %v1735, %v1856
      %v1902 = vadd.f32 %v1774, %v1895
      %s1903 = scalar_lea.vmem %s3, 12
      %v1904 = vld [vmem:[%s1903] sm:$0xf]
      %v1905 = vld [vmem:[#allocation2] sm:$0x3f]
      %v1907 = vcombine.high %v1905, %v1905
      %v1909 = vunpack.c.l.s4 1983009808
      %v1910 = vunpack.c.0.s8 %v1909
      %v1911 = vlaneseq
      %v1912 = vshrl.u32 %v1911, 7
      %v1913 = vsub.s32 %v1910, %v1912
      %v1914 = vrot.slane %v1905, %v1913
      %v1916 = vunpack.c.l.s4 1983009808
      %v1917 = vunpack.c.0.s8 %v1916
      %v1918 = vlaneseq
      %v1919 = vshrl.u32 %v1918, 7
      %v1920 = vsub.s32 %v1917, %v1919
      %v1921 = vrot.slane %v1907, %v1920
      %v1922 = vcombine.high %v1914, %v1914
      %1923 = vrot.lane.b32.xlu0 %v1914, 93
      %v1924 = vpop.permute.xlu0 %1923
      %1925 = vrot.lane.b32.xlu0 %v1922, 93
      %v1926 = vpop.permute.xlu0 %1925
      %1927 = vrot.lane.b32.xlu0 %v1921, 93
      %v1928 = vpop.permute.xlu0 %1927
      %v1929 = vsel %vm663, %v1924, %v1926
      %v1930 = vsel %vm663, %v1926, %v1928
      %v1932 = vsel %vm315, %v1904, 0
      %v1935 = vsel %vm319, %v1929, 0
      %v1938 = vsel %vm319, %v1930, 0
      %v1941 = vsel %vm319, %v1928, 0
      %1943 = vmatprep.subr.bf16.mxu0 0
      %1944 = vmatpush1.bf16.msra.mxu0 0
      %1945 = vmatprep.subr.bf16.mxu0 0
      %1946 = vmatpush1.bf16.msra.mxu0 0
      %1947 = vmatprep.subr.bf16.mxu0 0
      %1948 = vmatpush1.bf16.msra.mxu0 0
      %1949 = vmatprep.subr.bf16.mxu0 0
      %1950 = vmatpush1.bf16.msra.mxu0 0
      %1951 = vmatprep.subr.bf16.mxu0 0
      %1952 = vmatpush1.bf16.msra.mxu0 0
      %1953 = vmatprep.subr.bf16.mxu0 0
      %1954 = vmatpush1.bf16.msra.mxu0 0
      %1955 = vmatprep.subr.bf16.mxu0 0
      %1956 = vmatpush1.bf16.msra.mxu0 0
      %1957 = vmatprep.subr.bf16.mxu0 %v1938
      %1958 = vmatpush1.bf16.msra.mxu0 %v1935
      %1959 = vmatprep.subr.bf16.mxu0 0
      %1960 = vmatpush2.bf16.msra.mxu0 0
      %1961 = vmatprep.subr.bf16.mxu0 0
      %1962 = vmatpush2.bf16.msra.mxu0 0
      %1963 = vmatprep.subr.bf16.mxu0 0
      %1964 = vmatpush2.bf16.msra.mxu0 0
      %1965 = vmatprep.subr.bf16.mxu0 0
      %1966 = vmatpush2.bf16.msra.mxu0 0
      %1967 = vmatprep.subr.bf16.mxu0 0
      %1968 = vmatpush2.bf16.msra.mxu0 0
      %1969 = vmatprep.subr.bf16.mxu0 0
      %1970 = vmatpush2.bf16.msra.mxu0 0
      %1971 = vmatprep.subr.bf16.mxu0 0
      %1972 = vmatpush2.bf16.msra.mxu0 0
      %1973 = vmatprep.subr.bf16.mxu0 0
      %1974 = vmatpush2.bf16.msra.mxu0 0
      %1975 = vmatprep.mubr.bf16.mxu0 0
      %1976 = vmatmul.mubr.bf16.gmra.mxu0 %v1932
      %v1977 = vpop.f32.mrf.mxu0
      %v1978 = vadd.f32 0.0, %v1977
      %v1979 = vpop.f32.mrf.mxu0
      %v1980 = vadd.f32 0.0, %v1979
      %v1981 = vpop.f32.mrf.mxu0
      %v1982 = vpop.f32.mrf.mxu0
      %1983 = vdwg.mxu0
      %1984 = vmatprep.subr.bf16.mxu0 0
      %1985 = vmatpush1.bf16.msra.mxu0 0
      %1986 = vmatprep.subr.bf16.mxu0 0
      %1987 = vmatpush1.bf16.msra.mxu0 0
      %1988 = vmatprep.subr.bf16.mxu0 0
      %1989 = vmatpush1.bf16.msra.mxu0 0
      %1990 = vmatprep.subr.bf16.mxu0 0
      %1991 = vmatpush1.bf16.msra.mxu0 0
      %1992 = vmatprep.subr.bf16.mxu0 0
      %1993 = vmatpush1.bf16.msra.mxu0 0
      %1994 = vmatprep.subr.bf16.mxu0 0
      %1995 = vmatpush1.bf16.msra.mxu0 0
      %1996 = vmatprep.subr.bf16.mxu0 0
      %1997 = vmatpush1.bf16.msra.mxu0 0
      %1998 = vmatprep.subr.bf16.mxu0 0
      %1999 = vmatpush1.bf16.msra.mxu0 %v1941
      %2000 = vmatprep.subr.bf16.mxu0 0
      %2001 = vmatpush2.bf16.msra.mxu0 0
      %2002 = vmatprep.subr.bf16.mxu0 0
      %2003 = vmatpush2.bf16.msra.mxu0 0
      %2004 = vmatprep.subr.bf16.mxu0 0
      %2005 = vmatpush2.bf16.msra.mxu0 0
      %2006 = vmatprep.subr.bf16.mxu0 0
      %2007 = vmatpush2.bf16.msra.mxu0 0
      %2008 = vmatprep.subr.bf16.mxu0 0
      %2009 = vmatpush2.bf16.msra.mxu0 0
      %2010 = vmatprep.subr.bf16.mxu0 0
      %2011 = vmatpush2.bf16.msra.mxu0 0
      %2012 = vmatprep.subr.bf16.mxu0 0
      %2013 = vmatpush2.bf16.msra.mxu0 0
      %2014 = vmatprep.subr.bf16.mxu0 0
      %2015 = vmatpush2.bf16.msra.mxu0 0
      %2016 = vmatprep.mubr.bf16.mxu0 0
      %2017 = vmatmul.mubr.bf16.gmra.mxu0 %v1932
      %v2018 = vpop.f32.mrf.mxu0
      %v2019 = vadd.f32 0.0, %v2018
      %v2020 = vpop.f32.mrf.mxu0
      %v2021 = vpop.f32.mrf.mxu0
      %v2022 = vpop.f32.mrf.mxu0
      %2023 = vdwg.mxu0
      %v2024 = vadd.f32 %v1900, %v1978
      %v2025 = vadd.f32 %v1901, %v1980
      %v2026 = vadd.f32 %v1902, %v2019
      %s2027 = scalar_lea.vmem %s3, 16
      %v2028 = vld [vmem:[%s2027] sm:$0xf]
      %v2029 = vld [vmem:[#allocation2] sm:$0x3f]
      %v2031 = vcombine.high %v2029, %v2029
      %v2033 = vunpack.c.l.s4 1983009808
      %v2034 = vunpack.c.0.s8 %v2033
      %v2035 = vlaneseq
      %v2036 = vshrl.u32 %v2035, 7
      %v2037 = vsub.s32 %v2034, %v2036
      %v2038 = vrot.slane %v2029, %v2037
      %v2040 = vunpack.c.l.s4 1983009808
      %v2041 = vunpack.c.0.s8 %v2040
      %v2042 = vlaneseq
      %v2043 = vshrl.u32 %v2042, 7
      %v2044 = vsub.s32 %v2041, %v2043
      %v2045 = vrot.slane %v2031, %v2044
      %v2046 = vcombine.high %v2038, %v2038
      %2047 = vrot.lane.b32.xlu0 %v2038, 92
      %v2048 = vpop.permute.xlu0 %2047
      %2049 = vrot.lane.b32.xlu0 %v2046, 92
      %v2050 = vpop.permute.xlu0 %2049
      %2051 = vrot.lane.b32.xlu0 %v2045, 92
      %v2052 = vpop.permute.xlu0 %2051
      %v2053 = vsel %vm788, %v2048, %v2050
      %v2054 = vsel %vm788, %v2050, %v2052
      %v2056 = vsel %vm315, %v2028, 0
      %v2059 = vsel %vm319, %v2053, 0
      %v2062 = vsel %vm319, %v2054, 0
      %v2065 = vsel %vm319, %v2052, 0
      %2067 = vmatprep.subr.bf16.mxu0 0
      %2068 = vmatpush1.bf16.msra.mxu0 0
      %2069 = vmatprep.subr.bf16.mxu0 0
      %2070 = vmatpush1.bf16.msra.mxu0 0
      %2071 = vmatprep.subr.bf16.mxu0 0
      %2072 = vmatpush1.bf16.msra.mxu0 0
      %2073 = vmatprep.subr.bf16.mxu0 0
      %2074 = vmatpush1.bf16.msra.mxu0 0
      %2075 = vmatprep.subr.bf16.mxu0 0
      %2076 = vmatpush1.bf16.msra.mxu0 0
      %2077 = vmatprep.subr.bf16.mxu0 0
      %2078 = vmatpush1.bf16.msra.mxu0 0
      %2079 = vmatprep.subr.bf16.mxu0 0
      %2080 = vmatpush1.bf16.msra.mxu0 0
      %2081 = vmatprep.subr.bf16.mxu0 %v2062
      %2082 = vmatpush1.bf16.msra.mxu0 %v2059
      %2083 = vmatprep.subr.bf16.mxu0 0
      %2084 = vmatpush2.bf16.msra.mxu0 0
      %2085 = vmatprep.subr.bf16.mxu0 0
      %2086 = vmatpush2.bf16.msra.mxu0 0
      %2087 = vmatprep.subr.bf16.mxu0 0
      %2088 = vmatpush2.bf16.msra.mxu0 0
      %2089 = vmatprep.subr.bf16.mxu0 0
      %2090 = vmatpush2.bf16.msra.mxu0 0
      %2091 = vmatprep.subr.bf16.mxu0 0
      %2092 = vmatpush2.bf16.msra.mxu0 0
      %2093 = vmatprep.subr.bf16.mxu0 0
      %2094 = vmatpush2.bf16.msra.mxu0 0
      %2095 = vmatprep.subr.bf16.mxu0 0
      %2096 = vmatpush2.bf16.msra.mxu0 0
      %2097 = vmatprep.subr.bf16.mxu0 0
      %2098 = vmatpush2.bf16.msra.mxu0 0
      %2099 = vmatprep.mubr.bf16.mxu0 0
      %2100 = vmatmul.mubr.bf16.gmra.mxu0 %v2056
      %v2101 = vpop.f32.mrf.mxu0
      %v2102 = vadd.f32 0.0, %v2101
      %v2103 = vpop.f32.mrf.mxu0
      %v2104 = vadd.f32 0.0, %v2103
      %v2105 = vpop.f32.mrf.mxu0
      %v2106 = vpop.f32.mrf.mxu0
      %2107 = vdwg.mxu0
      %2108 = vmatprep.subr.bf16.mxu0 0
      %2109 = vmatpush1.bf16.msra.mxu0 0
      %2110 = vmatprep.subr.bf16.mxu0 0
      %2111 = vmatpush1.bf16.msra.mxu0 0
      %2112 = vmatprep.subr.bf16.mxu0 0
      %2113 = vmatpush1.bf16.msra.mxu0 0
      %2114 = vmatprep.subr.bf16.mxu0 0
      %2115 = vmatpush1.bf16.msra.mxu0 0
      %2116 = vmatprep.subr.bf16.mxu0 0
      %2117 = vmatpush1.bf16.msra.mxu0 0
      %2118 = vmatprep.subr.bf16.mxu0 0
      %2119 = vmatpush1.bf16.msra.mxu0 0
      %2120 = vmatprep.subr.bf16.mxu0 0
      %2121 = vmatpush1.bf16.msra.mxu0 0
      %2122 = vmatprep.subr.bf16.mxu0 0
      %2123 = vmatpush1.bf16.msra.mxu0 %v2065
      %2124 = vmatprep.subr.bf16.mxu0 0
      %2125 = vmatpush2.bf16.msra.mxu0 0
      %2126 = vmatprep.subr.bf16.mxu0 0
      %2127 = vmatpush2.bf16.msra.mxu0 0
      %2128 = vmatprep.subr.bf16.mxu0 0
      %2129 = vmatpush2.bf16.msra.mxu0 0
      %2130 = vmatprep.subr.bf16.mxu0 0
      %2131 = vmatpush2.bf16.msra.mxu0 0
      %2132 = vmatprep.subr.bf16.mxu0 0
      %2133 = vmatpush2.bf16.msra.mxu0 0
      %2134 = vmatprep.subr.bf16.mxu0 0
      %2135 = vmatpush2.bf16.msra.mxu0 0
      %2136 = vmatprep.subr.bf16.mxu0 0
      %2137 = vmatpush2.bf16.msra.mxu0 0
      %2138 = vmatprep.subr.bf16.mxu0 0
      %2139 = vmatpush2.bf16.msra.mxu0 0
      %2140 = vmatprep.mubr.bf16.mxu0 0
      %2141 = vmatmul.mubr.bf16.gmra.mxu0 %v2056
      %v2142 = vpop.f32.mrf.mxu0
      %v2143 = vadd.f32 0.0, %v2142
      %v2144 = vpop.f32.mrf.mxu0
      %v2145 = vpop.f32.mrf.mxu0
      %v2146 = vpop.f32.mrf.mxu0
      %2147 = vdwg.mxu0
      %v2148 = vadd.f32 %v2024, %v2102
      %v2149 = vadd.f32 %v2025, %v2104
      %v2150 = vadd.f32 %v2026, %v2143
      %s2151 = scalar_lea.vmem %s3, 20
      %v2152 = vld [vmem:[%s2151] sm:$0xf]
      %v2153 = vld [vmem:[#allocation2] sm:$0x3f]
      %v2155 = vcombine.high %v2153, %v2153
      %v2157 = vunpack.c.l.s4 1983009808
      %v2158 = vunpack.c.0.s8 %v2157
      %v2159 = vlaneseq
      %v2160 = vshrl.u32 %v2159, 7
      %v2161 = vsub.s32 %v2158, %v2160
      %v2162 = vrot.slane %v2153, %v2161
      %v2164 = vunpack.c.l.s4 1983009808
      %v2165 = vunpack.c.0.s8 %v2164
      %v2166 = vlaneseq
      %v2167 = vshrl.u32 %v2166, 7
      %v2168 = vsub.s32 %v2165, %v2167
      %v2169 = vrot.slane %v2155, %v2168
      %v2170 = vcombine.high %v2162, %v2162
      %2171 = vrot.lane.b32.xlu0 %v2162, 91
      %v2172 = vpop.permute.xlu0 %2171
      %2173 = vrot.lane.b32.xlu0 %v2170, 91
      %v2174 = vpop.permute.xlu0 %2173
      %2175 = vrot.lane.b32.xlu0 %v2169, 91
      %v2176 = vpop.permute.xlu0 %2175
      %v2177 = vsel %vm913, %v2172, %v2174
      %v2178 = vsel %vm913, %v2174, %v2176
      %v2180 = vsel %vm315, %v2152, 0
      %v2183 = vsel %vm319, %v2177, 0
      %v2186 = vsel %vm319, %v2178, 0
      %v2189 = vsel %vm319, %v2176, 0
      %2191 = vmatprep.subr.bf16.mxu0 0
      %2192 = vmatpush1.bf16.msra.mxu0 0
      %2193 = vmatprep.subr.bf16.mxu0 0
      %2194 = vmatpush1.bf16.msra.mxu0 0
      %2195 = vmatprep.subr.bf16.mxu0 0
      %2196 = vmatpush1.bf16.msra.mxu0 0
      %2197 = vmatprep.subr.bf16.mxu0 0
      %2198 = vmatpush1.bf16.msra.mxu0 0
      %2199 = vmatprep.subr.bf16.mxu0 0
      %2200 = vmatpush1.bf16.msra.mxu0 0
      %2201 = vmatprep.subr.bf16.mxu0 0
      %2202 = vmatpush1.bf16.msra.mxu0 0
      %2203 = vmatprep.subr.bf16.mxu0 0
      %2204 = vmatpush1.bf16.msra.mxu0 0
      %2205 = vmatprep.subr.bf16.mxu0 %v2186
      %2206 = vmatpush1.bf16.msra.mxu0 %v2183
      %2207 = vmatprep.subr.bf16.mxu0 0
      %2208 = vmatpush2.bf16.msra.mxu0 0
      %2209 = vmatprep.subr.bf16.mxu0 0
      %2210 = vmatpush2.bf16.msra.mxu0 0
      %2211 = vmatprep.subr.bf16.mxu0 0
      %2212 = vmatpush2.bf16.msra.mxu0 0
      %2213 = vmatprep.subr.bf16.mxu0 0
      %2214 = vmatpush2.bf16.msra.mxu0 0
      %2215 = vmatprep.subr.bf16.mxu0 0
      %2216 = vmatpush2.bf16.msra.mxu0 0
      %2217 = vmatprep.subr.bf16.mxu0 0
      %2218 = vmatpush2.bf16.msra.mxu0 0
      %2219 = vmatprep.subr.bf16.mxu0 0
      %2220 = vmatpush2.bf16.msra.mxu0 0
      %2221 = vmatprep.subr.bf16.mxu0 0
      %2222 = vmatpush2.bf16.msra.mxu0 0
      %2223 = vmatprep.mubr.bf16.mxu0 0
      %2224 = vmatmul.mubr.bf16.gmra.mxu0 %v2180
      %v2225 = vpop.f32.mrf.mxu0
      %v2226 = vadd.f32 0.0, %v2225
      %v2227 = vpop.f32.mrf.mxu0
      %v2228 = vadd.f32 0.0, %v2227
      %v2229 = vpop.f32.mrf.mxu0
      %v2230 = vpop.f32.mrf.mxu0
      %2231 = vdwg.mxu0
      %2232 = vmatprep.subr.bf16.mxu0 0
      %2233 = vmatpush1.bf16.msra.mxu0 0
      %2234 = vmatprep.subr.bf16.mxu0 0
      %2235 = vmatpush1.bf16.msra.mxu0 0
      %2236 = vmatprep.subr.bf16.mxu0 0
      %2237 = vmatpush1.bf16.msra.mxu0 0
      %2238 = vmatprep.subr.bf16.mxu0 0
      %2239 = vmatpush1.bf16.msra.mxu0 0
      %2240 = vmatprep.subr.bf16.mxu0 0
      %2241 = vmatpush1.bf16.msra.mxu0 0
      %2242 = vmatprep.subr.bf16.mxu0 0
      %2243 = vmatpush1.bf16.msra.mxu0 0
      %2244 = vmatprep.subr.bf16.mxu0 0
      %2245 = vmatpush1.bf16.msra.mxu0 0
      %2246 = vmatprep.subr.bf16.mxu0 0
      %2247 = vmatpush1.bf16.msra.mxu0 %v2189
      %2248 = vmatprep.subr.bf16.mxu0 0
      %2249 = vmatpush2.bf16.msra.mxu0 0
      %2250 = vmatprep.subr.bf16.mxu0 0
      %2251 = vmatpush2.bf16.msra.mxu0 0
      %2252 = vmatprep.subr.bf16.mxu0 0
      %2253 = vmatpush2.bf16.msra.mxu0 0
      %2254 = vmatprep.subr.bf16.mxu0 0
      %2255 = vmatpush2.bf16.msra.mxu0 0
      %2256 = vmatprep.subr.bf16.mxu0 0
      %2257 = vmatpush2.bf16.msra.mxu0 0
      %2258 = vmatprep.subr.bf16.mxu0 0
      %2259 = vmatpush2.bf16.msra.mxu0 0
      %2260 = vmatprep.subr.bf16.mxu0 0
      %2261 = vmatpush2.bf16.msra.mxu0 0
      %2262 = vmatprep.subr.bf16.mxu0 0
      %2263 = vmatpush2.bf16.msra.mxu0 0
      %2264 = vmatprep.mubr.bf16.mxu0 0
      %2265 = vmatmul.mubr.bf16.gmra.mxu0 %v2180
      %v2266 = vpop.f32.mrf.mxu0
      %v2267 = vadd.f32 0.0, %v2266
      %v2268 = vpop.f32.mrf.mxu0
      %v2269 = vpop.f32.mrf.mxu0
      %v2270 = vpop.f32.mrf.mxu0
      %2271 = vdwg.mxu0
      %v2272 = vadd.f32 %v2148, %v2226
      %v2273 = vadd.f32 %v2149, %v2228
      %v2274 = vadd.f32 %v2150, %v2267
      %s2275 = scalar_lea.vmem %s3, 24
      %v2276 = vld [vmem:[%s2275] sm:$0xf]
      %v2277 = vld [vmem:[#allocation2] sm:$0x3f]
      %v2279 = vcombine.high %v2277, %v2277
      %v2281 = vunpack.c.l.s4 1983009808
      %v2282 = vunpack.c.0.s8 %v2281
      %v2283 = vlaneseq
      %v2284 = vshrl.u32 %v2283, 7
      %v2285 = vsub.s32 %v2282, %v2284
      %v2286 = vrot.slane %v2277, %v2285
      %v2288 = vunpack.c.l.s4 1983009808
      %v2289 = vunpack.c.0.s8 %v2288
      %v2290 = vlaneseq
      %v2291 = vshrl.u32 %v2290, 7
      %v2292 = vsub.s32 %v2289, %v2291
      %v2293 = vrot.slane %v2279, %v2292
      %v2294 = vcombine.high %v2286, %v2286
      %2295 = vrot.lane.b32.xlu0 %v2286, 75
      %v2296 = vpop.permute.xlu0 %2295
      %2297 = vrot.lane.b32.xlu0 %v2294, 75
      %v2298 = vpop.permute.xlu0 %2297
      %2299 = vrot.lane.b32.xlu0 %v2293, 75
      %v2300 = vpop.permute.xlu0 %2299
      %v2301 = vsel %vm1038, %v2296, %v2298
      %v2302 = vsel %vm1038, %v2298, %v2300
      %v2304 = vsel %vm315, %v2276, 0
      %v2307 = vsel %vm319, %v2301, 0
      %v2310 = vsel %vm319, %v2302, 0
      %v2313 = vsel %vm319, %v2300, 0
      %2315 = vmatprep.subr.bf16.mxu0 0
      %2316 = vmatpush1.bf16.msra.mxu0 0
      %2317 = vmatprep.subr.bf16.mxu0 0
      %2318 = vmatpush1.bf16.msra.mxu0 0
      %2319 = vmatprep.subr.bf16.mxu0 0
      %2320 = vmatpush1.bf16.msra.mxu0 0
      %2321 = vmatprep.subr.bf16.mxu0 0
      %2322 = vmatpush1.bf16.msra.mxu0 0
      %2323 = vmatprep.subr.bf16.mxu0 0
      %2324 = vmatpush1.bf16.msra.mxu0 0
      %2325 = vmatprep.subr.bf16.mxu0 0
      %2326 = vmatpush1.bf16.msra.mxu0 0
      %2327 = vmatprep.subr.bf16.mxu0 0
      %2328 = vmatpush1.bf16.msra.mxu0 0
      %2329 = vmatprep.subr.bf16.mxu0 %v2310
      %2330 = vmatpush1.bf16.msra.mxu0 %v2307
      %2331 = vmatprep.subr.bf16.mxu0 0
      %2332 = vmatpush2.bf16.msra.mxu0 0
      %2333 = vmatprep.subr.bf16.mxu0 0
      %2334 = vmatpush2.bf16.msra.mxu0 0
      %2335 = vmatprep.subr.bf16.mxu0 0
      %2336 = vmatpush2.bf16.msra.mxu0 0
      %2337 = vmatprep.subr.bf16.mxu0 0
      %2338 = vmatpush2.bf16.msra.mxu0 0
      %2339 = vmatprep.subr.bf16.mxu0 0
      %2340 = vmatpush2.bf16.msra.mxu0 0
      %2341 = vmatprep.subr.bf16.mxu0 0
      %2342 = vmatpush2.bf16.msra.mxu0 0
      %2343 = vmatprep.subr.bf16.mxu0 0
      %2344 = vmatpush2.bf16.msra.mxu0 0
      %2345 = vmatprep.subr.bf16.mxu0 0
      %2346 = vmatpush2.bf16.msra.mxu0 0
      %2347 = vmatprep.mubr.bf16.mxu0 0
      %2348 = vmatmul.mubr.bf16.gmra.mxu0 %v2304
      %v2349 = vpop.f32.mrf.mxu0
      %v2350 = vadd.f32 0.0, %v2349
      %v2351 = vpop.f32.mrf.mxu0
      %v2352 = vadd.f32 0.0, %v2351
      %v2353 = vpop.f32.mrf.mxu0
      %v2354 = vpop.f32.mrf.mxu0
      %2355 = vdwg.mxu0
      %2356 = vmatprep.subr.bf16.mxu0 0
      %2357 = vmatpush1.bf16.msra.mxu0 0
      %2358 = vmatprep.subr.bf16.mxu0 0
      %2359 = vmatpush1.bf16.msra.mxu0 0
      %2360 = vmatprep.subr.bf16.mxu0 0
      %2361 = vmatpush1.bf16.msra.mxu0 0
      %2362 = vmatprep.subr.bf16.mxu0 0
      %2363 = vmatpush1.bf16.msra.mxu0 0
      %2364 = vmatprep.subr.bf16.mxu0 0
      %2365 = vmatpush1.bf16.msra.mxu0 0
      %2366 = vmatprep.subr.bf16.mxu0 0
      %2367 = vmatpush1.bf16.msra.mxu0 0
      %2368 = vmatprep.subr.bf16.mxu0 0
      %2369 = vmatpush1.bf16.msra.mxu0 0
      %2370 = vmatprep.subr.bf16.mxu0 0
      %2371 = vmatpush1.bf16.msra.mxu0 %v2313
      %2372 = vmatprep.subr.bf16.mxu0 0
      %2373 = vmatpush2.bf16.msra.mxu0 0
      %2374 = vmatprep.subr.bf16.mxu0 0
      %2375 = vmatpush2.bf16.msra.mxu0 0
      %2376 = vmatprep.subr.bf16.mxu0 0
      %2377 = vmatpush2.bf16.msra.mxu0 0
      %2378 = vmatprep.subr.bf16.mxu0 0
      %2379 = vmatpush2.bf16.msra.mxu0 0
      %2380 = vmatprep.subr.bf16.mxu0 0
      %2381 = vmatpush2.bf16.msra.mxu0 0
      %2382 = vmatprep.subr.bf16.mxu0 0
      %2383 = vmatpush2.bf16.msra.mxu0 0
      %2384 = vmatprep.subr.bf16.mxu0 0
      %2385 = vmatpush2.bf16.msra.mxu0 0
      %2386 = vmatprep.subr.bf16.mxu0 0
      %2387 = vmatpush2.bf16.msra.mxu0 0
      %2388 = vmatprep.mubr.bf16.mxu0 0
      %2389 = vmatmul.mubr.bf16.gmra.mxu0 %v2304
      %v2390 = vpop.f32.mrf.mxu0
      %v2391 = vadd.f32 0.0, %v2390
      %v2392 = vpop.f32.mrf.mxu0
      %v2393 = vpop.f32.mrf.mxu0
      %v2394 = vpop.f32.mrf.mxu0
      %2395 = vdwg.mxu0
      %v2396 = vadd.f32 %v2272, %v2350
      %v2397 = vadd.f32 %v2273, %v2352
      %v2398 = vadd.f32 %v2274, %v2391
      %s2399 = scalar_lea.vmem %s3, 28
      %v2400 = vld [vmem:[%s2399] sm:$0xf]
      %v2401 = vld [vmem:[#allocation2] sm:$0x3f]
      %v2403 = vcombine.high %v2401, %v2401
      %v2405 = vunpack.c.l.s4 1983009808
      %v2406 = vunpack.c.0.s8 %v2405
      %v2407 = vlaneseq
      %v2408 = vshrl.u32 %v2407, 7
      %v2409 = vsub.s32 %v2406, %v2408
      %v2410 = vrot.slane %v2401, %v2409
      %v2412 = vunpack.c.l.s4 1983009808
      %v2413 = vunpack.c.0.s8 %v2412
      %v2414 = vlaneseq
      %v2415 = vshrl.u32 %v2414, 7
      %v2416 = vsub.s32 %v2413, %v2415
      %v2417 = vrot.slane %v2403, %v2416
      %v2418 = vcombine.high %v2410, %v2410
      %2419 = vrot.lane.b32.xlu0 %v2410, 74
      %v2420 = vpop.permute.xlu0 %2419
      %2421 = vrot.lane.b32.xlu0 %v2418, 74
      %v2422 = vpop.permute.xlu0 %2421
      %2423 = vrot.lane.b32.xlu0 %v2417, 74
      %v2424 = vpop.permute.xlu0 %2423
      %v2425 = vsel %vm1163, %v2420, %v2422
      %v2426 = vsel %vm1163, %v2422, %v2424
      %v2428 = vsel %vm315, %v2400, 0
      %v2431 = vsel %vm319, %v2425, 0
      %v2434 = vsel %vm319, %v2426, 0
      %v2437 = vsel %vm319, %v2424, 0
      %2439 = vmatprep.subr.bf16.mxu0 0
      %2440 = vmatpush1.bf16.msra.mxu0 0
      %2441 = vmatprep.subr.bf16.mxu0 0
      %2442 = vmatpush1.bf16.msra.mxu0 0
      %2443 = vmatprep.subr.bf16.mxu0 0
      %2444 = vmatpush1.bf16.msra.mxu0 0
      %2445 = vmatprep.subr.bf16.mxu0 0
      %2446 = vmatpush1.bf16.msra.mxu0 0
      %2447 = vmatprep.subr.bf16.mxu0 0
      %2448 = vmatpush1.bf16.msra.mxu0 0
      %2449 = vmatprep.subr.bf16.mxu0 0
      %2450 = vmatpush1.bf16.msra.mxu0 0
      %2451 = vmatprep.subr.bf16.mxu0 0
      %2452 = vmatpush1.bf16.msra.mxu0 0
      %2453 = vmatprep.subr.bf16.mxu0 %v2434
      %2454 = vmatpush1.bf16.msra.mxu0 %v2431
      %2455 = vmatprep.subr.bf16.mxu0 0
      %2456 = vmatpush2.bf16.msra.mxu0 0
      %2457 = vmatprep.subr.bf16.mxu0 0
      %2458 = vmatpush2.bf16.msra.mxu0 0
      %2459 = vmatprep.subr.bf16.mxu0 0
      %2460 = vmatpush2.bf16.msra.mxu0 0
      %2461 = vmatprep.subr.bf16.mxu0 0
      %2462 = vmatpush2.bf16.msra.mxu0 0
      %2463 = vmatprep.subr.bf16.mxu0 0
      %2464 = vmatpush2.bf16.msra.mxu0 0
      %2465 = vmatprep.subr.bf16.mxu0 0
      %2466 = vmatpush2.bf16.msra.mxu0 0
      %2467 = vmatprep.subr.bf16.mxu0 0
      %2468 = vmatpush2.bf16.msra.mxu0 0
      %2469 = vmatprep.subr.bf16.mxu0 0
      %2470 = vmatpush2.bf16.msra.mxu0 0
      %2471 = vmatprep.mubr.bf16.mxu0 0
      %2472 = vmatmul.mubr.bf16.gmra.mxu0 %v2428
      %v2473 = vpop.f32.mrf.mxu0
      %v2474 = vadd.f32 0.0, %v2473
      %v2475 = vpop.f32.mrf.mxu0
      %v2476 = vadd.f32 0.0, %v2475
      %v2477 = vpop.f32.mrf.mxu0
      %v2478 = vpop.f32.mrf.mxu0
      %2479 = vdwg.mxu0
      %2480 = vmatprep.subr.bf16.mxu0 0
      %2481 = vmatpush1.bf16.msra.mxu0 0
      %2482 = vmatprep.subr.bf16.mxu0 0
      %2483 = vmatpush1.bf16.msra.mxu0 0
      %2484 = vmatprep.subr.bf16.mxu0 0
      %2485 = vmatpush1.bf16.msra.mxu0 0
      %2486 = vmatprep.subr.bf16.mxu0 0
      %2487 = vmatpush1.bf16.msra.mxu0 0
      %2488 = vmatprep.subr.bf16.mxu0 0
      %2489 = vmatpush1.bf16.msra.mxu0 0
      %2490 = vmatprep.subr.bf16.mxu0 0
      %2491 = vmatpush1.bf16.msra.mxu0 0
      %2492 = vmatprep.subr.bf16.mxu0 0
      %2493 = vmatpush1.bf16.msra.mxu0 0
      %2494 = vmatprep.subr.bf16.mxu0 0
      %2495 = vmatpush1.bf16.msra.mxu0 %v2437
      %2496 = vmatprep.subr.bf16.mxu0 0
      %2497 = vmatpush2.bf16.msra.mxu0 0
      %2498 = vmatprep.subr.bf16.mxu0 0
      %2499 = vmatpush2.bf16.msra.mxu0 0
      %2500 = vmatprep.subr.bf16.mxu0 0
      %2501 = vmatpush2.bf16.msra.mxu0 0
      %2502 = vmatprep.subr.bf16.mxu0 0
      %2503 = vmatpush2.bf16.msra.mxu0 0
      %2504 = vmatprep.subr.bf16.mxu0 0
      %2505 = vmatpush2.bf16.msra.mxu0 0
      %2506 = vmatprep.subr.bf16.mxu0 0
      %2507 = vmatpush2.bf16.msra.mxu0 0
      %2508 = vmatprep.subr.bf16.mxu0 0
      %2509 = vmatpush2.bf16.msra.mxu0 0
      %2510 = vmatprep.subr.bf16.mxu0 0
      %2511 = vmatpush2.bf16.msra.mxu0 0
      %2512 = vmatprep.mubr.bf16.mxu0 0
      %2513 = vmatmul.mubr.bf16.gmra.mxu0 %v2428
      %v2514 = vpop.f32.mrf.mxu0
      %v2515 = vadd.f32 0.0, %v2514
      %v2516 = vpop.f32.mrf.mxu0
      %v2517 = vpop.f32.mrf.mxu0
      %v2518 = vpop.f32.mrf.mxu0
      %2519 = vdwg.mxu0
      %v2520 = vadd.f32 %v2396, %v2474
      %v2521 = vadd.f32 %v2397, %v2476
      %v2522 = vadd.f32 %v2398, %v2515
      %s2523 = scalar_lea.vmem %s3, 32
      %v2524 = vld [vmem:[%s2523] sm:$0xf]
      %v2525 = vld [vmem:[#allocation2] sm:$0x3f]
      %v2527 = vcombine.high %v2525, %v2525
      %v2529 = vunpack.c.l.s4 1983009808
      %v2530 = vunpack.c.0.s8 %v2529
      %v2531 = vlaneseq
      %v2532 = vshrl.u32 %v2531, 7
      %v2533 = vsub.s32 %v2530, %v2532
      %v2534 = vrot.slane %v2525, %v2533
      %v2536 = vunpack.c.l.s4 1983009808
      %v2537 = vunpack.c.0.s8 %v2536
      %v2538 = vlaneseq
      %v2539 = vshrl.u32 %v2538, 7
      %v2540 = vsub.s32 %v2537, %v2539
      %v2541 = vrot.slane %v2527, %v2540
      %v2542 = vcombine.high %v2534, %v2534
      %2543 = vrot.lane.b32.xlu0 %v2534, 73
      %v2544 = vpop.permute.xlu0 %2543
      %2545 = vrot.lane.b32.xlu0 %v2542, 73
      %v2546 = vpop.permute.xlu0 %2545
      %2547 = vrot.lane.b32.xlu0 %v2541, 73
      %v2548 = vpop.permute.xlu0 %2547
      %v2549 = vsel %vm1288, %v2544, %v2546
      %v2550 = vsel %vm1288, %v2546, %v2548
      %v2552 = vsel %vm315, %v2524, 0
      %v2555 = vsel %vm319, %v2549, 0
      %v2558 = vsel %vm319, %v2550, 0
      %v2561 = vsel %vm319, %v2548, 0
      %2563 = vmatprep.subr.bf16.mxu0 0
      %2564 = vmatpush1.bf16.msra.mxu0 0
      %2565 = vmatprep.subr.bf16.mxu0 0
      %2566 = vmatpush1.bf16.msra.mxu0 0
      %2567 = vmatprep.subr.bf16.mxu0 0
      %2568 = vmatpush1.bf16.msra.mxu0 0
      %2569 = vmatprep.subr.bf16.mxu0 0
      %2570 = vmatpush1.bf16.msra.mxu0 0
      %2571 = vmatprep.subr.bf16.mxu0 0
      %2572 = vmatpush1.bf16.msra.mxu0 0
      %2573 = vmatprep.subr.bf16.mxu0 0
      %2574 = vmatpush1.bf16.msra.mxu0 0
      %2575 = vmatprep.subr.bf16.mxu0 0
      %2576 = vmatpush1.bf16.msra.mxu0 0
      %2577 = vmatprep.subr.bf16.mxu0 %v2558
      %2578 = vmatpush1.bf16.msra.mxu0 %v2555
      %2579 = vmatprep.subr.bf16.mxu0 0
      %2580 = vmatpush2.bf16.msra.mxu0 0
      %2581 = vmatprep.subr.bf16.mxu0 0
      %2582 = vmatpush2.bf16.msra.mxu0 0
      %2583 = vmatprep.subr.bf16.mxu0 0
      %2584 = vmatpush2.bf16.msra.mxu0 0
      %2585 = vmatprep.subr.bf16.mxu0 0
      %2586 = vmatpush2.bf16.msra.mxu0 0
      %2587 = vmatprep.subr.bf16.mxu0 0
      %2588 = vmatpush2.bf16.msra.mxu0 0
      %2589 = vmatprep.subr.bf16.mxu0 0
      %2590 = vmatpush2.bf16.msra.mxu0 0
      %2591 = vmatprep.subr.bf16.mxu0 0
      %2592 = vmatpush2.bf16.msra.mxu0 0
      %2593 = vmatprep.subr.bf16.mxu0 0
      %2594 = vmatpush2.bf16.msra.mxu0 0
      %2595 = vmatprep.mubr.bf16.mxu0 0
      %2596 = vmatmul.mubr.bf16.gmra.mxu0 %v2552
      %v2597 = vpop.f32.mrf.mxu0
      %v2598 = vadd.f32 0.0, %v2597
      %v2599 = vpop.f32.mrf.mxu0
      %v2600 = vadd.f32 0.0, %v2599
      %v2601 = vpop.f32.mrf.mxu0
      %v2602 = vpop.f32.mrf.mxu0
      %2603 = vdwg.mxu0
      %2604 = vmatprep.subr.bf16.mxu0 0
      %2605 = vmatpush1.bf16.msra.mxu0 0
      %2606 = vmatprep.subr.bf16.mxu0 0
      %2607 = vmatpush1.bf16.msra.mxu0 0
      %2608 = vmatprep.subr.bf16.mxu0 0
      %2609 = vmatpush1.bf16.msra.mxu0 0
      %2610 = vmatprep.subr.bf16.mxu0 0
      %2611 = vmatpush1.bf16.msra.mxu0 0
      %2612 = vmatprep.subr.bf16.mxu0 0
      %2613 = vmatpush1.bf16.msra.mxu0 0
      %2614 = vmatprep.subr.bf16.mxu0 0
      %2615 = vmatpush1.bf16.msra.mxu0 0
      %2616 = vmatprep.subr.bf16.mxu0 0
      %2617 = vmatpush1.bf16.msra.mxu0 0
      %2618 = vmatprep.subr.bf16.mxu0 0
      %2619 = vmatpush1.bf16.msra.mxu0 %v2561
      %2620 = vmatprep.subr.bf16.mxu0 0
      %2621 = vmatpush2.bf16.msra.mxu0 0
      %2622 = vmatprep.subr.bf16.mxu0 0
      %2623 = vmatpush2.bf16.msra.mxu0 0
      %2624 = vmatprep.subr.bf16.mxu0 0
      %2625 = vmatpush2.bf16.msra.mxu0 0
      %2626 = vmatprep.subr.bf16.mxu0 0
      %2627 = vmatpush2.bf16.msra.mxu0 0
      %2628 = vmatprep.subr.bf16.mxu0 0
      %2629 = vmatpush2.bf16.msra.mxu0 0
      %2630 = vmatprep.subr.bf16.mxu0 0
      %2631 = vmatpush2.bf16.msra.mxu0 0
      %2632 = vmatprep.subr.bf16.mxu0 0
      %2633 = vmatpush2.bf16.msra.mxu0 0
      %2634 = vmatprep.subr.bf16.mxu0 0
      %2635 = vmatpush2.bf16.msra.mxu0 0
      %2636 = vmatprep.mubr.bf16.mxu0 0
      %2637 = vmatmul.mubr.bf16.gmra.mxu0 %v2552
      %v2638 = vpop.f32.mrf.mxu0
      %v2639 = vadd.f32 0.0, %v2638
      %v2640 = vpop.f32.mrf.mxu0
      %v2641 = vpop.f32.mrf.mxu0
      %v2642 = vpop.f32.mrf.mxu0
      %2643 = vdwg.mxu0
      %v2644 = vadd.f32 %v2520, %v2598
      %v2645 = vadd.f32 %v2521, %v2600
      %v2646 = vadd.f32 %v2522, %v2639
      %v2647 = vld [vmem:[%s4] sm:$0xff]
      %2649 = vset.pattern.permute.xlu0 0
      %2650 = vperm.xlu0 %2649, %v2647
      %v2651 = vpop.permute.xlu0 %2650
      %v2653 = vadd.f32 %v2644, %v2651
      %v2654 = vadd.f32 %v2645, %v2651
      %v2655 = vadd.f32 %v2646, %v2651
      %v2656 = vrot.slane %v2653, 4
      %v2657 = vadd.f32 %v2653, %v2656
      %v2658 = vrot.slane %v2657, 2
      %v2659 = vadd.f32 %v2657, %v2658
      %v2660 = vrot.slane %v2659, 1
      %v2661 = vadd.f32 %v2659, %v2660
      %v2662 = vrot.slane %v2654, 4
      %v2663 = vadd.f32 %v2654, %v2662
      %v2664 = vrot.slane %v2663, 2
      %v2665 = vadd.f32 %v2663, %v2664
      %v2666 = vrot.slane %v2665, 1
      %v2667 = vadd.f32 %v2665, %v2666
      %vm2668 = vcmask 261120
      %v2669 = vsel %vm2668, %v2655, 0.0
      %v2670 = vrot.slane %v2669, 4
      %v2671 = vadd.f32 %v2669, %v2670
      %v2672 = vrot.slane %v2671, 2
      %v2673 = vadd.f32 %v2671, %v2672
      %v2674 = vrot.slane %v2673, 1
      %v2675 = vadd.f32 %v2673, %v2674
      %v2676 = vrcp.pop 8.0
      %v2677 = vmul.f32 %v2661, %v2676
      %v2678 = vmul.f32 %v2667, %v2676
      %v2679 = vmul.f32 %v2675, %v2676
      %v2680 = vsub.f32 %v2653, %v2677
      %v2681 = vsub.f32 %v2654, %v2678
      %v2682 = vsub.f32 %v2655, %v2679
      %v2683 = vmul.f32 %v2680, %v2680
      %v2684 = vmul.f32 %v2681, %v2681
      %v2685 = vmul.f32 %v2682, %v2682
      %v2686 = vrot.slane %v2683, 4
      %v2687 = vadd.f32 %v2683, %v2686
      %v2688 = vrot.slane %v2687, 2
      %v2689 = vadd.f32 %v2687, %v2688
      %v2690 = vrot.slane %v2689, 1
      %v2691 = vadd.f32 %v2689, %v2690
      %v2692 = vrot.slane %v2684, 4
      %v2693 = vadd.f32 %v2684, %v2692
      %v2694 = vrot.slane %v2693, 2
      %v2695 = vadd.f32 %v2693, %v2694
      %v2696 = vrot.slane %v2695, 1
      %v2697 = vadd.f32 %v2695, %v2696
      %v2698 = vsel %vm2668, %v2685, 0.0
      %v2699 = vrot.slane %v2698, 4
      %v2700 = vadd.f32 %v2698, %v2699
      %v2701 = vrot.slane %v2700, 2
      %v2702 = vadd.f32 %v2700, %v2701
      %v2703 = vrot.slane %v2702, 1
      %v2704 = vadd.f32 %v2702, %v2703
      %v2705 = vmul.f32 %v2691, %v2676
      %v2706 = vmul.f32 %v2697, %v2676
      %v2707 = vmul.f32 %v2704, %v2676
      %v2708 = vadd.f32 %v2705, 1e-05
      %v2709 = vadd.f32 %v2706, 1e-05
      %v2710 = vadd.f32 %v2707, 1e-05
      %v2711 = vrsqrt.pop %v2708
      %v2712 = vrsqrt.pop %v2709
      %v2713 = vrsqrt.pop %v2710
      %v2714 = vmul.f32 %v2680, %v2711
      %v2715 = vmul.f32 %v2681, %v2712
      %v2716 = vmul.f32 %v2682, %v2713
      %2717 = vset.pattern.permute.xlu0 1
      %2718 = vperm.xlu0 %2717, %v2647
      %v2719 = vpop.permute.xlu0 %2718
      %v2721 = vmul.f32 %v2714, %v2719
      %v2722 = vmul.f32 %v2715, %v2719
      %v2723 = vmul.f32 %v2716, %v2719
      %2724 = vset.pattern.permute.xlu0 2
      %2725 = vperm.xlu0 %2724, %v2647
      %v2726 = vpop.permute.xlu0 %2725
      %v2728 = vadd.f32 %v2721, %v2726
      %v2729 = vadd.f32 %v2722, %v2726
      %v2730 = vadd.f32 %v2723, %v2726
      %v2731 = vmul.f32 %v2728, 0.5
      %v2732 = vmul.f32 %v2729, 0.5
      %v2733 = vmul.f32 %v2730, 0.5
      %v2734 = vmul.f32 %v2728, 0.044715
      %v2735 = vmul.f32 %v2729, 0.044715
      %v2736 = vmul.f32 %v2730, 0.044715
      %v2737 = vmul.f32 %v2734, %v2728
      %v2738 = vmul.f32 %v2735, %v2729
      %v2739 = vmul.f32 %v2736, %v2730
      %v2740 = vmul.f32 %v2737, %v2728
      %v2741 = vmul.f32 %v2738, %v2729
      %v2742 = vmul.f32 %v2739, %v2730
      %v2743 = vadd.f32 %v2728, %v2740
      %v2744 = vadd.f32 %v2729, %v2741
      %v2745 = vadd.f32 %v2730, %v2742
      %v2746 = vmul.f32 %v2743, 0.7978846
      %v2747 = vmul.f32 %v2744, 0.7978846
      %v2748 = vmul.f32 %v2745, 0.7978846
      %v2749 = vtanh.pop %v2746
      %v2750 = vtanh.pop %v2747
      %v2751 = vtanh.pop %v2748
      %v2752 = vadd.f32 %v2749, 1.0
      %v2753 = vadd.f32 %v2750, 1.0
      %v2754 = vadd.f32 %v2751, 1.0
      %v2755 = vmul.f32 %v2731, %v2752
      %v2756 = vmul.f32 %v2732, %v2753
      %v2757 = vmul.f32 %v2733, %v2754
      %v2758 = vld [vmem:[%s5] sm:$0xf]
      %v2759 = vld [vmem:[%s273] sm:$0x3f]
      %v2761 = vcombine.high %v2759, %v2759
      %v2763 = vunpack.c.l.s4 1983009808
      %v2764 = vunpack.c.0.s8 %v2763
      %v2765 = vlaneseq
      %v2766 = vshrl.u32 %v2765, 7
      %v2767 = vsub.s32 %v2764, %v2766
      %v2768 = vrot.slane %v2759, %v2767
      %v2770 = vunpack.c.l.s4 1983009808
      %v2771 = vunpack.c.0.s8 %v2770
      %v2772 = vlaneseq
      %v2773 = vshrl.u32 %v2772, 7
      %v2774 = vsub.s32 %v2771, %v2773
      %v2775 = vrot.slane %v2761, %v2774
      %v2776 = vcombine.high %v2768, %v2768
      %2777 = vrot.lane.b32.xlu0 %v2768, 92
      %v2778 = vpop.permute.xlu0 %2777
      %2779 = vrot.lane.b32.xlu0 %v2776, 92
      %v2780 = vpop.permute.xlu0 %2779
      %2781 = vrot.lane.b32.xlu0 %v2775, 92
      %v2782 = vpop.permute.xlu0 %2781
      %v2783 = vsel %vm788, %v2778, %v2780
      %v2784 = vsel %vm788, %v2780, %v2782
      %v2786 = vsel %vm315, %v2758, 0
      %v2789 = vsel %vm319, %v2783, 0
      %v2792 = vsel %vm319, %v2784, 0
      %v2795 = vsel %vm319, %v2782, 0
      %2797 = vmatprep.subr.bf16.mxu0 0
      %2798 = vmatpush1.bf16.msra.mxu0 0
      %2799 = vmatprep.subr.bf16.mxu0 0
      %2800 = vmatpush1.bf16.msra.mxu0 0
      %2801 = vmatprep.subr.bf16.mxu0 0
      %2802 = vmatpush1.bf16.msra.mxu0 0
      %2803 = vmatprep.subr.bf16.mxu0 0
      %2804 = vmatpush1.bf16.msra.mxu0 0
      %2805 = vmatprep.subr.bf16.mxu0 0
      %2806 = vmatpush1.bf16.msra.mxu0 0
      %2807 = vmatprep.subr.bf16.mxu0 0
      %2808 = vmatpush1.bf16.msra.mxu0 0
      %2809 = vmatprep.subr.bf16.mxu0 0
      %2810 = vmatpush1.bf16.msra.mxu0 0
      %2811 = vmatprep.subr.bf16.mxu0 %v2792
      %2812 = vmatpush1.bf16.msra.mxu0 %v2789
      %2813 = vmatprep.subr.bf16.mxu0 0
      %2814 = vmatpush2.bf16.msra.mxu0 0
      %2815 = vmatprep.subr.bf16.mxu0 0
      %2816 = vmatpush2.bf16.msra.mxu0 0
      %2817 = vmatprep.subr.bf16.mxu0 0
      %2818 = vmatpush2.bf16.msra.mxu0 0
      %2819 = vmatprep.subr.bf16.mxu0 0
      %2820 = vmatpush2.bf16.msra.mxu0 0
      %2821 = vmatprep.subr.bf16.mxu0 0
      %2822 = vmatpush2.bf16.msra.mxu0 0
      %2823 = vmatprep.subr.bf16.mxu0 0
      %2824 = vmatpush2.bf16.msra.mxu0 0
      %2825 = vmatprep.subr.bf16.mxu0 0
      %2826 = vmatpush2.bf16.msra.mxu0 0
      %2827 = vmatprep.subr.bf16.mxu0 0
      %2828 = vmatpush2.bf16.msra.mxu0 0
      %2829 = vmatprep.mubr.bf16.mxu0 0
      %2830 = vmatmul.mubr.bf16.gmra.mxu0 %v2786
      %v2831 = vpop.f32.mrf.mxu0
      %v2832 = vadd.f32 0.0, %v2831
      %v2833 = vpop.f32.mrf.mxu0
      %v2834 = vadd.f32 0.0, %v2833
      %v2835 = vpop.f32.mrf.mxu0
      %v2836 = vpop.f32.mrf.mxu0
      %2837 = vdwg.mxu0
      %2838 = vmatprep.subr.bf16.mxu0 0
      %2839 = vmatpush1.bf16.msra.mxu0 0
      %2840 = vmatprep.subr.bf16.mxu0 0
      %2841 = vmatpush1.bf16.msra.mxu0 0
      %2842 = vmatprep.subr.bf16.mxu0 0
      %2843 = vmatpush1.bf16.msra.mxu0 0
      %2844 = vmatprep.subr.bf16.mxu0 0
      %2845 = vmatpush1.bf16.msra.mxu0 0
      %2846 = vmatprep.subr.bf16.mxu0 0
      %2847 = vmatpush1.bf16.msra.mxu0 0
      %2848 = vmatprep.subr.bf16.mxu0 0
      %2849 = vmatpush1.bf16.msra.mxu0 0
      %2850 = vmatprep.subr.bf16.mxu0 0
      %2851 = vmatpush1.bf16.msra.mxu0 0
      %2852 = vmatprep.subr.bf16.mxu0 0
      %2853 = vmatpush1.bf16.msra.mxu0 %v2795
      %2854 = vmatprep.subr.bf16.mxu0 0
      %2855 = vmatpush2.bf16.msra.mxu0 0
      %2856 = vmatprep.subr.bf16.mxu0 0
      %2857 = vmatpush2.bf16.msra.mxu0 0
      %2858 = vmatprep.subr.bf16.mxu0 0
      %2859 = vmatpush2.bf16.msra.mxu0 0
      %2860 = vmatprep.subr.bf16.mxu0 0
      %2861 = vmatpush2.bf16.msra.mxu0 0
      %2862 = vmatprep.subr.bf16.mxu0 0
      %2863 = vmatpush2.bf16.msra.mxu0 0
      %2864 = vmatprep.subr.bf16.mxu0 0
      %2865 = vmatpush2.bf16.msra.mxu0 0
      %2866 = vmatprep.subr.bf16.mxu0 0
      %2867 = vmatpush2.bf16.msra.mxu0 0
      %2868 = vmatprep.subr.bf16.mxu0 0
      %2869 = vmatpush2.bf16.msra.mxu0 0
      %2870 = vmatprep.mubr.bf16.mxu0 0
      %2871 = vmatmul.mubr.bf16.gmra.mxu0 %v2786
      %v2872 = vpop.f32.mrf.mxu0
      %v2873 = vadd.f32 0.0, %v2872
      %v2874 = vpop.f32.mrf.mxu0
      %v2875 = vpop.f32.mrf.mxu0
      %v2876 = vpop.f32.mrf.mxu0
      %2877 = vdwg.mxu0
      %v2878 = vadd.f32 %v2755, %v2832
      %v2879 = vadd.f32 %v2756, %v2834
      %v2880 = vadd.f32 %v2757, %v2873
      %v2881 = vmul.f32 %v2878, 0.5
      %v2882 = vmul.f32 %v2879, 0.5
      %v2883 = vmul.f32 %v2880, 0.5
      %v2884 = vmul.f32 %v2878, 0.044715
      %v2885 = vmul.f32 %v2879, 0.044715
      %v2886 = vmul.f32 %v2880, 0.044715
      %v2887 = vmul.f32 %v2884, %v2878
      %v2888 = vmul.f32 %v2885, %v2879
      %v2889 = vmul.f32 %v2886, %v2880
      %v2890 = vmul.f32 %v2887, %v2878
      %v2891 = vmul.f32 %v2888, %v2879
      %v2892 = vmul.f32 %v2889, %v2880
      %v2893 = vadd.f32 %v2878, %v2890
      %v2894 = vadd.f32 %v2879, %v2891
      %v2895 = vadd.f32 %v2880, %v2892
      %v2896 = vmul.f32 %v2893, 0.7978846
      %v2897 = vmul.f32 %v2894, 0.7978846
      %v2898 = vmul.f32 %v2895, 0.7978846
      %v2899 = vtanh.pop %v2896
      %v2900 = vtanh.pop %v2897
      %v2901 = vtanh.pop %v2898
      %v2902 = vadd.f32 %v2899, 1.0
      %v2903 = vadd.f32 %v2900, 1.0
      %v2904 = vadd.f32 %v2901, 1.0
      %v2905 = vmul.f32 %v2881, %v2902
      %v2906 = vmul.f32 %v2882, %v2903
      %v2907 = vmul.f32 %v2883, %v2904
      %2908 = vst [vmem:[%s278] sm:$0xff] %v2905
      %2909 = vst [vmem:[%s278 + $0x8] sm:$0xff] %v2906
      %2910 = vst.msk [vmem:[%s278 + $0x10] sm:$0xff] %vm2668, %v2907
      %p2911 = scmp.lt.s32.totalorder %s18, 1
      %s2912 = scalar_select %p2911, %s18, 1
      %s2913 = smul.addr %s2912, 3
      %s2914 = smul.addr %s2913, 8
      %s2915 = scalar_lea.vmem %s7, %s2914
      // Predicated region
      $region49: #{gsimple_block_forward.1} parent=47 // pred_check
        %p2916 = pneg %p188
      $region50: #{gsimple_block_forward.1} parent=47 // pred_check_branch
        %2918 = sbr.rel (%p2916) target = $region52
      $region51: #{gsimple_block_forward.1} parent=47 // pred_region
        _
      $region52: #{gsimple_block_forward.1} parent=47 // pred_fallthru
        _
    $region48: #{gsimple_block_forward.1} parent=5 // pred_fallthru
      _
    %p2919 = scmp.le.s32.totalorder 2, %s13
    // Predicated region
    $region53: #{gsimple_block_forward.1} parent=5 // pred_check
      %p2920 = pneg %p2919
    $region54: #{gsimple_block_forward.1} parent=5 // pred_check_branch
      %2922 = sbr.rel (%p2920) target = $region56
    $region55: #{gsimple_block_forward.1} parent=5 // pred_region
      %s2923 = ssub.s32 %s13, 2
      // Predicated region
      $region57: #{gsimple_block_forward.1} parent=55 // pred_check
        %p2924 = pneg %p194
      $region58: #{gsimple_block_forward.1} parent=55 // pred_check_branch
        %2926 = sbr.rel (%p2924) target = $region60
      $region59: #{gsimple_block_forward.1} parent=55 // pred_region
        %p2927 = scmp.lt.s32.totalorder %s19, 1
        %s2928 = scalar_select %p2927, %s19, 1
        %s2929 = smul.addr %s2928, 3
        %s2930 = smul.addr %s2929, 8
        %s2931 = scalar_lea.vmem %s7, %s2930
      $region60: #{gsimple_block_forward.1} parent=55 // pred_fallthru
        _
    $region56: #{gsimple_block_forward.1} parent=5 // pred_fallthru
      _
  $region6: #{gsimple_block_forward.1} parent=0 // loop_footer
    %s17 = sadd.s32 1, %s13
  $region7: #{gsimple_block_forward.1} parent=0 // loop_footer_branch
    %12 = sbr.rel target = $region3
  $region8: #{gsimple_block_forward.1} parent=0 // loop_exit
    _

</llo_original>
